<compile_context>
chip_gen: v6e
topology: v6e:2x2x1
jax: 0.10.0
libtpu: 0.0.40
codegen_flags: <defaults>
</compile_context>

<pallas_src>
import math

import jax
import jax.numpy as jnp
from jax.experimental import pallas as pl
from jax.experimental.pallas import tpu as pltpu

# ----------------------------- model config ---------------------------------
H = 32        # hidden size
NH = 2        # attention heads
DH = H // NH  # head dim
FF = 64       # FFN intermediate size
V = 128       # vocab size
MAXPOS = 64   # max positions
LN_EPS = 1e-12
SCALE = 1.0 / math.sqrt(DH)

NUM_WEIGHTS = 42  # flattened weight refs passed to the fused kernel


# ========================= in-kernel building blocks =========================
def _mm(a, w_ref):
    """bf16 MXU matmul with f32 accumulation; `w_ref` already holds bf16."""
    return jnp.dot(a.astype(jnp.bfloat16), w_ref[...],
                   preferred_element_type=jnp.float32)


def _ln(x, g_ref, b_ref):
    """LayerNorm over the last (hidden) axis, f32 statistics."""
    mu = jnp.mean(x, axis=-1, keepdims=True)
    var = jnp.mean((x - mu) * (x - mu), axis=-1, keepdims=True)
    return (x - mu) * jax.lax.rsqrt(var + LN_EPS) * g_ref[...] + b_ref[...]


def _gelu(x):
    # TODO(synk): tanh-approx GELU; BERT reference uses exact erf GELU (tiny drift).
    return jax.nn.gelu(x, approximate=True)


def _attend(q, k, v, causal):
    """softmax(q k^T / sqrt(dh)) v for a single head; f32 softmax, bf16 matmuls."""
    s = jax.lax.dot_general(q.astype(jnp.bfloat16), k.astype(jnp.bfloat16),
                            (((1,), (1,)), ((), ())),
                            preferred_element_type=jnp.float32) * SCALE
    if causal:
        qi = jax.lax.broadcasted_iota(jnp.int32, s.shape, 0)
        ki = jax.lax.broadcasted_iota(jnp.int32, s.shape, 1)
        s = jnp.where(ki <= qi, s, -1e30)
    m = jnp.max(s, axis=-1, keepdims=True)
    p = jnp.exp(s - m)
    p = p * pl.reciprocal(jnp.sum(p, axis=-1, keepdims=True), approx=True)
    return jnp.dot(p.astype(jnp.bfloat16), v.astype(jnp.bfloat16),
                   preferred_element_type=jnp.float32)


def _mha_heads(q, k, v, causal):
    """All heads via static unroll over lane slices; returns (seq, H)."""
    outs = []
    for h in range(NH):
        sl = slice(h * DH, (h + 1) * DH)
        outs.append(_attend(q[:, sl], k[:, sl], v[:, sl], causal))
    return jnp.concatenate(outs, axis=-1)


# ============================== fused kernel =================================
def _make_fused_kernel(n_w):
    def kernel(enc_emb_ref, dec_emb_ref, labels_ref, *rest):
        w = rest[:n_w]
        loss_ref, logits_ref = rest[n_w], rest[n_w + 1]
        (e_ln0_g, e_ln0_b, e_wqkv, e_bqkv, e_wo, e_bo, e_ln1_g, e_ln1_b,
         e_w1, e_b1, e_w2, e_b2, e_ln2_g, e_ln2_b,
         d_ln0_g, d_ln0_b, d_wqkv, d_bqkv, d_wo, d_bo, d_ln1_g, d_ln1_b,
         d_xq_w, d_xq_b, d_xkv_w, d_xkv_b, d_xo_w, d_xo_b, d_ln2_g, d_ln2_b,
         d_w1, d_b1, d_w2, d_b2, d_ln3_g, d_ln3_b,
         lm_t_w, lm_t_b, lm_ln_g, lm_ln_b, lm_o_w, lm_o_b) = w

        # ------------------------------ encoder ------------------------------
        x = _ln(enc_emb_ref[0], e_ln0_g, e_ln0_b)                  # (S, H)
        qkv = _mm(x, e_wqkv) + e_bqkv[...]                         # (S, 3H)
        a = _mha_heads(qkv[:, :H], qkv[:, H:2 * H], qkv[:, 2 * H:], causal=False)
        a = _mm(a, e_wo) + e_bo[...]
        x = _ln(x + a, e_ln1_g, e_ln1_b)
        hdn = _gelu(_mm(x, e_w1) + e_b1[...])
        hdn = _mm(hdn, e_w2) + e_b2[...]
        enc_h = _ln(x + hdn, e_ln2_g, e_ln2_b)                     # (S, H)

        # ------------------------------ decoder ------------------------------
        y = _ln(dec_emb_ref[0], d_ln0_g, d_ln0_b)                  # (T, H)
        qkv = _mm(y, d_wqkv) + d_bqkv[...]
        a = _mha_heads(qkv[:, :H], qkv[:, H:2 * H], qkv[:, 2 * H:], causal=True)
        a = _mm(a, d_wo) + d_bo[...]
        y = _ln(y + a, d_ln1_g, d_ln1_b)

        # cross-attention over encoder hidden states (never leaves VMEM)
        q = _mm(y, d_xq_w) + d_xq_b[...]                           # (T, H)
        kvp = _mm(enc_h, d_xkv_w) + d_xkv_b[...]                   # (S, 2H)
        xa = _mha_heads(q, kvp[:, :H], kvp[:, H:], causal=False)
        xa = _mm(xa, d_xo_w) + d_xo_b[...]
        y = _ln(y + xa, d_ln2_g, d_ln2_b)

        hdn = _gelu(_mm(y, d_w1) + d_b1[...])
        hdn = _mm(hdn, d_w2) + d_b2[...]
        y = _ln(y + hdn, d_ln3_g, d_ln3_b)

        # ------------------------- LM head + CE loss -------------------------
        t = _gelu(_mm(y, lm_t_w) + lm_t_b[...])
        t = _ln(t, lm_ln_g, lm_ln_b)
        logits = _mm(t, lm_o_w) + lm_o_b[...]                      # (T, V) lane-dense
        logits_ref[0] = logits

        labels = labels_ref[0]                                     # (T, 1) int32
        mx = jnp.max(logits, axis=-1, keepdims=True)
        lse = mx + jnp.log(jnp.sum(jnp.exp(logits - mx), axis=-1, keepdims=True))
        col = jax.lax.broadcasted_iota(jnp.int32, logits.shape, 1)
        onehot = (col == labels).astype(jnp.float32)
        tgt = jnp.sum(onehot * logits, axis=-1, keepdims=True)
        nll_sum = jnp.sum(lse - tgt)                               # scalar: sum over T tokens
        # TODO(synk): no ignore_index handling (PyTorch masked-LM ignores -100 labels).
        loss_ref[...] = nll_sum * jnp.ones((1, 1, 128), jnp.float32)
    return kernel


# =============================== glue / model ================================
def _flatten_weights(params):
    e, d = params["encoder"], params["decoder"]
    return [
        # encoder
        e["emb_ln"]["g"], e["emb_ln"]["b"],
        e["attn"]["wqkv"], e["attn"]["bqkv"], e["attn"]["wo"], e["attn"]["bo"],
        e["attn_ln"]["g"], e["attn_ln"]["b"],
        e["ffn_w1"]["w"], e["ffn_w1"]["b"], e["ffn_w2"]["w"], e["ffn_w2"]["b"],
        e["ffn_ln"]["g"], e["ffn_ln"]["b"],
        # decoder
        d["emb_ln"]["g"], d["emb_ln"]["b"],
        d["attn"]["wqkv"], d["attn"]["bqkv"], d["attn"]["wo"], d["attn"]["bo"],
        d["attn_ln"]["g"], d["attn_ln"]["b"],
        d["xattn"]["wq"], d["xattn"]["bq"], d["xattn"]["wkv"], d["xattn"]["bkv"],
        d["xattn"]["wo"], d["xattn"]["bo"],
        d["xattn_ln"]["g"], d["xattn_ln"]["b"],
        d["ffn_w1"]["w"], d["ffn_w1"]["b"], d["ffn_w2"]["w"], d["ffn_w2"]["b"],
        d["ffn_ln"]["g"], d["ffn_ln"]["b"],
        d["lm_transform"]["w"], d["lm_transform"]["b"],
        d["lm_ln"]["g"], d["lm_ln"]["b"],
        d["lm_out"]["w"], d["lm_out"]["b"],
    ]


def translation_model_forward(params, encoder_input_ids, decoder_input_ids):
    """Mirrors TranslationModel.forward: returns (loss, logits)."""
    B, S = encoder_input_ids.shape
    _, T = decoder_input_ids.shape
    enc, dec = params["encoder"], params["decoder"]

    # glue: embedding gathers (token + position); everything else is in-kernel.
    # TODO(synk): the gather itself could be fused via PrefetchScalarGridSpec +
    # pl.Element row-gather; left in JAX for clarity.
    enc_emb = enc["tok_emb"][encoder_input_ids] + enc["pos_emb"][:S][None, :, :]
    dec_emb = dec["tok_emb"][decoder_input_ids] + dec["pos_emb"][:T][None, :, :]
    labels = decoder_input_ids.reshape(B, T, 1).astype(jnp.int32)

    weights = _flatten_weights(params)
    n_w = len(weights)

    loss_parts, logits = pl.pallas_call(
        _make_fused_kernel(n_w),
        out_shape=(jax.ShapeDtypeStruct((B, 1, 128), jnp.float32),  # per-batch NLL sums
                   jax.ShapeDtypeStruct((B, T, V), jnp.float32)),
        grid=(B,),
        in_specs=[pl.BlockSpec((1, S, H), lambda b: (b, 0, 0)),
                  pl.BlockSpec((1, T, H), lambda b: (b, 0, 0)),
                  pl.BlockSpec((1, T, 1), lambda b: (b, 0, 0))]
                 + [pl.BlockSpec(w.shape, lambda b: (0, 0)) for w in weights],
        out_specs=(pl.BlockSpec((1, 1, 128), lambda b: (b, 0, 0)),
                   pl.BlockSpec((1, T, V), lambda b: (b, 0, 0))),
        compiler_params=pltpu.CompilerParams(
            dimension_semantics=("parallel",)),   # batch across v7x's 2 TCs
    )(enc_emb, dec_emb, labels, *weights)

    loss = jnp.sum(loss_parts[:, 0, 0]) / (B * T)   # mean CE over all tokens
    return loss, logits


# ----------------------------- parameter init --------------------------------
def _w(key, din, dout):
    return (0.02 * jax.random.normal(key, (din, dout), jnp.float32)).astype(jnp.bfloat16)


def _b(dout):
    return jnp.zeros((1, dout), jnp.float32)


def _ln_p(dim):
    return {"g": jnp.ones((1, dim), jnp.float32), "b": jnp.zeros((1, dim), jnp.float32)}


def _self_attn_p(keys):
    return {"wqkv": _w(keys[0], H, 3 * H), "bqkv": _b(3 * H),
            "wo": _w(keys[1], H, H), "bo": _b(H)}


def _cross_attn_p(keys):
    return {"wq": _w(keys[0], H, H), "bq": _b(H),
            "wkv": _w(keys[1], H, 2 * H), "bkv": _b(2 * H),
            "wo": _w(keys[2], H, H), "bo": _b(H)}


def init_params(key):
    ks = jax.random.split(key, 32)
    it = iter(ks)
    nk = lambda: next(it)
    enc = {
        "tok_emb": 0.02 * jax.random.normal(nk(), (V, H), jnp.float32),
        "pos_emb": 0.02 * jax.random.normal(nk(), (MAXPOS, H), jnp.float32),
        "emb_ln": _ln_p(H),
        "attn": _self_attn_p([nk(), nk()]),
        "attn_ln": _ln_p(H),
        "ffn_w1": {"w": _w(nk(), H, FF), "b": _b(FF)},
        "ffn_w2": {"w": _w(nk(), FF, H), "b": _b(H)},
        "ffn_ln": _ln_p(H),
    }
    dec = {
        "tok_emb": 0.02 * jax.random.normal(nk(), (V, H), jnp.float32),
        "pos_emb": 0.02 * jax.random.normal(nk(), (MAXPOS, H), jnp.float32),
        "emb_ln": _ln_p(H),
        "attn": _self_attn_p([nk(), nk()]),
        "attn_ln": _ln_p(H),
        "xattn": _cross_attn_p([nk(), nk(), nk()]),
        "xattn_ln": _ln_p(H),
        "ffn_w1": {"w": _w(nk(), H, FF), "b": _b(FF)},
        "ffn_w2": {"w": _w(nk(), FF, H), "b": _b(H)},
        "ffn_ln": _ln_p(H),
        "lm_transform": {"w": _w(nk(), H, H), "b": _b(H)},
        "lm_ln": _ln_p(H),
        "lm_out": {"w": _w(nk(), H, V), "b": _b(V)},
    }
    return {"encoder": enc, "decoder": dec}


# TODO(synk): TranslationModel.save / save_model (torch.save to disk) has no
# kernel equivalent and is intentionally not translated.

if __name__ == "__main__":
    key = jax.random.PRNGKey(0)
    k_enc, k_dec, k_par = jax.random.split(key, 3)
    B, S_ENC, S_DEC = 2, 8, 8
    encoder_input_ids = jax.random.randint(k_enc, (B, S_ENC), 0, V, dtype=jnp.int32)
    decoder_input_ids = jax.random.randint(k_dec, (B, S_DEC), 0, V, dtype=jnp.int32)
    params = init_params(k_par)

    fwd = jax.jit(translation_model_forward)
    loss, logits = fwd(params, encoder_input_ids, decoder_input_ids)
    jax.block_until_ready((loss, logits))
    assert logits.shape == (B, S_DEC, V)
    assert jnp.isfinite(loss)
    print("KERNEL_OK")
</pallas_src>

<mosaic_0001>
module attributes {stable_mosaic.version = 11 : i64} {
  func.func @kernel(%arg0: i32, %arg1: memref<1x8x32xf32, #tpu.memory_space<vmem>>, %arg2: memref<1x8x32xf32, #tpu.memory_space<vmem>>, %arg3: memref<1x8x1xi32, #tpu.memory_space<vmem>>, %arg4: memref<1x32xf32, #tpu.memory_space<vmem>>, %arg5: memref<1x32xf32, #tpu.memory_space<vmem>>, %arg6: memref<32x96xbf16, #tpu.memory_space<vmem>>, %arg7: memref<1x96xf32, #tpu.memory_space<vmem>>, %arg8: memref<32x32xbf16, #tpu.memory_space<vmem>>, %arg9: memref<1x32xf32, #tpu.memory_space<vmem>>, %arg10: memref<1x32xf32, #tpu.memory_space<vmem>>, %arg11: memref<1x32xf32, #tpu.memory_space<vmem>>, %arg12: memref<32x64xbf16, #tpu.memory_space<vmem>>, %arg13: memref<1x64xf32, #tpu.memory_space<vmem>>, %arg14: memref<64x32xbf16, #tpu.memory_space<vmem>>, %arg15: memref<1x32xf32, #tpu.memory_space<vmem>>, %arg16: memref<1x32xf32, #tpu.memory_space<vmem>>, %arg17: memref<1x32xf32, #tpu.memory_space<vmem>>, %arg18: memref<1x32xf32, #tpu.memory_space<vmem>>, %arg19: memref<1x32xf32, #tpu.memory_space<vmem>>, %arg20: memref<32x96xbf16, #tpu.memory_space<vmem>>, %arg21: memref<1x96xf32, #tpu.memory_space<vmem>>, %arg22: memref<32x32xbf16, #tpu.memory_space<vmem>>, %arg23: memref<1x32xf32, #tpu.memory_space<vmem>>, %arg24: memref<1x32xf32, #tpu.memory_space<vmem>>, %arg25: memref<1x32xf32, #tpu.memory_space<vmem>>, %arg26: memref<32x32xbf16, #tpu.memory_space<vmem>>, %arg27: memref<1x32xf32, #tpu.memory_space<vmem>>, %arg28: memref<32x64xbf16, #tpu.memory_space<vmem>>, %arg29: memref<1x64xf32, #tpu.memory_space<vmem>>, %arg30: memref<32x32xbf16, #tpu.memory_space<vmem>>, %arg31: memref<1x32xf32, #tpu.memory_space<vmem>>, %arg32: memref<1x32xf32, #tpu.memory_space<vmem>>, %arg33: memref<1x32xf32, #tpu.memory_space<vmem>>, %arg34: memref<32x64xbf16, #tpu.memory_space<vmem>>, %arg35: memref<1x64xf32, #tpu.memory_space<vmem>>, %arg36: memref<64x32xbf16, #tpu.memory_space<vmem>>, %arg37: memref<1x32xf32, #tpu.memory_space<vmem>>, %arg38: memref<1x32xf32, #tpu.memory_space<vmem>>, %arg39: memref<1x32xf32, #tpu.memory_space<vmem>>, %arg40: memref<32x32xbf16, #tpu.memory_space<vmem>>, %arg41: memref<1x32xf32, #tpu.memory_space<vmem>>, %arg42: memref<1x32xf32, #tpu.memory_space<vmem>>, %arg43: memref<1x32xf32, #tpu.memory_space<vmem>>, %arg44: memref<32x128xbf16, #tpu.memory_space<vmem>>, %arg45: memref<1x128xf32, #tpu.memory_space<vmem>>, %arg46: memref<1x1x128xf32, #tpu.memory_space<vmem>>, %arg47: memref<1x8x128xf32, #tpu.memory_space<vmem>>) attributes {dimension_semantics = [#tpu.dimension_semantics<parallel>], iteration_bounds = array<i64: 2>, scalar_prefetch = 0 : i64, scratch_operands = 0 : i64, tpu.core_type = #tpu.core_type<tc>, window_params = [{transform_indices = @transform_0, window_bounds = array<i64: 1, 8, 32>}, {transform_indices = @transform_1, window_bounds = array<i64: 1, 8, 32>}, {transform_indices = @transform_2, window_bounds = array<i64: 1, 8, 1>}, {pipeline_mode = #tpu.pipeline_mode<synchronous>, transform_indices = @transform_3, window_bounds = array<i64: 1, 32>}, {pipeline_mode = #tpu.pipeline_mode<synchronous>, transform_indices = @transform_4, window_bounds = array<i64: 1, 32>}, {pipeline_mode = #tpu.pipeline_mode<synchronous>, transform_indices = @transform_5, window_bounds = array<i64: 32, 96>}, {pipeline_mode = #tpu.pipeline_mode<synchronous>, transform_indices = @transform_6, window_bounds = array<i64: 1, 96>}, {pipeline_mode = #tpu.pipeline_mode<synchronous>, transform_indices = @transform_7, window_bounds = array<i64: 32, 32>}, {pipeline_mode = #tpu.pipeline_mode<synchronous>, transform_indices = @transform_8, window_bounds = array<i64: 1, 32>}, {pipeline_mode = #tpu.pipeline_mode<synchronous>, transform_indices = @transform_9, window_bounds = array<i64: 1, 32>}, {pipeline_mode = #tpu.pipeline_mode<synchronous>, transform_indices = @transform_10, window_bounds = array<i64: 1, 32>}, {pipeline_mode = #tpu.pipeline_mode<synchronous>, transform_indices = @transform_11, window_bounds = array<i64: 32, 64>}, {pipeline_mode = #tpu.pipeline_mode<synchronous>, transform_indices = @transform_12, window_bounds = array<i64: 1, 64>}, {pipeline_mode = #tpu.pipeline_mode<synchronous>, transform_indices = @transform_13, window_bounds = array<i64: 64, 32>}, {pipeline_mode = #tpu.pipeline_mode<synchronous>, transform_indices = @transform_14, window_bounds = array<i64: 1, 32>}, {pipeline_mode = #tpu.pipeline_mode<synchronous>, transform_indices = @transform_15, window_bounds = array<i64: 1, 32>}, {pipeline_mode = #tpu.pipeline_mode<synchronous>, transform_indices = @transform_16, window_bounds = array<i64: 1, 32>}, {pipeline_mode = #tpu.pipeline_mode<synchronous>, transform_indices = @transform_17, window_bounds = array<i64: 1, 32>}, {pipeline_mode = #tpu.pipeline_mode<synchronous>, transform_indices = @transform_18, window_bounds = array<i64: 1, 32>}, {pipeline_mode = #tpu.pipeline_mode<synchronous>, transform_indices = @transform_19, window_bounds = array<i64: 32, 96>}, {pipeline_mode = #tpu.pipeline_mode<synchronous>, transform_indices = @transform_20, window_bounds = array<i64: 1, 96>}, {pipeline_mode = #tpu.pipeline_mode<synchronous>, transform_indices = @transform_21, window_bounds = array<i64: 32, 32>}, {pipeline_mode = #tpu.pipeline_mode<synchronous>, transform_indices = @transform_22, window_bounds = array<i64: 1, 32>}, {pipeline_mode = #tpu.pipeline_mode<synchronous>, transform_indices = @transform_23, window_bounds = array<i64: 1, 32>}, {pipeline_mode = #tpu.pipeline_mode<synchronous>, transform_indices = @transform_24, window_bounds = array<i64: 1, 32>}, {pipeline_mode = #tpu.pipeline_mode<synchronous>, transform_indices = @transform_25, window_bounds = array<i64: 32, 32>}, {pipeline_mode = #tpu.pipeline_mode<synchronous>, transform_indices = @transform_26, window_bounds = array<i64: 1, 32>}, {pipeline_mode = #tpu.pipeline_mode<synchronous>, transform_indices = @transform_27, window_bounds = array<i64: 32, 64>}, {pipeline_mode = #tpu.pipeline_mode<synchronous>, transform_indices = @transform_28, window_bounds = array<i64: 1, 64>}, {pipeline_mode = #tpu.pipeline_mode<synchronous>, transform_indices = @transform_29, window_bounds = array<i64: 32, 32>}, {pipeline_mode = #tpu.pipeline_mode<synchronous>, transform_indices = @transform_30, window_bounds = array<i64: 1, 32>}, {pipeline_mode = #tpu.pipeline_mode<synchronous>, transform_indices = @transform_31, window_bounds = array<i64: 1, 32>}, {pipeline_mode = #tpu.pipeline_mode<synchronous>, transform_indices = @transform_32, window_bounds = array<i64: 1, 32>}, {pipeline_mode = #tpu.pipeline_mode<synchronous>, transform_indices = @transform_33, window_bounds = array<i64: 32, 64>}, {pipeline_mode = #tpu.pipeline_mode<synchronous>, transform_indices = @transform_34, window_bounds = array<i64: 1, 64>}, {pipeline_mode = #tpu.pipeline_mode<synchronous>, transform_indices = @transform_35, window_bounds = array<i64: 64, 32>}, {pipeline_mode = #tpu.pipeline_mode<synchronous>, transform_indices = @transform_36, window_bounds = array<i64: 1, 32>}, {pipeline_mode = #tpu.pipeline_mode<synchronous>, transform_indices = @transform_37, window_bounds = array<i64: 1, 32>}, {pipeline_mode = #tpu.pipeline_mode<synchronous>, transform_indices = @transform_38, window_bounds = array<i64: 1, 32>}, {pipeline_mode = #tpu.pipeline_mode<synchronous>, transform_indices = @transform_39, window_bounds = array<i64: 32, 32>}, {pipeline_mode = #tpu.pipeline_mode<synchronous>, transform_indices = @transform_40, window_bounds = array<i64: 1, 32>}, {pipeline_mode = #tpu.pipeline_mode<synchronous>, transform_indices = @transform_41, window_bounds = array<i64: 1, 32>}, {pipeline_mode = #tpu.pipeline_mode<synchronous>, transform_indices = @transform_42, window_bounds = array<i64: 1, 32>}, {pipeline_mode = #tpu.pipeline_mode<synchronous>, transform_indices = @transform_43, window_bounds = array<i64: 32, 128>}, {pipeline_mode = #tpu.pipeline_mode<synchronous>, transform_indices = @transform_44, window_bounds = array<i64: 1, 128>}, {transform_indices = @transform_45, window_bounds = array<i64: 1, 1, 128>}, {transform_indices = @transform_46, window_bounds = array<i64: 1, 8, 128>}]} {
    %c0 = arith.constant 0 : index
    %c0_0 = arith.constant 0 : index
    %c0_1 = arith.constant 0 : index
    %0 = vector.load %arg1[%c0, %c0_0, %c0_1] : memref<1x8x32xf32, #tpu.memory_space<vmem>>, vector<1x8x32xf32>
    %1 = vector.shape_cast %0 : vector<1x8x32xf32> to vector<8x32xf32>
    %cst = arith.constant dense<0.000000e+00> : vector<8xf32>
    %2 = vector.multi_reduction <add>, %1, %cst [1] : vector<8x32xf32> to vector<8xf32>
    %3 = vector.shape_cast %2 : vector<8xf32> to vector<8x1xf32>
    %cst_2 = arith.constant 3.200000e+01 : f32
    %4 = vector.broadcast %cst_2 : f32 to vector<8x1xf32>
    %5 = arith.divf %3, %4 : vector<8x1xf32>
    %6 = vector.broadcast %5 : vector<8x1xf32> to vector<8x32xf32>
    %7 = arith.subf %1, %6 : vector<8x32xf32>
    %8 = vector.broadcast %5 : vector<8x1xf32> to vector<8x32xf32>
    %9 = arith.subf %1, %8 : vector<8x32xf32>
    %10 = arith.mulf %7, %9 : vector<8x32xf32>
    %cst_3 = arith.constant dense<0.000000e+00> : vector<8xf32>
    %11 = vector.multi_reduction <add>, %10, %cst_3 [1] : vector<8x32xf32> to vector<8xf32>
    %12 = vector.shape_cast %11 : vector<8xf32> to vector<8x1xf32>
    %cst_4 = arith.constant 3.200000e+01 : f32
    %13 = vector.broadcast %cst_4 : f32 to vector<8x1xf32>
    %14 = arith.divf %12, %13 : vector<8x1xf32>
    %15 = vector.broadcast %5 : vector<8x1xf32> to vector<8x32xf32>
    %16 = arith.subf %1, %15 : vector<8x32xf32>
    %cst_5 = arith.constant 9.99999996E-13 : f32
    %17 = vector.broadcast %cst_5 : f32 to vector<8x1xf32>
    %18 = arith.addf %14, %17 : vector<8x1xf32>
    %19 = math.rsqrt %18 : vector<8x1xf32>
    %20 = vector.broadcast %19 : vector<8x1xf32> to vector<8x32xf32>
    %21 = arith.mulf %16, %20 : vector<8x32xf32>
    %c0_6 = arith.constant 0 : index
    %c0_7 = arith.constant 0 : index
    %22 = vector.load %arg4[%c0_6, %c0_7] : memref<1x32xf32, #tpu.memory_space<vmem>>, vector<1x32xf32>
    %23 = vector.broadcast %22 : vector<1x32xf32> to vector<8x32xf32>
    %24 = arith.mulf %21, %23 : vector<8x32xf32>
    %c0_8 = arith.constant 0 : index
    %c0_9 = arith.constant 0 : index
    %25 = vector.load %arg5[%c0_8, %c0_9] : memref<1x32xf32, #tpu.memory_space<vmem>>, vector<1x32xf32>
    %26 = vector.broadcast %25 : vector<1x32xf32> to vector<8x32xf32>
    %27 = arith.addf %24, %26 : vector<8x32xf32>
    %28 = arith.truncf %27 : vector<8x32xf32> to vector<8x32xbf16>
    %c0_10 = arith.constant 0 : index
    %c0_11 = arith.constant 0 : index
    %29 = vector.load %arg6[%c0_10, %c0_11] : memref<32x96xbf16, #tpu.memory_space<vmem>>, vector<32x96xbf16>
    %cst_12 = arith.constant dense<0.000000e+00> : vector<8x96xf32>
    %30 = tpu.matmul %28, %29, %cst_12 {dimension_numbers = #tpu.dot_dimension_numbers<[1], [0], [0], [1], [0, 0, 1, 1], [], []>} : vector<8x32xbf16>, vector<32x96xbf16>, vector<8x96xf32> -> vector<8x96xf32>
    %c0_13 = arith.constant 0 : index
    %c0_14 = arith.constant 0 : index
    %31 = vector.load %arg7[%c0_13, %c0_14] : memref<1x96xf32, #tpu.memory_space<vmem>>, vector<1x96xf32>
    %32 = vector.broadcast %31 : vector<1x96xf32> to vector<8x96xf32>
    %33 = arith.addf %30, %32 : vector<8x96xf32>
    %34 = vector.extract_strided_slice %33 {offsets = [0, 0], sizes = [8, 32], strides = [1, 1]} : vector<8x96xf32> to vector<8x32xf32>
    %35 = vector.extract_strided_slice %33 {offsets = [0, 32], sizes = [8, 32], strides = [1, 1]} : vector<8x96xf32> to vector<8x32xf32>
    %36 = vector.extract_strided_slice %33 {offsets = [0, 64], sizes = [8, 32], strides = [1, 1]} : vector<8x96xf32> to vector<8x32xf32>
    %37 = vector.extract_strided_slice %34 {offsets = [0, 0], sizes = [8, 16], strides = [1, 1]} : vector<8x32xf32> to vector<8x16xf32>
    %38 = vector.extract_strided_slice %35 {offsets = [0, 0], sizes = [8, 16], strides = [1, 1]} : vector<8x32xf32> to vector<8x16xf32>
    %39 = vector.extract_strided_slice %36 {offsets = [0, 0], sizes = [8, 16], strides = [1, 1]} : vector<8x32xf32> to vector<8x16xf32>
    %40 = arith.truncf %37 : vector<8x16xf32> to vector<8x16xbf16>
    %41 = arith.truncf %38 : vector<8x16xf32> to vector<8x16xbf16>
    %cst_15 = arith.constant dense<0.000000e+00> : vector<8x8xf32>
    %42 = tpu.matmul %40, %41, %cst_15 {dimension_numbers = #tpu.dot_dimension_numbers<[1], [1], [0], [0], [0, 0, 1, 0], [], []>} : vector<8x16xbf16>, vector<8x16xbf16>, vector<8x8xf32> -> vector<8x8xf32>
    %cst_16 = arith.constant 2.500000e-01 : f32
    %43 = vector.broadcast %cst_16 : f32 to vector<8x8xf32>
    %44 = arith.mulf %42, %43 : vector<8x8xf32>
    %cst_17 = arith.constant dense<0xFF800000> : vector<8xf32>
    %45 = vector.multi_reduction <maximumf>, %44, %cst_17 [1] : vector<8x8xf32> to vector<8xf32>
    %46 = vector.shape_cast %45 : vector<8xf32> to vector<8x1xf32>
    %47 = vector.broadcast %46 : vector<8x1xf32> to vector<8x8xf32>
    %48 = arith.subf %44, %47 : vector<8x8xf32>
    %49 = math.exp %48 : vector<8x8xf32>
    %cst_18 = arith.constant dense<0.000000e+00> : vector<8xf32>
    %50 = vector.multi_reduction <add>, %49, %cst_18 [1] : vector<8x8xf32> to vector<8xf32>
    %51 = vector.shape_cast %50 : vector<8xf32> to vector<8x1xf32>
    %52 = tpu.reciprocal %51 {approx = true} : vector<8x1xf32> -> vector<8x1xf32>
    %53 = vector.broadcast %52 : vector<8x1xf32> to vector<8x8xf32>
    %54 = arith.mulf %49, %53 : vector<8x8xf32>
    %55 = arith.truncf %54 : vector<8x8xf32> to vector<8x8xbf16>
    %56 = arith.truncf %39 : vector<8x16xf32> to vector<8x16xbf16>
    %cst_19 = arith.constant dense<0.000000e+00> : vector<8x16xf32>
    %57 = tpu.matmul %55, %56, %cst_19 {dimension_numbers = #tpu.dot_dimension_numbers<[1], [0], [0], [1], [0, 0, 1, 1], [], []>} : vector<8x8xbf16>, vector<8x16xbf16>, vector<8x16xf32> -> vector<8x16xf32>
    %58 = vector.extract_strided_slice %34 {offsets = [0, 16], sizes = [8, 16], strides = [1, 1]} : vector<8x32xf32> to vector<8x16xf32>
    %59 = vector.extract_strided_slice %35 {offsets = [0, 16], sizes = [8, 16], strides = [1, 1]} : vector<8x32xf32> to vector<8x16xf32>
    %60 = vector.extract_strided_slice %36 {offsets = [0, 16], sizes = [8, 16], strides = [1, 1]} : vector<8x32xf32> to vector<8x16xf32>
    %61 = arith.truncf %58 : vector<8x16xf32> to vector<8x16xbf16>
    %62 = arith.truncf %59 : vector<8x16xf32> to vector<8x16xbf16>
    %cst_20 = arith.constant dense<0.000000e+00> : vector<8x8xf32>
    %63 = tpu.matmul %61, %62, %cst_20 {dimension_numbers = #tpu.dot_dimension_numbers<[1], [1], [0], [0], [0, 0, 1, 0], [], []>} : vector<8x16xbf16>, vector<8x16xbf16>, vector<8x8xf32> -> vector<8x8xf32>
    %cst_21 = arith.constant 2.500000e-01 : f32
    %64 = vector.broadcast %cst_21 : f32 to vector<8x8xf32>
    %65 = arith.mulf %63, %64 : vector<8x8xf32>
    %cst_22 = arith.constant dense<0xFF800000> : vector<8xf32>
    %66 = vector.multi_reduction <maximumf>, %65, %cst_22 [1] : vector<8x8xf32> to vector<8xf32>
    %67 = vector.shape_cast %66 : vector<8xf32> to vector<8x1xf32>
    %68 = vector.broadcast %67 : vector<8x1xf32> to vector<8x8xf32>
    %69 = arith.subf %65, %68 : vector<8x8xf32>
    %70 = math.exp %69 : vector<8x8xf32>
    %cst_23 = arith.constant dense<0.000000e+00> : vector<8xf32>
    %71 = vector.multi_reduction <add>, %70, %cst_23 [1] : vector<8x8xf32> to vector<8xf32>
    %72 = vector.shape_cast %71 : vector<8xf32> to vector<8x1xf32>
    %73 = tpu.reciprocal %72 {approx = true} : vector<8x1xf32> -> vector<8x1xf32>
    %74 = vector.broadcast %73 : vector<8x1xf32> to vector<8x8xf32>
    %75 = arith.mulf %70, %74 : vector<8x8xf32>
    %76 = arith.truncf %75 : vector<8x8xf32> to vector<8x8xbf16>
    %77 = arith.truncf %60 : vector<8x16xf32> to vector<8x16xbf16>
    %cst_24 = arith.constant dense<0.000000e+00> : vector<8x16xf32>
    %78 = tpu.matmul %76, %77, %cst_24 {dimension_numbers = #tpu.dot_dimension_numbers<[1], [0], [0], [1], [0, 0, 1, 1], [], []>} : vector<8x8xbf16>, vector<8x16xbf16>, vector<8x16xf32> -> vector<8x16xf32>
    %79 = tpu.concatenate %57, %78 in 1 : vector<8x16xf32>, vector<8x16xf32> -> vector<8x32xf32>
    %80 = arith.truncf %79 : vector<8x32xf32> to vector<8x32xbf16>
    %c0_25 = arith.constant 0 : index
    %c0_26 = arith.constant 0 : index
    %81 = vector.load %arg8[%c0_25, %c0_26] : memref<32x32xbf16, #tpu.memory_space<vmem>>, vector<32x32xbf16>
    %cst_27 = arith.constant dense<0.000000e+00> : vector<8x32xf32>
    %82 = tpu.matmul %80, %81, %cst_27 {dimension_numbers = #tpu.dot_dimension_numbers<[1], [0], [0], [1], [0, 0, 1, 1], [], []>} : vector<8x32xbf16>, vector<32x32xbf16>, vector<8x32xf32> -> vector<8x32xf32>
    %c0_28 = arith.constant 0 : index
    %c0_29 = arith.constant 0 : index
    %83 = vector.load %arg9[%c0_28, %c0_29] : memref<1x32xf32, #tpu.memory_space<vmem>>, vector<1x32xf32>
    %84 = vector.broadcast %83 : vector<1x32xf32> to vector<8x32xf32>
    %85 = arith.addf %82, %84 : vector<8x32xf32>
    %86 = arith.addf %27, %85 : vector<8x32xf32>
    %cst_30 = arith.constant dense<0.000000e+00> : vector<8xf32>
    %87 = vector.multi_reduction <add>, %86, %cst_30 [1] : vector<8x32xf32> to vector<8xf32>
    %88 = vector.shape_cast %87 : vector<8xf32> to vector<8x1xf32>
    %cst_31 = arith.constant 3.200000e+01 : f32
    %89 = vector.broadcast %cst_31 : f32 to vector<8x1xf32>
    %90 = arith.divf %88, %89 : vector<8x1xf32>
    %91 = vector.broadcast %90 : vector<8x1xf32> to vector<8x32xf32>
    %92 = arith.subf %86, %91 : vector<8x32xf32>
    %93 = vector.broadcast %90 : vector<8x1xf32> to vector<8x32xf32>
    %94 = arith.subf %86, %93 : vector<8x32xf32>
    %95 = arith.mulf %92, %94 : vector<8x32xf32>
    %cst_32 = arith.constant dense<0.000000e+00> : vector<8xf32>
    %96 = vector.multi_reduction <add>, %95, %cst_32 [1] : vector<8x32xf32> to vector<8xf32>
    %97 = vector.shape_cast %96 : vector<8xf32> to vector<8x1xf32>
    %cst_33 = arith.constant 3.200000e+01 : f32
    %98 = vector.broadcast %cst_33 : f32 to vector<8x1xf32>
    %99 = arith.divf %97, %98 : vector<8x1xf32>
    %100 = vector.broadcast %90 : vector<8x1xf32> to vector<8x32xf32>
    %101 = arith.subf %86, %100 : vector<8x32xf32>
    %cst_34 = arith.constant 9.99999996E-13 : f32
    %102 = vector.broadcast %cst_34 : f32 to vector<8x1xf32>
    %103 = arith.addf %99, %102 : vector<8x1xf32>
    %104 = math.rsqrt %103 : vector<8x1xf32>
    %105 = vector.broadcast %104 : vector<8x1xf32> to vector<8x32xf32>
    %106 = arith.mulf %101, %105 : vector<8x32xf32>
    %c0_35 = arith.constant 0 : index
    %c0_36 = arith.constant 0 : index
    %107 = vector.load %arg10[%c0_35, %c0_36] : memref<1x32xf32, #tpu.memory_space<vmem>>, vector<1x32xf32>
    %108 = vector.broadcast %107 : vector<1x32xf32> to vector<8x32xf32>
    %109 = arith.mulf %106, %108 : vector<8x32xf32>
    %c0_37 = arith.constant 0 : index
    %c0_38 = arith.constant 0 : index
    %110 = vector.load %arg11[%c0_37, %c0_38] : memref<1x32xf32, #tpu.memory_space<vmem>>, vector<1x32xf32>
    %111 = vector.broadcast %110 : vector<1x32xf32> to vector<8x32xf32>
    %112 = arith.addf %109, %111 : vector<8x32xf32>
    %113 = arith.truncf %112 : vector<8x32xf32> to vector<8x32xbf16>
    %c0_39 = arith.constant 0 : index
    %c0_40 = arith.constant 0 : index
    %114 = vector.load %arg12[%c0_39, %c0_40] : memref<32x64xbf16, #tpu.memory_space<vmem>>, vector<32x64xbf16>
    %cst_41 = arith.constant dense<0.000000e+00> : vector<8x64xf32>
    %115 = tpu.matmul %113, %114, %cst_41 {dimension_numbers = #tpu.dot_dimension_numbers<[1], [0], [0], [1], [0, 0, 1, 1], [], []>} : vector<8x32xbf16>, vector<32x64xbf16>, vector<8x64xf32> -> vector<8x64xf32>
    %c0_42 = arith.constant 0 : index
    %c0_43 = arith.constant 0 : index
    %116 = vector.load %arg13[%c0_42, %c0_43] : memref<1x64xf32, #tpu.memory_space<vmem>>, vector<1x64xf32>
    %117 = vector.broadcast %116 : vector<1x64xf32> to vector<8x64xf32>
    %118 = arith.addf %115, %117 : vector<8x64xf32>
    %119 = arith.mulf %118, %118 : vector<8x64xf32>
    %120 = arith.mulf %118, %119 : vector<8x64xf32>
    %cst_44 = arith.constant 4.471500e-02 : f32
    %121 = vector.broadcast %cst_44 : f32 to vector<8x64xf32>
    %122 = arith.mulf %121, %120 : vector<8x64xf32>
    %123 = arith.addf %118, %122 : vector<8x64xf32>
    %cst_45 = arith.constant 0.797884583 : f32
    %124 = vector.broadcast %cst_45 : f32 to vector<8x64xf32>
    %125 = arith.mulf %124, %123 : vector<8x64xf32>
    %126 = math.tanh %125 : vector<8x64xf32>
    %cst_46 = arith.constant 1.000000e+00 : f32
    %127 = vector.broadcast %cst_46 : f32 to vector<8x64xf32>
    %128 = arith.addf %127, %126 : vector<8x64xf32>
    %cst_47 = arith.constant 5.000000e-01 : f32
    %129 = vector.broadcast %cst_47 : f32 to vector<8x64xf32>
    %130 = arith.mulf %129, %128 : vector<8x64xf32>
    %131 = arith.mulf %118, %130 : vector<8x64xf32>
    %132 = arith.truncf %131 : vector<8x64xf32> to vector<8x64xbf16>
    %c0_48 = arith.constant 0 : index
    %c0_49 = arith.constant 0 : index
    %133 = vector.load %arg14[%c0_48, %c0_49] : memref<64x32xbf16, #tpu.memory_space<vmem>>, vector<64x32xbf16>
    %cst_50 = arith.constant dense<0.000000e+00> : vector<8x32xf32>
    %134 = tpu.matmul %132, %133, %cst_50 {dimension_numbers = #tpu.dot_dimension_numbers<[1], [0], [0], [1], [0, 0, 1, 1], [], []>} : vector<8x64xbf16>, vector<64x32xbf16>, vector<8x32xf32> -> vector<8x32xf32>
    %c0_51 = arith.constant 0 : index
    %c0_52 = arith.constant 0 : index
    %135 = vector.load %arg15[%c0_51, %c0_52] : memref<1x32xf32, #tpu.memory_space<vmem>>, vector<1x32xf32>
    %136 = vector.broadcast %135 : vector<1x32xf32> to vector<8x32xf32>
    %137 = arith.addf %134, %136 : vector<8x32xf32>
    %138 = arith.addf %112, %137 : vector<8x32xf32>
    %cst_53 = arith.constant dense<0.000000e+00> : vector<8xf32>
    %139 = vector.multi_reduction <add>, %138, %cst_53 [1] : vector<8x32xf32> to vector<8xf32>
    %140 = vector.shape_cast %139 : vector<8xf32> to vector<8x1xf32>
    %cst_54 = arith.constant 3.200000e+01 : f32
    %141 = vector.broadcast %cst_54 : f32 to vector<8x1xf32>
    %142 = arith.divf %140, %141 : vector<8x1xf32>
    %143 = vector.broadcast %142 : vector<8x1xf32> to vector<8x32xf32>
    %144 = arith.subf %138, %143 : vector<8x32xf32>
    %145 = vector.broadcast %142 : vector<8x1xf32> to vector<8x32xf32>
    %146 = arith.subf %138, %145 : vector<8x32xf32>
    %147 = arith.mulf %144, %146 : vector<8x32xf32>
    %cst_55 = arith.constant dense<0.000000e+00> : vector<8xf32>
    %148 = vector.multi_reduction <add>, %147, %cst_55 [1] : vector<8x32xf32> to vector<8xf32>
    %149 = vector.shape_cast %148 : vector<8xf32> to vector<8x1xf32>
    %cst_56 = arith.constant 3.200000e+01 : f32
    %150 = vector.broadcast %cst_56 : f32 to vector<8x1xf32>
    %151 = arith.divf %149, %150 : vector<8x1xf32>
    %152 = vector.broadcast %142 : vector<8x1xf32> to vector<8x32xf32>
    %153 = arith.subf %138, %152 : vector<8x32xf32>
    %cst_57 = arith.constant 9.99999996E-13 : f32
    %154 = vector.broadcast %cst_57 : f32 to vector<8x1xf32>
    %155 = arith.addf %151, %154 : vector<8x1xf32>
    %156 = math.rsqrt %155 : vector<8x1xf32>
    %157 = vector.broadcast %156 : vector<8x1xf32> to vector<8x32xf32>
    %158 = arith.mulf %153, %157 : vector<8x32xf32>
    %c0_58 = arith.constant 0 : index
    %c0_59 = arith.constant 0 : index
    %159 = vector.load %arg16[%c0_58, %c0_59] : memref<1x32xf32, #tpu.memory_space<vmem>>, vector<1x32xf32>
    %160 = vector.broadcast %159 : vector<1x32xf32> to vector<8x32xf32>
    %161 = arith.mulf %158, %160 : vector<8x32xf32>
    %c0_60 = arith.constant 0 : index
    %c0_61 = arith.constant 0 : index
    %162 = vector.load %arg17[%c0_60, %c0_61] : memref<1x32xf32, #tpu.memory_space<vmem>>, vector<1x32xf32>
    %163 = vector.broadcast %162 : vector<1x32xf32> to vector<8x32xf32>
    %164 = arith.addf %161, %163 : vector<8x32xf32>
    %c0_62 = arith.constant 0 : index
    %c0_63 = arith.constant 0 : index
    %c0_64 = arith.constant 0 : index
    %165 = vector.load %arg2[%c0_62, %c0_63, %c0_64] : memref<1x8x32xf32, #tpu.memory_space<vmem>>, vector<1x8x32xf32>
    %166 = vector.shape_cast %165 : vector<1x8x32xf32> to vector<8x32xf32>
    %cst_65 = arith.constant dense<0.000000e+00> : vector<8xf32>
    %167 = vector.multi_reduction <add>, %166, %cst_65 [1] : vector<8x32xf32> to vector<8xf32>
    %168 = vector.shape_cast %167 : vector<8xf32> to vector<8x1xf32>
    %cst_66 = arith.constant 3.200000e+01 : f32
    %169 = vector.broadcast %cst_66 : f32 to vector<8x1xf32>
    %170 = arith.divf %168, %169 : vector<8x1xf32>
    %171 = vector.broadcast %170 : vector<8x1xf32> to vector<8x32xf32>
    %172 = arith.subf %166, %171 : vector<8x32xf32>
    %173 = vector.broadcast %170 : vector<8x1xf32> to vector<8x32xf32>
    %174 = arith.subf %166, %173 : vector<8x32xf32>
    %175 = arith.mulf %172, %174 : vector<8x32xf32>
    %cst_67 = arith.constant dense<0.000000e+00> : vector<8xf32>
    %176 = vector.multi_reduction <add>, %175, %cst_67 [1] : vector<8x32xf32> to vector<8xf32>
    %177 = vector.shape_cast %176 : vector<8xf32> to vector<8x1xf32>
    %cst_68 = arith.constant 3.200000e+01 : f32
    %178 = vector.broadcast %cst_68 : f32 to vector<8x1xf32>
    %179 = arith.divf %177, %178 : vector<8x1xf32>
    %180 = vector.broadcast %170 : vector<8x1xf32> to vector<8x32xf32>
    %181 = arith.subf %166, %180 : vector<8x32xf32>
    %cst_69 = arith.constant 9.99999996E-13 : f32
    %182 = vector.broadcast %cst_69 : f32 to vector<8x1xf32>
    %183 = arith.addf %179, %182 : vector<8x1xf32>
    %184 = math.rsqrt %183 : vector<8x1xf32>
    %185 = vector.broadcast %184 : vector<8x1xf32> to vector<8x32xf32>
    %186 = arith.mulf %181, %185 : vector<8x32xf32>
    %c0_70 = arith.constant 0 : index
    %c0_71 = arith.constant 0 : index
    %187 = vector.load %arg18[%c0_70, %c0_71] : memref<1x32xf32, #tpu.memory_space<vmem>>, vector<1x32xf32>
    %188 = vector.broadcast %187 : vector<1x32xf32> to vector<8x32xf32>
    %189 = arith.mulf %186, %188 : vector<8x32xf32>
    %c0_72 = arith.constant 0 : index
    %c0_73 = arith.constant 0 : index
    %190 = vector.load %arg19[%c0_72, %c0_73] : memref<1x32xf32, #tpu.memory_space<vmem>>, vector<1x32xf32>
    %191 = vector.broadcast %190 : vector<1x32xf32> to vector<8x32xf32>
    %192 = arith.addf %189, %191 : vector<8x32xf32>
    %193 = arith.truncf %192 : vector<8x32xf32> to vector<8x32xbf16>
    %c0_74 = arith.constant 0 : index
    %c0_75 = arith.constant 0 : index
    %194 = vector.load %arg20[%c0_74, %c0_75] : memref<32x96xbf16, #tpu.memory_space<vmem>>, vector<32x96xbf16>
    %cst_76 = arith.constant dense<0.000000e+00> : vector<8x96xf32>
    %195 = tpu.matmul %193, %194, %cst_76 {dimension_numbers = #tpu.dot_dimension_numbers<[1], [0], [0], [1], [0, 0, 1, 1], [], []>} : vector<8x32xbf16>, vector<32x96xbf16>, vector<8x96xf32> -> vector<8x96xf32>
    %c0_77 = arith.constant 0 : index
    %c0_78 = arith.constant 0 : index
    %196 = vector.load %arg21[%c0_77, %c0_78] : memref<1x96xf32, #tpu.memory_space<vmem>>, vector<1x96xf32>
    %197 = vector.broadcast %196 : vector<1x96xf32> to vector<8x96xf32>
    %198 = arith.addf %195, %197 : vector<8x96xf32>
    %199 = vector.extract_strided_slice %198 {offsets = [0, 0], sizes = [8, 32], strides = [1, 1]} : vector<8x96xf32> to vector<8x32xf32>
    %200 = vector.extract_strided_slice %198 {offsets = [0, 32], sizes = [8, 32], strides = [1, 1]} : vector<8x96xf32> to vector<8x32xf32>
    %201 = vector.extract_strided_slice %198 {offsets = [0, 64], sizes = [8, 32], strides = [1, 1]} : vector<8x96xf32> to vector<8x32xf32>
    %202 = vector.extract_strided_slice %199 {offsets = [0, 0], sizes = [8, 16], strides = [1, 1]} : vector<8x32xf32> to vector<8x16xf32>
    %203 = vector.extract_strided_slice %200 {offsets = [0, 0], sizes = [8, 16], strides = [1, 1]} : vector<8x32xf32> to vector<8x16xf32>
    %204 = vector.extract_strided_slice %201 {offsets = [0, 0], sizes = [8, 16], strides = [1, 1]} : vector<8x32xf32> to vector<8x16xf32>
    %205 = arith.truncf %202 : vector<8x16xf32> to vector<8x16xbf16>
    %206 = arith.truncf %203 : vector<8x16xf32> to vector<8x16xbf16>
    %cst_79 = arith.constant dense<0.000000e+00> : vector<8x8xf32>
    %207 = tpu.matmul %205, %206, %cst_79 {dimension_numbers = #tpu.dot_dimension_numbers<[1], [1], [0], [0], [0, 0, 1, 0], [], []>} : vector<8x16xbf16>, vector<8x16xbf16>, vector<8x8xf32> -> vector<8x8xf32>
    %cst_80 = arith.constant 2.500000e-01 : f32
    %208 = vector.broadcast %cst_80 : f32 to vector<8x8xf32>
    %209 = arith.mulf %207, %208 : vector<8x8xf32>
    %210 = tpu.iota {dimensions = array<i32: 0>} : vector<8x8xi32>
    %211 = tpu.iota {dimensions = array<i32: 1>} : vector<8x8xi32>
    %212 = arith.cmpi sle, %211, %210 : vector<8x8xi32>
    %cst_81 = arith.constant -1.000000e+30 : f32
    %213 = vector.broadcast %cst_81 : f32 to vector<8x8xf32>
    %214 = arith.select %212, %209, %213 : vector<8x8xi1>, vector<8x8xf32>
    %cst_82 = arith.constant dense<0xFF800000> : vector<8xf32>
    %215 = vector.multi_reduction <maximumf>, %214, %cst_82 [1] : vector<8x8xf32> to vector<8xf32>
    %216 = vector.shape_cast %215 : vector<8xf32> to vector<8x1xf32>
    %217 = vector.broadcast %216 : vector<8x1xf32> to vector<8x8xf32>
    %218 = arith.subf %214, %217 : vector<8x8xf32>
    %219 = math.exp %218 : vector<8x8xf32>
    %cst_83 = arith.constant dense<0.000000e+00> : vector<8xf32>
    %220 = vector.multi_reduction <add>, %219, %cst_83 [1] : vector<8x8xf32> to vector<8xf32>
    %221 = vector.shape_cast %220 : vector<8xf32> to vector<8x1xf32>
    %222 = tpu.reciprocal %221 {approx = true} : vector<8x1xf32> -> vector<8x1xf32>
    %223 = vector.broadcast %222 : vector<8x1xf32> to vector<8x8xf32>
    %224 = arith.mulf %219, %223 : vector<8x8xf32>
    %225 = arith.truncf %224 : vector<8x8xf32> to vector<8x8xbf16>
    %226 = arith.truncf %204 : vector<8x16xf32> to vector<8x16xbf16>
    %cst_84 = arith.constant dense<0.000000e+00> : vector<8x16xf32>
    %227 = tpu.matmul %225, %226, %cst_84 {dimension_numbers = #tpu.dot_dimension_numbers<[1], [0], [0], [1], [0, 0, 1, 1], [], []>} : vector<8x8xbf16>, vector<8x16xbf16>, vector<8x16xf32> -> vector<8x16xf32>
    %228 = vector.extract_strided_slice %199 {offsets = [0, 16], sizes = [8, 16], strides = [1, 1]} : vector<8x32xf32> to vector<8x16xf32>
    %229 = vector.extract_strided_slice %200 {offsets = [0, 16], sizes = [8, 16], strides = [1, 1]} : vector<8x32xf32> to vector<8x16xf32>
    %230 = vector.extract_strided_slice %201 {offsets = [0, 16], sizes = [8, 16], strides = [1, 1]} : vector<8x32xf32> to vector<8x16xf32>
    %231 = arith.truncf %228 : vector<8x16xf32> to vector<8x16xbf16>
    %232 = arith.truncf %229 : vector<8x16xf32> to vector<8x16xbf16>
    %cst_85 = arith.constant dense<0.000000e+00> : vector<8x8xf32>
    %233 = tpu.matmul %231, %232, %cst_85 {dimension_numbers = #tpu.dot_dimension_numbers<[1], [1], [0], [0], [0, 0, 1, 0], [], []>} : vector<8x16xbf16>, vector<8x16xbf16>, vector<8x8xf32> -> vector<8x8xf32>
    %cst_86 = arith.constant 2.500000e-01 : f32
    %234 = vector.broadcast %cst_86 : f32 to vector<8x8xf32>
    %235 = arith.mulf %233, %234 : vector<8x8xf32>
    %236 = tpu.iota {dimensions = array<i32: 0>} : vector<8x8xi32>
    %237 = tpu.iota {dimensions = array<i32: 1>} : vector<8x8xi32>
    %238 = arith.cmpi sle, %237, %236 : vector<8x8xi32>
    %cst_87 = arith.constant -1.000000e+30 : f32
    %239 = vector.broadcast %cst_87 : f32 to vector<8x8xf32>
    %240 = arith.select %238, %235, %239 : vector<8x8xi1>, vector<8x8xf32>
    %cst_88 = arith.constant dense<0xFF800000> : vector<8xf32>
    %241 = vector.multi_reduction <maximumf>, %240, %cst_88 [1] : vector<8x8xf32> to vector<8xf32>
    %242 = vector.shape_cast %241 : vector<8xf32> to vector<8x1xf32>
    %243 = vector.broadcast %242 : vector<8x1xf32> to vector<8x8xf32>
    %244 = arith.subf %240, %243 : vector<8x8xf32>
    %245 = math.exp %244 : vector<8x8xf32>
    %cst_89 = arith.constant dense<0.000000e+00> : vector<8xf32>
    %246 = vector.multi_reduction <add>, %245, %cst_89 [1] : vector<8x8xf32> to vector<8xf32>
    %247 = vector.shape_cast %246 : vector<8xf32> to vector<8x1xf32>
    %248 = tpu.reciprocal %247 {approx = true} : vector<8x1xf32> -> vector<8x1xf32>
    %249 = vector.broadcast %248 : vector<8x1xf32> to vector<8x8xf32>
    %250 = arith.mulf %245, %249 : vector<8x8xf32>
    %251 = arith.truncf %250 : vector<8x8xf32> to vector<8x8xbf16>
    %252 = arith.truncf %230 : vector<8x16xf32> to vector<8x16xbf16>
    %cst_90 = arith.constant dense<0.000000e+00> : vector<8x16xf32>
    %253 = tpu.matmul %251, %252, %cst_90 {dimension_numbers = #tpu.dot_dimension_numbers<[1], [0], [0], [1], [0, 0, 1, 1], [], []>} : vector<8x8xbf16>, vector<8x16xbf16>, vector<8x16xf32> -> vector<8x16xf32>
    %254 = tpu.concatenate %227, %253 in 1 : vector<8x16xf32>, vector<8x16xf32> -> vector<8x32xf32>
    %255 = arith.truncf %254 : vector<8x32xf32> to vector<8x32xbf16>
    %c0_91 = arith.constant 0 : index
    %c0_92 = arith.constant 0 : index
    %256 = vector.load %arg22[%c0_91, %c0_92] : memref<32x32xbf16, #tpu.memory_space<vmem>>, vector<32x32xbf16>
    %cst_93 = arith.constant dense<0.000000e+00> : vector<8x32xf32>
    %257 = tpu.matmul %255, %256, %cst_93 {dimension_numbers = #tpu.dot_dimension_numbers<[1], [0], [0], [1], [0, 0, 1, 1], [], []>} : vector<8x32xbf16>, vector<32x32xbf16>, vector<8x32xf32> -> vector<8x32xf32>
    %c0_94 = arith.constant 0 : index
    %c0_95 = arith.constant 0 : index
    %258 = vector.load %arg23[%c0_94, %c0_95] : memref<1x32xf32, #tpu.memory_space<vmem>>, vector<1x32xf32>
    %259 = vector.broadcast %258 : vector<1x32xf32> to vector<8x32xf32>
    %260 = arith.addf %257, %259 : vector<8x32xf32>
    %261 = arith.addf %192, %260 : vector<8x32xf32>
    %cst_96 = arith.constant dense<0.000000e+00> : vector<8xf32>
    %262 = vector.multi_reduction <add>, %261, %cst_96 [1] : vector<8x32xf32> to vector<8xf32>
    %263 = vector.shape_cast %262 : vector<8xf32> to vector<8x1xf32>
    %cst_97 = arith.constant 3.200000e+01 : f32
    %264 = vector.broadcast %cst_97 : f32 to vector<8x1xf32>
    %265 = arith.divf %263, %264 : vector<8x1xf32>
    %266 = vector.broadcast %265 : vector<8x1xf32> to vector<8x32xf32>
    %267 = arith.subf %261, %266 : vector<8x32xf32>
    %268 = vector.broadcast %265 : vector<8x1xf32> to vector<8x32xf32>
    %269 = arith.subf %261, %268 : vector<8x32xf32>
    %270 = arith.mulf %267, %269 : vector<8x32xf32>
    %cst_98 = arith.constant dense<0.000000e+00> : vector<8xf32>
    %271 = vector.multi_reduction <add>, %270, %cst_98 [1] : vector<8x32xf32> to vector<8xf32>
    %272 = vector.shape_cast %271 : vector<8xf32> to vector<8x1xf32>
    %cst_99 = arith.constant 3.200000e+01 : f32
    %273 = vector.broadcast %cst_99 : f32 to vector<8x1xf32>
    %274 = arith.divf %272, %273 : vector<8x1xf32>
    %275 = vector.broadcast %265 : vector<8x1xf32> to vector<8x32xf32>
    %276 = arith.subf %261, %275 : vector<8x32xf32>
    %cst_100 = arith.constant 9.99999996E-13 : f32
    %277 = vector.broadcast %cst_100 : f32 to vector<8x1xf32>
    %278 = arith.addf %274, %277 : vector<8x1xf32>
    %279 = math.rsqrt %278 : vector<8x1xf32>
    %280 = vector.broadcast %279 : vector<8x1xf32> to vector<8x32xf32>
    %281 = arith.mulf %276, %280 : vector<8x32xf32>
    %c0_101 = arith.constant 0 : index
    %c0_102 = arith.constant 0 : index
    %282 = vector.load %arg24[%c0_101, %c0_102] : memref<1x32xf32, #tpu.memory_space<vmem>>, vector<1x32xf32>
    %283 = vector.broadcast %282 : vector<1x32xf32> to vector<8x32xf32>
    %284 = arith.mulf %281, %283 : vector<8x32xf32>
    %c0_103 = arith.constant 0 : index
    %c0_104 = arith.constant 0 : index
    %285 = vector.load %arg25[%c0_103, %c0_104] : memref<1x32xf32, #tpu.memory_space<vmem>>, vector<1x32xf32>
    %286 = vector.broadcast %285 : vector<1x32xf32> to vector<8x32xf32>
    %287 = arith.addf %284, %286 : vector<8x32xf32>
    %288 = arith.truncf %287 : vector<8x32xf32> to vector<8x32xbf16>
    %c0_105 = arith.constant 0 : index
    %c0_106 = arith.constant 0 : index
    %289 = vector.load %arg26[%c0_105, %c0_106] : memref<32x32xbf16, #tpu.memory_space<vmem>>, vector<32x32xbf16>
    %cst_107 = arith.constant dense<0.000000e+00> : vector<8x32xf32>
    %290 = tpu.matmul %288, %289, %cst_107 {dimension_numbers = #tpu.dot_dimension_numbers<[1], [0], [0], [1], [0, 0, 1, 1], [], []>} : vector<8x32xbf16>, vector<32x32xbf16>, vector<8x32xf32> -> vector<8x32xf32>
    %c0_108 = arith.constant 0 : index
    %c0_109 = arith.constant 0 : index
    %291 = vector.load %arg27[%c0_108, %c0_109] : memref<1x32xf32, #tpu.memory_space<vmem>>, vector<1x32xf32>
    %292 = vector.broadcast %291 : vector<1x32xf32> to vector<8x32xf32>
    %293 = arith.addf %290, %292 : vector<8x32xf32>
    %294 = arith.truncf %164 : vector<8x32xf32> to vector<8x32xbf16>
    %c0_110 = arith.constant 0 : index
    %c0_111 = arith.constant 0 : index
    %295 = vector.load %arg28[%c0_110, %c0_111] : memref<32x64xbf16, #tpu.memory_space<vmem>>, vector<32x64xbf16>
    %cst_112 = arith.constant dense<0.000000e+00> : vector<8x64xf32>
    %296 = tpu.matmul %294, %295, %cst_112 {dimension_numbers = #tpu.dot_dimension_numbers<[1], [0], [0], [1], [0, 0, 1, 1], [], []>} : vector<8x32xbf16>, vector<32x64xbf16>, vector<8x64xf32> -> vector<8x64xf32>
    %c0_113 = arith.constant 0 : index
    %c0_114 = arith.constant 0 : index
    %297 = vector.load %arg29[%c0_113, %c0_114] : memref<1x64xf32, #tpu.memory_space<vmem>>, vector<1x64xf32>
    %298 = vector.broadcast %297 : vector<1x64xf32> to vector<8x64xf32>
    %299 = arith.addf %296, %298 : vector<8x64xf32>
    %300 = vector.extract_strided_slice %299 {offsets = [0, 0], sizes = [8, 32], strides = [1, 1]} : vector<8x64xf32> to vector<8x32xf32>
    %301 = vector.extract_strided_slice %299 {offsets = [0, 32], sizes = [8, 32], strides = [1, 1]} : vector<8x64xf32> to vector<8x32xf32>
    %302 = vector.extract_strided_slice %293 {offsets = [0, 0], sizes = [8, 16], strides = [1, 1]} : vector<8x32xf32> to vector<8x16xf32>
    %303 = vector.extract_strided_slice %300 {offsets = [0, 0], sizes = [8, 16], strides = [1, 1]} : vector<8x32xf32> to vector<8x16xf32>
    %304 = vector.extract_strided_slice %301 {offsets = [0, 0], sizes = [8, 16], strides = [1, 1]} : vector<8x32xf32> to vector<8x16xf32>
    %305 = arith.truncf %302 : vector<8x16xf32> to vector<8x16xbf16>
    %306 = arith.truncf %303 : vector<8x16xf32> to vector<8x16xbf16>
    %cst_115 = arith.constant dense<0.000000e+00> : vector<8x8xf32>
    %307 = tpu.matmul %305, %306, %cst_115 {dimension_numbers = #tpu.dot_dimension_numbers<[1], [1], [0], [0], [0, 0, 1, 0], [], []>} : vector<8x16xbf16>, vector<8x16xbf16>, vector<8x8xf32> -> vector<8x8xf32>
    %cst_116 = arith.constant 2.500000e-01 : f32
    %308 = vector.broadcast %cst_116 : f32 to vector<8x8xf32>
    %309 = arith.mulf %307, %308 : vector<8x8xf32>
    %cst_117 = arith.constant dense<0xFF800000> : vector<8xf32>
    %310 = vector.multi_reduction <maximumf>, %309, %cst_117 [1] : vector<8x8xf32> to vector<8xf32>
    %311 = vector.shape_cast %310 : vector<8xf32> to vector<8x1xf32>
    %312 = vector.broadcast %311 : vector<8x1xf32> to vector<8x8xf32>
    %313 = arith.subf %309, %312 : vector<8x8xf32>
    %314 = math.exp %313 : vector<8x8xf32>
    %cst_118 = arith.constant dense<0.000000e+00> : vector<8xf32>
    %315 = vector.multi_reduction <add>, %314, %cst_118 [1] : vector<8x8xf32> to vector<8xf32>
    %316 = vector.shape_cast %315 : vector<8xf32> to vector<8x1xf32>
    %317 = tpu.reciprocal %316 {approx = true} : vector<8x1xf32> -> vector<8x1xf32>
    %318 = vector.broadcast %317 : vector<8x1xf32> to vector<8x8xf32>
    %319 = arith.mulf %314, %318 : vector<8x8xf32>
    %320 = arith.truncf %319 : vector<8x8xf32> to vector<8x8xbf16>
    %321 = arith.truncf %304 : vector<8x16xf32> to vector<8x16xbf16>
    %cst_119 = arith.constant dense<0.000000e+00> : vector<8x16xf32>
    %322 = tpu.matmul %320, %321, %cst_119 {dimension_numbers = #tpu.dot_dimension_numbers<[1], [0], [0], [1], [0, 0, 1, 1], [], []>} : vector<8x8xbf16>, vector<8x16xbf16>, vector<8x16xf32> -> vector<8x16xf32>
    %323 = vector.extract_strided_slice %293 {offsets = [0, 16], sizes = [8, 16], strides = [1, 1]} : vector<8x32xf32> to vector<8x16xf32>
    %324 = vector.extract_strided_slice %300 {offsets = [0, 16], sizes = [8, 16], strides = [1, 1]} : vector<8x32xf32> to vector<8x16xf32>
    %325 = vector.extract_strided_slice %301 {offsets = [0, 16], sizes = [8, 16], strides = [1, 1]} : vector<8x32xf32> to vector<8x16xf32>
    %326 = arith.truncf %323 : vector<8x16xf32> to vector<8x16xbf16>
    %327 = arith.truncf %324 : vector<8x16xf32> to vector<8x16xbf16>
    %cst_120 = arith.constant dense<0.000000e+00> : vector<8x8xf32>
    %328 = tpu.matmul %326, %327, %cst_120 {dimension_numbers = #tpu.dot_dimension_numbers<[1], [1], [0], [0], [0, 0, 1, 0], [], []>} : vector<8x16xbf16>, vector<8x16xbf16>, vector<8x8xf32> -> vector<8x8xf32>
    %cst_121 = arith.constant 2.500000e-01 : f32
    %329 = vector.broadcast %cst_121 : f32 to vector<8x8xf32>
    %330 = arith.mulf %328, %329 : vector<8x8xf32>
    %cst_122 = arith.constant dense<0xFF800000> : vector<8xf32>
    %331 = vector.multi_reduction <maximumf>, %330, %cst_122 [1] : vector<8x8xf32> to vector<8xf32>
    %332 = vector.shape_cast %331 : vector<8xf32> to vector<8x1xf32>
    %333 = vector.broadcast %332 : vector<8x1xf32> to vector<8x8xf32>
    %334 = arith.subf %330, %333 : vector<8x8xf32>
    %335 = math.exp %334 : vector<8x8xf32>
    %cst_123 = arith.constant dense<0.000000e+00> : vector<8xf32>
    %336 = vector.multi_reduction <add>, %335, %cst_123 [1] : vector<8x8xf32> to vector<8xf32>
    %337 = vector.shape_cast %336 : vector<8xf32> to vector<8x1xf32>
    %338 = tpu.reciprocal %337 {approx = true} : vector<8x1xf32> -> vector<8x1xf32>
    %339 = vector.broadcast %338 : vector<8x1xf32> to vector<8x8xf32>
    %340 = arith.mulf %335, %339 : vector<8x8xf32>
    %341 = arith.truncf %340 : vector<8x8xf32> to vector<8x8xbf16>
    %342 = arith.truncf %325 : vector<8x16xf32> to vector<8x16xbf16>
    %cst_124 = arith.constant dense<0.000000e+00> : vector<8x16xf32>
    %343 = tpu.matmul %341, %342, %cst_124 {dimension_numbers = #tpu.dot_dimension_numbers<[1], [0], [0], [1], [0, 0, 1, 1], [], []>} : vector<8x8xbf16>, vector<8x16xbf16>, vector<8x16xf32> -> vector<8x16xf32>
    %344 = tpu.concatenate %322, %343 in 1 : vector<8x16xf32>, vector<8x16xf32> -> vector<8x32xf32>
    %345 = arith.truncf %344 : vector<8x32xf32> to vector<8x32xbf16>
    %c0_125 = arith.constant 0 : index
    %c0_126 = arith.constant 0 : index
    %346 = vector.load %arg30[%c0_125, %c0_126] : memref<32x32xbf16, #tpu.memory_space<vmem>>, vector<32x32xbf16>
    %cst_127 = arith.constant dense<0.000000e+00> : vector<8x32xf32>
    %347 = tpu.matmul %345, %346, %cst_127 {dimension_numbers = #tpu.dot_dimension_numbers<[1], [0], [0], [1], [0, 0, 1, 1], [], []>} : vector<8x32xbf16>, vector<32x32xbf16>, vector<8x32xf32> -> vector<8x32xf32>
    %c0_128 = arith.constant 0 : index
    %c0_129 = arith.constant 0 : index
    %348 = vector.load %arg31[%c0_128, %c0_129] : memref<1x32xf32, #tpu.memory_space<vmem>>, vector<1x32xf32>
    %349 = vector.broadcast %348 : vector<1x32xf32> to vector<8x32xf32>
    %350 = arith.addf %347, %349 : vector<8x32xf32>
    %351 = arith.addf %287, %350 : vector<8x32xf32>
    %cst_130 = arith.constant dense<0.000000e+00> : vector<8xf32>
    %352 = vector.multi_reduction <add>, %351, %cst_130 [1] : vector<8x32xf32> to vector<8xf32>
    %353 = vector.shape_cast %352 : vector<8xf32> to vector<8x1xf32>
    %cst_131 = arith.constant 3.200000e+01 : f32
    %354 = vector.broadcast %cst_131 : f32 to vector<8x1xf32>
    %355 = arith.divf %353, %354 : vector<8x1xf32>
    %356 = vector.broadcast %355 : vector<8x1xf32> to vector<8x32xf32>
    %357 = arith.subf %351, %356 : vector<8x32xf32>
    %358 = vector.broadcast %355 : vector<8x1xf32> to vector<8x32xf32>
    %359 = arith.subf %351, %358 : vector<8x32xf32>
    %360 = arith.mulf %357, %359 : vector<8x32xf32>
    %cst_132 = arith.constant dense<0.000000e+00> : vector<8xf32>
    %361 = vector.multi_reduction <add>, %360, %cst_132 [1] : vector<8x32xf32> to vector<8xf32>
    %362 = vector.shape_cast %361 : vector<8xf32> to vector<8x1xf32>
    %cst_133 = arith.constant 3.200000e+01 : f32
    %363 = vector.broadcast %cst_133 : f32 to vector<8x1xf32>
    %364 = arith.divf %362, %363 : vector<8x1xf32>
    %365 = vector.broadcast %355 : vector<8x1xf32> to vector<8x32xf32>
    %366 = arith.subf %351, %365 : vector<8x32xf32>
    %cst_134 = arith.constant 9.99999996E-13 : f32
    %367 = vector.broadcast %cst_134 : f32 to vector<8x1xf32>
    %368 = arith.addf %364, %367 : vector<8x1xf32>
    %369 = math.rsqrt %368 : vector<8x1xf32>
    %370 = vector.broadcast %369 : vector<8x1xf32> to vector<8x32xf32>
    %371 = arith.mulf %366, %370 : vector<8x32xf32>
    %c0_135 = arith.constant 0 : index
    %c0_136 = arith.constant 0 : index
    %372 = vector.load %arg32[%c0_135, %c0_136] : memref<1x32xf32, #tpu.memory_space<vmem>>, vector<1x32xf32>
    %373 = vector.broadcast %372 : vector<1x32xf32> to vector<8x32xf32>
    %374 = arith.mulf %371, %373 : vector<8x32xf32>
    %c0_137 = arith.constant 0 : index
    %c0_138 = arith.constant 0 : index
    %375 = vector.load %arg33[%c0_137, %c0_138] : memref<1x32xf32, #tpu.memory_space<vmem>>, vector<1x32xf32>
    %376 = vector.broadcast %375 : vector<1x32xf32> to vector<8x32xf32>
    %377 = arith.addf %374, %376 : vector<8x32xf32>
    %378 = arith.truncf %377 : vector<8x32xf32> to vector<8x32xbf16>
    %c0_139 = arith.constant 0 : index
    %c0_140 = arith.constant 0 : index
    %379 = vector.load %arg34[%c0_139, %c0_140] : memref<32x64xbf16, #tpu.memory_space<vmem>>, vector<32x64xbf16>
    %cst_141 = arith.constant dense<0.000000e+00> : vector<8x64xf32>
    %380 = tpu.matmul %378, %379, %cst_141 {dimension_numbers = #tpu.dot_dimension_numbers<[1], [0], [0], [1], [0, 0, 1, 1], [], []>} : vector<8x32xbf16>, vector<32x64xbf16>, vector<8x64xf32> -> vector<8x64xf32>
    %c0_142 = arith.constant 0 : index
    %c0_143 = arith.constant 0 : index
    %381 = vector.load %arg35[%c0_142, %c0_143] : memref<1x64xf32, #tpu.memory_space<vmem>>, vector<1x64xf32>
    %382 = vector.broadcast %381 : vector<1x64xf32> to vector<8x64xf32>
    %383 = arith.addf %380, %382 : vector<8x64xf32>
    %384 = arith.mulf %383, %383 : vector<8x64xf32>
    %385 = arith.mulf %383, %384 : vector<8x64xf32>
    %cst_144 = arith.constant 4.471500e-02 : f32
    %386 = vector.broadcast %cst_144 : f32 to vector<8x64xf32>
    %387 = arith.mulf %386, %385 : vector<8x64xf32>
    %388 = arith.addf %383, %387 : vector<8x64xf32>
    %cst_145 = arith.constant 0.797884583 : f32
    %389 = vector.broadcast %cst_145 : f32 to vector<8x64xf32>
    %390 = arith.mulf %389, %388 : vector<8x64xf32>
    %391 = math.tanh %390 : vector<8x64xf32>
    %cst_146 = arith.constant 1.000000e+00 : f32
    %392 = vector.broadcast %cst_146 : f32 to vector<8x64xf32>
    %393 = arith.addf %392, %391 : vector<8x64xf32>
    %cst_147 = arith.constant 5.000000e-01 : f32
    %394 = vector.broadcast %cst_147 : f32 to vector<8x64xf32>
    %395 = arith.mulf %394, %393 : vector<8x64xf32>
    %396 = arith.mulf %383, %395 : vector<8x64xf32>
    %397 = arith.truncf %396 : vector<8x64xf32> to vector<8x64xbf16>
    %c0_148 = arith.constant 0 : index
    %c0_149 = arith.constant 0 : index
    %398 = vector.load %arg36[%c0_148, %c0_149] : memref<64x32xbf16, #tpu.memory_space<vmem>>, vector<64x32xbf16>
    %cst_150 = arith.constant dense<0.000000e+00> : vector<8x32xf32>
    %399 = tpu.matmul %397, %398, %cst_150 {dimension_numbers = #tpu.dot_dimension_numbers<[1], [0], [0], [1], [0, 0, 1, 1], [], []>} : vector<8x64xbf16>, vector<64x32xbf16>, vector<8x32xf32> -> vector<8x32xf32>
    %c0_151 = arith.constant 0 : index
    %c0_152 = arith.constant 0 : index
    %400 = vector.load %arg37[%c0_151, %c0_152] : memref<1x32xf32, #tpu.memory_space<vmem>>, vector<1x32xf32>
    %401 = vector.broadcast %400 : vector<1x32xf32> to vector<8x32xf32>
    %402 = arith.addf %399, %401 : vector<8x32xf32>
    %403 = arith.addf %377, %402 : vector<8x32xf32>
    %cst_153 = arith.constant dense<0.000000e+00> : vector<8xf32>
    %404 = vector.multi_reduction <add>, %403, %cst_153 [1] : vector<8x32xf32> to vector<8xf32>
    %405 = vector.shape_cast %404 : vector<8xf32> to vector<8x1xf32>
    %cst_154 = arith.constant 3.200000e+01 : f32
    %406 = vector.broadcast %cst_154 : f32 to vector<8x1xf32>
    %407 = arith.divf %405, %406 : vector<8x1xf32>
    %408 = vector.broadcast %407 : vector<8x1xf32> to vector<8x32xf32>
    %409 = arith.subf %403, %408 : vector<8x32xf32>
    %410 = vector.broadcast %407 : vector<8x1xf32> to vector<8x32xf32>
    %411 = arith.subf %403, %410 : vector<8x32xf32>
    %412 = arith.mulf %409, %411 : vector<8x32xf32>
    %cst_155 = arith.constant dense<0.000000e+00> : vector<8xf32>
    %413 = vector.multi_reduction <add>, %412, %cst_155 [1] : vector<8x32xf32> to vector<8xf32>
    %414 = vector.shape_cast %413 : vector<8xf32> to vector<8x1xf32>
    %cst_156 = arith.constant 3.200000e+01 : f32
    %415 = vector.broadcast %cst_156 : f32 to vector<8x1xf32>
    %416 = arith.divf %414, %415 : vector<8x1xf32>
    %417 = vector.broadcast %407 : vector<8x1xf32> to vector<8x32xf32>
    %418 = arith.subf %403, %417 : vector<8x32xf32>
    %cst_157 = arith.constant 9.99999996E-13 : f32
    %419 = vector.broadcast %cst_157 : f32 to vector<8x1xf32>
    %420 = arith.addf %416, %419 : vector<8x1xf32>
    %421 = math.rsqrt %420 : vector<8x1xf32>
    %422 = vector.broadcast %421 : vector<8x1xf32> to vector<8x32xf32>
    %423 = arith.mulf %418, %422 : vector<8x32xf32>
    %c0_158 = arith.constant 0 : index
    %c0_159 = arith.constant 0 : index
    %424 = vector.load %arg38[%c0_158, %c0_159] : memref<1x32xf32, #tpu.memory_space<vmem>>, vector<1x32xf32>
    %425 = vector.broadcast %424 : vector<1x32xf32> to vector<8x32xf32>
    %426 = arith.mulf %423, %425 : vector<8x32xf32>
    %c0_160 = arith.constant 0 : index
    %c0_161 = arith.constant 0 : index
    %427 = vector.load %arg39[%c0_160, %c0_161] : memref<1x32xf32, #tpu.memory_space<vmem>>, vector<1x32xf32>
    %428 = vector.broadcast %427 : vector<1x32xf32> to vector<8x32xf32>
    %429 = arith.addf %426, %428 : vector<8x32xf32>
    %430 = arith.truncf %429 : vector<8x32xf32> to vector<8x32xbf16>
    %c0_162 = arith.constant 0 : index
    %c0_163 = arith.constant 0 : index
    %431 = vector.load %arg40[%c0_162, %c0_163] : memref<32x32xbf16, #tpu.memory_space<vmem>>, vector<32x32xbf16>
    %cst_164 = arith.constant dense<0.000000e+00> : vector<8x32xf32>
    %432 = tpu.matmul %430, %431, %cst_164 {dimension_numbers = #tpu.dot_dimension_numbers<[1], [0], [0], [1], [0, 0, 1, 1], [], []>} : vector<8x32xbf16>, vector<32x32xbf16>, vector<8x32xf32> -> vector<8x32xf32>
    %c0_165 = arith.constant 0 : index
    %c0_166 = arith.constant 0 : index
    %433 = vector.load %arg41[%c0_165, %c0_166] : memref<1x32xf32, #tpu.memory_space<vmem>>, vector<1x32xf32>
    %434 = vector.broadcast %433 : vector<1x32xf32> to vector<8x32xf32>
    %435 = arith.addf %432, %434 : vector<8x32xf32>
    %436 = arith.mulf %435, %435 : vector<8x32xf32>
    %437 = arith.mulf %435, %436 : vector<8x32xf32>
    %cst_167 = arith.constant 4.471500e-02 : f32
    %438 = vector.broadcast %cst_167 : f32 to vector<8x32xf32>
    %439 = arith.mulf %438, %437 : vector<8x32xf32>
    %440 = arith.addf %435, %439 : vector<8x32xf32>
    %cst_168 = arith.constant 0.797884583 : f32
    %441 = vector.broadcast %cst_168 : f32 to vector<8x32xf32>
    %442 = arith.mulf %441, %440 : vector<8x32xf32>
    %443 = math.tanh %442 : vector<8x32xf32>
    %cst_169 = arith.constant 1.000000e+00 : f32
    %444 = vector.broadcast %cst_169 : f32 to vector<8x32xf32>
    %445 = arith.addf %444, %443 : vector<8x32xf32>
    %cst_170 = arith.constant 5.000000e-01 : f32
    %446 = vector.broadcast %cst_170 : f32 to vector<8x32xf32>
    %447 = arith.mulf %446, %445 : vector<8x32xf32>
    %448 = arith.mulf %435, %447 : vector<8x32xf32>
    %cst_171 = arith.constant dense<0.000000e+00> : vector<8xf32>
    %449 = vector.multi_reduction <add>, %448, %cst_171 [1] : vector<8x32xf32> to vector<8xf32>
    %450 = vector.shape_cast %449 : vector<8xf32> to vector<8x1xf32>
    %cst_172 = arith.constant 3.200000e+01 : f32
    %451 = vector.broadcast %cst_172 : f32 to vector<8x1xf32>
    %452 = arith.divf %450, %451 : vector<8x1xf32>
    %453 = vector.broadcast %452 : vector<8x1xf32> to vector<8x32xf32>
    %454 = arith.subf %448, %453 : vector<8x32xf32>
    %455 = vector.broadcast %452 : vector<8x1xf32> to vector<8x32xf32>
    %456 = arith.subf %448, %455 : vector<8x32xf32>
    %457 = arith.mulf %454, %456 : vector<8x32xf32>
    %cst_173 = arith.constant dense<0.000000e+00> : vector<8xf32>
    %458 = vector.multi_reduction <add>, %457, %cst_173 [1] : vector<8x32xf32> to vector<8xf32>
    %459 = vector.shape_cast %458 : vector<8xf32> to vector<8x1xf32>
    %cst_174 = arith.constant 3.200000e+01 : f32
    %460 = vector.broadcast %cst_174 : f32 to vector<8x1xf32>
    %461 = arith.divf %459, %460 : vector<8x1xf32>
    %462 = vector.broadcast %452 : vector<8x1xf32> to vector<8x32xf32>
    %463 = arith.subf %448, %462 : vector<8x32xf32>
    %cst_175 = arith.constant 9.99999996E-13 : f32
    %464 = vector.broadcast %cst_175 : f32 to vector<8x1xf32>
    %465 = arith.addf %461, %464 : vector<8x1xf32>
    %466 = math.rsqrt %465 : vector<8x1xf32>
    %467 = vector.broadcast %466 : vector<8x1xf32> to vector<8x32xf32>
    %468 = arith.mulf %463, %467 : vector<8x32xf32>
    %c0_176 = arith.constant 0 : index
    %c0_177 = arith.constant 0 : index
    %469 = vector.load %arg42[%c0_176, %c0_177] : memref<1x32xf32, #tpu.memory_space<vmem>>, vector<1x32xf32>
    %470 = vector.broadcast %469 : vector<1x32xf32> to vector<8x32xf32>
    %471 = arith.mulf %468, %470 : vector<8x32xf32>
    %c0_178 = arith.constant 0 : index
    %c0_179 = arith.constant 0 : index
    %472 = vector.load %arg43[%c0_178, %c0_179] : memref<1x32xf32, #tpu.memory_space<vmem>>, vector<1x32xf32>
    %473 = vector.broadcast %472 : vector<1x32xf32> to vector<8x32xf32>
    %474 = arith.addf %471, %473 : vector<8x32xf32>
    %475 = arith.truncf %474 : vector<8x32xf32> to vector<8x32xbf16>
    %c0_180 = arith.constant 0 : index
    %c0_181 = arith.constant 0 : index
    %476 = vector.load %arg44[%c0_180, %c0_181] : memref<32x128xbf16, #tpu.memory_space<vmem>>, vector<32x128xbf16>
    %cst_182 = arith.constant dense<0.000000e+00> : vector<8x128xf32>
    %477 = tpu.matmul %475, %476, %cst_182 {dimension_numbers = #tpu.dot_dimension_numbers<[1], [0], [0], [1], [0, 0, 1, 1], [], []>} : vector<8x32xbf16>, vector<32x128xbf16>, vector<8x128xf32> -> vector<8x128xf32>
    %c0_183 = arith.constant 0 : index
    %c0_184 = arith.constant 0 : index
    %478 = vector.load %arg45[%c0_183, %c0_184] : memref<1x128xf32, #tpu.memory_space<vmem>>, vector<1x128xf32>
    %479 = vector.broadcast %478 : vector<1x128xf32> to vector<8x128xf32>
    %480 = arith.addf %477, %479 : vector<8x128xf32>
    %c0_185 = arith.constant 0 : index
    %c0_186 = arith.constant 0 : index
    %c0_187 = arith.constant 0 : index
    %481 = vector.load %arg47[%c0_185, %c0_186, %c0_187] : memref<1x8x128xf32, #tpu.memory_space<vmem>>, vector<1x8x128xf32>
    %482 = vector.shape_cast %481 : vector<1x8x128xf32> to vector<8x128xf32>
    %483 = vector.shape_cast %480 : vector<8x128xf32> to vector<1x8x128xf32>
    tpu.vector_store %arg47[%c0_185, %c0_186, %c0_187], %483 {strides = array<i32>} : memref<1x8x128xf32, #tpu.memory_space<vmem>>, vector<1x8x128xf32>,
    %c0_188 = arith.constant 0 : index
    %c0_189 = arith.constant 0 : index
    %c0_190 = arith.constant 0 : index
    %484 = vector.load %arg3[%c0_188, %c0_189, %c0_190] : memref<1x8x1xi32, #tpu.memory_space<vmem>>, vector<1x8x1xi32>
    %485 = vector.shape_cast %484 : vector<1x8x1xi32> to vector<8x1xi32>
    %cst_191 = arith.constant dense<0xFF800000> : vector<8xf32>
    %486 = vector.multi_reduction <maximumf>, %480, %cst_191 [1] : vector<8x128xf32> to vector<8xf32>
    %487 = vector.shape_cast %486 : vector<8xf32> to vector<8x1xf32>
    %488 = vector.broadcast %487 : vector<8x1xf32> to vector<8x128xf32>
    %489 = arith.subf %480, %488 : vector<8x128xf32>
    %490 = math.exp %489 : vector<8x128xf32>
    %cst_192 = arith.constant dense<0.000000e+00> : vector<8xf32>
    %491 = vector.multi_reduction <add>, %490, %cst_192 [1] : vector<8x128xf32> to vector<8xf32>
    %492 = vector.shape_cast %491 : vector<8xf32> to vector<8x1xf32>
    %493 = math.log %492 : vector<8x1xf32>
    %494 = arith.addf %487, %493 : vector<8x1xf32>
    %495 = tpu.iota {dimensions = array<i32: 1>} : vector<8x128xi32>
    %496 = vector.broadcast %485 : vector<8x1xi32> to vector<8x128xi32>
    %497 = arith.cmpi eq, %495, %496 : vector<8x128xi32>
    %498 = arith.extui %497 : vector<8x128xi1> to vector<8x128xi32>
    %499 = arith.sitofp %498 : vector<8x128xi32> to vector<8x128xf32>
    %500 = arith.mulf %499, %480 : vector<8x128xf32>
    %cst_193 = arith.constant dense<0.000000e+00> : vector<8xf32>
    %501 = vector.multi_reduction <add>, %500, %cst_193 [1] : vector<8x128xf32> to vector<8xf32>
    %502 = vector.shape_cast %501 : vector<8xf32> to vector<8x1xf32>
    %503 = arith.subf %494, %502 : vector<8x1xf32>
    %504 = vector.shape_cast %503 : vector<8x1xf32> to vector<1x8x1xf32>
    %cst_194 = arith.constant dense<0.000000e+00> : vector<1xf32>
    %505 = vector.multi_reduction <add>, %504, %cst_194 [1, 2] : vector<1x8x1xf32> to vector<1xf32>
    %506 = vector.shape_cast %505 : vector<1xf32> to vector<1x1x1xf32>
    %507 = vector.extract %506[0, 0, 0] : f32 from vector<1x1x1xf32>
    %cst_195 = arith.constant 1.000000e+00 : f32
    %508 = vector.broadcast %cst_195 : f32 to vector<1x1x128xf32>
    %509 = vector.broadcast %507 : f32 to vector<1x1x128xf32>
    %510 = arith.mulf %509, %508 : vector<1x1x128xf32>
    %c0_196 = arith.constant 0 : index
    %c0_197 = arith.constant 0 : index
    %c0_198 = arith.constant 0 : index
    %511 = vector.load %arg46[%c0_196, %c0_197, %c0_198] : memref<1x1x128xf32, #tpu.memory_space<vmem>>, vector<1x1x128xf32>
    tpu.vector_store %arg46[%c0_196, %c0_197, %c0_198], %510 {strides = array<i32>} : memref<1x1x128xf32, #tpu.memory_space<vmem>>, vector<1x1x128xf32>,
    return
  }
  func.func @transform_0(%arg0: i32) -> (i32, i32, i32) {
    %c0_i32 = arith.constant 0 : i32
    %c0_i32_0 = arith.constant 0 : i32
    %c0_i32_1 = arith.constant 0 : i32
    return %arg0, %c0_i32, %c0_i32_0 : i32, i32, i32
  }
  func.func @transform_1(%arg0: i32) -> (i32, i32, i32) {
    %c0_i32 = arith.constant 0 : i32
    %c0_i32_0 = arith.constant 0 : i32
    %c0_i32_1 = arith.constant 0 : i32
    return %arg0, %c0_i32, %c0_i32_0 : i32, i32, i32
  }
  func.func @transform_2(%arg0: i32) -> (i32, i32, i32) {
    %c0_i32 = arith.constant 0 : i32
    %c0_i32_0 = arith.constant 0 : i32
    %c0_i32_1 = arith.constant 0 : i32
    return %arg0, %c0_i32, %c0_i32_0 : i32, i32, i32
  }
  func.func @transform_3(%arg0: i32) -> (i32, i32) {
    %c0_i32 = arith.constant 0 : i32
    %c0_i32_0 = arith.constant 0 : i32
    %c0_i32_1 = arith.constant 0 : i32
    return %c0_i32, %c0_i32_0 : i32, i32
  }
  func.func @transform_4(%arg0: i32) -> (i32, i32) {
    %c0_i32 = arith.constant 0 : i32
    %c0_i32_0 = arith.constant 0 : i32
    %c0_i32_1 = arith.constant 0 : i32
    return %c0_i32, %c0_i32_0 : i32, i32
  }
  func.func @transform_5(%arg0: i32) -> (i32, i32) {
    %c0_i32 = arith.constant 0 : i32
    %c0_i32_0 = arith.constant 0 : i32
    %c0_i32_1 = arith.constant 0 : i32
    return %c0_i32, %c0_i32_0 : i32, i32
  }
  func.func @transform_6(%arg0: i32) -> (i32, i32) {
    %c0_i32 = arith.constant 0 : i32
    %c0_i32_0 = arith.constant 0 : i32
    %c0_i32_1 = arith.constant 0 : i32
    return %c0_i32, %c0_i32_0 : i32, i32
  }
  func.func @transform_7(%arg0: i32) -> (i32, i32) {
    %c0_i32 = arith.constant 0 : i32
    %c0_i32_0 = arith.constant 0 : i32
    %c0_i32_1 = arith.constant 0 : i32
    return %c0_i32, %c0_i32_0 : i32, i32
  }
  func.func @transform_8(%arg0: i32) -> (i32, i32) {
    %c0_i32 = arith.constant 0 : i32
    %c0_i32_0 = arith.constant 0 : i32
    %c0_i32_1 = arith.constant 0 : i32
    return %c0_i32, %c0_i32_0 : i32, i32
  }
  func.func @transform_9(%arg0: i32) -> (i32, i32) {
    %c0_i32 = arith.constant 0 : i32
    %c0_i32_0 = arith.constant 0 : i32
    %c0_i32_1 = arith.constant 0 : i32
    return %c0_i32, %c0_i32_0 : i32, i32
  }
  func.func @transform_10(%arg0: i32) -> (i32, i32) {
    %c0_i32 = arith.constant 0 : i32
    %c0_i32_0 = arith.constant 0 : i32
    %c0_i32_1 = arith.constant 0 : i32
    return %c0_i32, %c0_i32_0 : i32, i32
  }
  func.func @transform_11(%arg0: i32) -> (i32, i32) {
    %c0_i32 = arith.constant 0 : i32
    %c0_i32_0 = arith.constant 0 : i32
    %c0_i32_1 = arith.constant 0 : i32
    return %c0_i32, %c0_i32_0 : i32, i32
  }
  func.func @transform_12(%arg0: i32) -> (i32, i32) {
    %c0_i32 = arith.constant 0 : i32
    %c0_i32_0 = arith.constant 0 : i32
    %c0_i32_1 = arith.constant 0 : i32
    return %c0_i32, %c0_i32_0 : i32, i32
  }
  func.func @transform_13(%arg0: i32) -> (i32, i32) {
    %c0_i32 = arith.constant 0 : i32
    %c0_i32_0 = arith.constant 0 : i32
    %c0_i32_1 = arith.constant 0 : i32
    return %c0_i32, %c0_i32_0 : i32, i32
  }
  func.func @transform_14(%arg0: i32) -> (i32, i32) {
    %c0_i32 = arith.constant 0 : i32
    %c0_i32_0 = arith.constant 0 : i32
    %c0_i32_1 = arith.constant 0 : i32
    return %c0_i32, %c0_i32_0 : i32, i32
  }
  func.func @transform_15(%arg0: i32) -> (i32, i32) {
    %c0_i32 = arith.constant 0 : i32
    %c0_i32_0 = arith.constant 0 : i32
    %c0_i32_1 = arith.constant 0 : i32
    return %c0_i32, %c0_i32_0 : i32, i32
  }
  func.func @transform_16(%arg0: i32) -> (i32, i32) {
    %c0_i32 = arith.constant 0 : i32
    %c0_i32_0 = arith.constant 0 : i32
    %c0_i32_1 = arith.constant 0 : i32
    return %c0_i32, %c0_i32_0 : i32, i32
  }
  func.func @transform_17(%arg0: i32) -> (i32, i32) {
    %c0_i32 = arith.constant 0 : i32
    %c0_i32_0 = arith.constant 0 : i32
    %c0_i32_1 = arith.constant 0 : i32
    return %c0_i32, %c0_i32_0 : i32, i32
  }
  func.func @transform_18(%arg0: i32) -> (i32, i32) {
    %c0_i32 = arith.constant 0 : i32
    %c0_i32_0 = arith.constant 0 : i32
    %c0_i32_1 = arith.constant 0 : i32
    return %c0_i32, %c0_i32_0 : i32, i32
  }
  func.func @transform_19(%arg0: i32) -> (i32, i32) {
    %c0_i32 = arith.constant 0 : i32
    %c0_i32_0 = arith.constant 0 : i32
    %c0_i32_1 = arith.constant 0 : i32
    return %c0_i32, %c0_i32_0 : i32, i32
  }
  func.func @transform_20(%arg0: i32) -> (i32, i32) {
    %c0_i32 = arith.constant 0 : i32
    %c0_i32_0 = arith.constant 0 : i32
    %c0_i32_1 = arith.constant 0 : i32
    return %c0_i32, %c0_i32_0 : i32, i32
  }
  func.func @transform_21(%arg0: i32) -> (i32, i32) {
    %c0_i32 = arith.constant 0 : i32
    %c0_i32_0 = arith.constant 0 : i32
    %c0_i32_1 = arith.constant 0 : i32
    return %c0_i32, %c0_i32_0 : i32, i32
  }
  func.func @transform_22(%arg0: i32) -> (i32, i32) {
    %c0_i32 = arith.constant 0 : i32
    %c0_i32_0 = arith.constant 0 : i32
    %c0_i32_1 = arith.constant 0 : i32
    return %c0_i32, %c0_i32_0 : i32, i32
  }
  func.func @transform_23(%arg0: i32) -> (i32, i32) {
    %c0_i32 = arith.constant 0 : i32
    %c0_i32_0 = arith.constant 0 : i32
    %c0_i32_1 = arith.constant 0 : i32
    return %c0_i32, %c0_i32_0 : i32, i32
  }
  func.func @transform_24(%arg0: i32) -> (i32, i32) {
    %c0_i32 = arith.constant 0 : i32
    %c0_i32_0 = arith.constant 0 : i32
    %c0_i32_1 = arith.constant 0 : i32
    return %c0_i32, %c0_i32_0 : i32, i32
  }
  func.func @transform_25(%arg0: i32) -> (i32, i32) {
    %c0_i32 = arith.constant 0 : i32
    %c0_i32_0 = arith.constant 0 : i32
    %c0_i32_1 = arith.constant 0 : i32
    return %c0_i32, %c0_i32_0 : i32, i32
  }
  func.func @transform_26(%arg0: i32) -> (i32, i32) {
    %c0_i32 = arith.constant 0 : i32
    %c0_i32_0 = arith.constant 0 : i32
    %c0_i32_1 = arith.constant 0 : i32
    return %c0_i32, %c0_i32_0 : i32, i32
  }
  func.func @transform_27(%arg0: i32) -> (i32, i32) {
    %c0_i32 = arith.constant 0 : i32
    %c0_i32_0 = arith.constant 0 : i32
    %c0_i32_1 = arith.constant 0 : i32
    return %c0_i32, %c0_i32_0 : i32, i32
  }
  func.func @transform_28(%arg0: i32) -> (i32, i32) {
    %c0_i32 = arith.constant 0 : i32
    %c0_i32_0 = arith.constant 0 : i32
    %c0_i32_1 = arith.constant 0 : i32
    return %c0_i32, %c0_i32_0 : i32, i32
  }
  func.func @transform_29(%arg0: i32) -> (i32, i32) {
    %c0_i32 = arith.constant 0 : i32
    %c0_i32_0 = arith.constant 0 : i32
    %c0_i32_1 = arith.constant 0 : i32
    return %c0_i32, %c0_i32_0 : i32, i32
  }
  func.func @transform_30(%arg0: i32) -> (i32, i32) {
    %c0_i32 = arith.constant 0 : i32
    %c0_i32_0 = arith.constant 0 : i32
    %c0_i32_1 = arith.constant 0 : i32
    return %c0_i32, %c0_i32_0 : i32, i32
  }
  func.func @transform_31(%arg0: i32) -> (i32, i32) {
    %c0_i32 = arith.constant 0 : i32
    %c0_i32_0 = arith.constant 0 : i32
    %c0_i32_1 = arith.constant 0 : i32
    return %c0_i32, %c0_i32_0 : i32, i32
  }
  func.func @transform_32(%arg0: i32) -> (i32, i32) {
    %c0_i32 = arith.constant 0 : i32
    %c0_i32_0 = arith.constant 0 : i32
    %c0_i32_1 = arith.constant 0 : i32
    return %c0_i32, %c0_i32_0 : i32, i32
  }
  func.func @transform_33(%arg0: i32) -> (i32, i32) {
    %c0_i32 = arith.constant 0 : i32
    %c0_i32_0 = arith.constant 0 : i32
    %c0_i32_1 = arith.constant 0 : i32
    return %c0_i32, %c0_i32_0 : i32, i32
  }
  func.func @transform_34(%arg0: i32) -> (i32, i32) {
    %c0_i32 = arith.constant 0 : i32
    %c0_i32_0 = arith.constant 0 : i32
    %c0_i32_1 = arith.constant 0 : i32
    return %c0_i32, %c0_i32_0 : i32, i32
  }
  func.func @transform_35(%arg0: i32) -> (i32, i32) {
    %c0_i32 = arith.constant 0 : i32
    %c0_i32_0 = arith.constant 0 : i32
    %c0_i32_1 = arith.constant 0 : i32
    return %c0_i32, %c0_i32_0 : i32, i32
  }
  func.func @transform_36(%arg0: i32) -> (i32, i32) {
    %c0_i32 = arith.constant 0 : i32
    %c0_i32_0 = arith.constant 0 : i32
    %c0_i32_1 = arith.constant 0 : i32
    return %c0_i32, %c0_i32_0 : i32, i32
  }
  func.func @transform_37(%arg0: i32) -> (i32, i32) {
    %c0_i32 = arith.constant 0 : i32
    %c0_i32_0 = arith.constant 0 : i32
    %c0_i32_1 = arith.constant 0 : i32
    return %c0_i32, %c0_i32_0 : i32, i32
  }
  func.func @transform_38(%arg0: i32) -> (i32, i32) {
    %c0_i32 = arith.constant 0 : i32
    %c0_i32_0 = arith.constant 0 : i32
    %c0_i32_1 = arith.constant 0 : i32
    return %c0_i32, %c0_i32_0 : i32, i32
  }
  func.func @transform_39(%arg0: i32) -> (i32, i32) {
    %c0_i32 = arith.constant 0 : i32
    %c0_i32_0 = arith.constant 0 : i32
    %c0_i32_1 = arith.constant 0 : i32
    return %c0_i32, %c0_i32_0 : i32, i32
  }
  func.func @transform_40(%arg0: i32) -> (i32, i32) {
    %c0_i32 = arith.constant 0 : i32
    %c0_i32_0 = arith.constant 0 : i32
    %c0_i32_1 = arith.constant 0 : i32
    return %c0_i32, %c0_i32_0 : i32, i32
  }
  func.func @transform_41(%arg0: i32) -> (i32, i32) {
    %c0_i32 = arith.constant 0 : i32
    %c0_i32_0 = arith.constant 0 : i32
    %c0_i32_1 = arith.constant 0 : i32
    return %c0_i32, %c0_i32_0 : i32, i32
  }
  func.func @transform_42(%arg0: i32) -> (i32, i32) {
    %c0_i32 = arith.constant 0 : i32
    %c0_i32_0 = arith.constant 0 : i32
    %c0_i32_1 = arith.constant 0 : i32
    return %c0_i32, %c0_i32_0 : i32, i32
  }
  func.func @transform_43(%arg0: i32) -> (i32, i32) {
    %c0_i32 = arith.constant 0 : i32
    %c0_i32_0 = arith.constant 0 : i32
    %c0_i32_1 = arith.constant 0 : i32
    return %c0_i32, %c0_i32_0 : i32, i32
  }
  func.func @transform_44(%arg0: i32) -> (i32, i32) {
    %c0_i32 = arith.constant 0 : i32
    %c0_i32_0 = arith.constant 0 : i32
    %c0_i32_1 = arith.constant 0 : i32
    return %c0_i32, %c0_i32_0 : i32, i32
  }
  func.func @transform_45(%arg0: i32) -> (i32, i32, i32) {
    %c0_i32 = arith.constant 0 : i32
    %c0_i32_0 = arith.constant 0 : i32
    %c0_i32_1 = arith.constant 0 : i32
    return %arg0, %c0_i32, %c0_i32_0 : i32, i32, i32
  }
  func.func @transform_46(%arg0: i32) -> (i32, i32, i32) {
    %c0_i32 = arith.constant 0 : i32
    %c0_i32_0 = arith.constant 0 : i32
    %c0_i32_1 = arith.constant 0 : i32
    return %arg0, %c0_i32, %c0_i32_0 : i32, i32, i32
  }
}

</mosaic_0001>

<llo_original>
// kernel: translation_model_forward.1
$region0: #{translation_model_forward.1}
  #allocation0 [shape = 'u32[]', space=smem, size = 0x4, offset = 0x4, fixed_abs, tag = 'smem constant byte address 0x4 - core index']
  #allocation1 [shape = 'u32[144,128]{1,0:T(1,128)}', space=vmem, size = 0x12000, scoped, tag = 'internal scratch']
  %s0 = inlined_call_operand.smem [shape: u32[47], index: -1, kind: input, shape index: {}]
  %s1 = sld [smem:[%s0]]
  %s2 = scalar_lea.smem %s0, 1
  %s3 = sld [smem:[%s2]]
  %s4 = scalar_lea.smem %s0, 2
  %s5 = sld [smem:[%s4]]
  %s6 = scalar_lea.smem %s0, 3
  %s7 = sld [smem:[%s6]]
  %s8 = scalar_lea.smem %s0, 4
  %s9 = sld [smem:[%s8]]
  %s10 = scalar_lea.smem %s0, 5
  %s11 = sld [smem:[%s10]]
  %s12 = scalar_lea.smem %s0, 6
  %s13 = sld [smem:[%s12]]
  %s14 = scalar_lea.smem %s0, 7
  %s15 = sld [smem:[%s14]]
  %s16 = scalar_lea.smem %s0, 8
  %s17 = sld [smem:[%s16]]
  %s18 = scalar_lea.smem %s0, 9
  %s19 = sld [smem:[%s18]]
  %s20 = scalar_lea.smem %s0, 10
  %s21 = sld [smem:[%s20]]
  %s22 = scalar_lea.smem %s0, 11
  %s23 = sld [smem:[%s22]]
  %s24 = scalar_lea.smem %s0, 12
  %s25 = sld [smem:[%s24]]
  %s26 = scalar_lea.smem %s0, 13
  %s27 = sld [smem:[%s26]]
  %s28 = scalar_lea.smem %s0, 14
  %s29 = sld [smem:[%s28]]
  %s30 = scalar_lea.smem %s0, 15
  %s31 = sld [smem:[%s30]]
  %s32 = scalar_lea.smem %s0, 16
  %s33 = sld [smem:[%s32]]
  %s34 = scalar_lea.smem %s0, 17
  %s35 = sld [smem:[%s34]]
  %s36 = scalar_lea.smem %s0, 18
  %s37 = sld [smem:[%s36]]
  %s38 = scalar_lea.smem %s0, 19
  %s39 = sld [smem:[%s38]]
  %s40 = scalar_lea.smem %s0, 20
  %s41 = sld [smem:[%s40]]
  %s42 = scalar_lea.smem %s0, 21
  %s43 = sld [smem:[%s42]]
  %s44 = scalar_lea.smem %s0, 22
  %s45 = sld [smem:[%s44]]
  %s46 = scalar_lea.smem %s0, 23
  %s47 = sld [smem:[%s46]]
  %s48 = scalar_lea.smem %s0, 24
  %s49 = sld [smem:[%s48]]
  %s50 = scalar_lea.smem %s0, 25
  %s51 = sld [smem:[%s50]]
  %s52 = scalar_lea.smem %s0, 26
  %s53 = sld [smem:[%s52]]
  %s54 = scalar_lea.smem %s0, 27
  %s55 = sld [smem:[%s54]]
  %s56 = scalar_lea.smem %s0, 28
  %s57 = sld [smem:[%s56]]
  %s58 = scalar_lea.smem %s0, 29
  %s59 = sld [smem:[%s58]]
  %s60 = scalar_lea.smem %s0, 30
  %s61 = sld [smem:[%s60]]
  %s62 = scalar_lea.smem %s0, 31
  %s63 = sld [smem:[%s62]]
  %s64 = scalar_lea.smem %s0, 32
  %s65 = sld [smem:[%s64]]
  %s66 = scalar_lea.smem %s0, 33
  %s67 = sld [smem:[%s66]]
  %s68 = scalar_lea.smem %s0, 34
  %s69 = sld [smem:[%s68]]
  %s70 = scalar_lea.smem %s0, 35
  %s71 = sld [smem:[%s70]]
  %s72 = scalar_lea.smem %s0, 36
  %s73 = sld [smem:[%s72]]
  %s74 = scalar_lea.smem %s0, 37
  %s75 = sld [smem:[%s74]]
  %s76 = scalar_lea.smem %s0, 38
  %s77 = sld [smem:[%s76]]
  %s78 = scalar_lea.smem %s0, 39
  %s79 = sld [smem:[%s78]]
  %s80 = scalar_lea.smem %s0, 40
  %s81 = sld [smem:[%s80]]
  %s82 = scalar_lea.smem %s0, 41
  %s83 = sld [smem:[%s82]]
  %s84 = scalar_lea.smem %s0, 42
  %s85 = sld [smem:[%s84]]
  %s86 = scalar_lea.smem %s0, 43
  %s87 = sld [smem:[%s86]]
  %s88 = scalar_lea.smem %s0, 44
  %s89 = sld [smem:[%s88]]
  %s90 = scalar_lea.smem %s0, 45
  %s91 = sld [smem:[%s90]]
  %s92 = scalar_lea.smem %s0, 46
  %s93 = sld [smem:[%s92]]
  %94 = xla_tuple %s91, %s93
  %s95 = sld [smem:[#allocation0]]
  $region233: #{translation_model_forward.1} parent=0
    _
  %s97 = ssub.s32 1, %s95
  %s98 = scalar_select 0, %s97, %s95
  $region1: #{translation_model_forward.1} parent=0
    #allocation2 [shape = 'u8[512]{0}', space=vmem, size = 0x400, scoped, tag = 'input window, operand 41, single buffered']
    #allocation3 [shape = 's32[2]{0}', space=sflag, size = 0x8, scoped, tag = 'scoped memory for translation_model_forward.1']
    #allocation4 [shape = 's32[2]{0}', space=sflag, size = 0x8, scoped, tag = 'scoped memory for translation_model_forward.1']
    #allocation5 [shape = 'u8[512]{0}', space=vmem, size = 0x400, scoped, tag = 'input window, operand 42, single buffered']
    #allocation6 [shape = 's32[1]{0}', space=sflag, size = 0x4, scoped, tag = 'scoped memory for translation_model_forward.1']
    #allocation7 [shape = 'u8[512]{0}', space=vmem, size = 0x400, scoped, tag = 'input window, operand 44, single buffered']
    #allocation8 [shape = 'u8[8192]{0}', space=vmem, size = 0x2000, scoped, tag = 'output window, operand 1']
    %99 = vsyncpa [#allocation3], 0
    %100 = vsyncpa [#allocation6], 0
    %101 = vsyncpa [#allocation4], 0
    %s102 = scalar_lea.sflag [#allocation4], 1
    %103 = vsyncpa %s102, 0
    loop: start=0, step=1, limit=4
    $region2: #{translation_model_forward.1} parent=1 // loop_pre_header
      _
    $region3: #{translation_model_forward.1} parent=1 // loop_header
      %s105 = sphi 0, %s109
      %p106 = scmp.ge.s32.totalorder %s105, 4
      %s115 = sphi 0, %s117
      %s118 = sphi 0, %s115
      %s119 = sphi 0, %s118
      %s135 = sphi 0, %s119
      %s141 = sphi 0, %s143
      %s144 = sphi 0, %s141
      %s145 = sphi 0, %s144
      %s161 = sphi 0, %s145
      %s167 = sphi 0, %s169
      %s170 = sphi 0, %s167
      %s171 = sphi 0, %s170
      %s187 = sphi 0, %s171
      %s191 = sphi 0, %s191
      %s193 = sphi 0, %s191
      %s194 = sphi 0, %s193
      %s208 = sphi 0, %s194
      %s212 = sphi 0, %s212
      %s214 = sphi 0, %s212
      %s215 = sphi 0, %s214
      %s229 = sphi 0, %s215
      %s233 = sphi 0, %s233
      %s235 = sphi 0, %s233
      %s236 = sphi 0, %s235
      %s250 = sphi 0, %s236
      %s254 = sphi 0, %s254
      %s256 = sphi 0, %s254
      %s257 = sphi 0, %s256
      %s271 = sphi 0, %s257
      %s275 = sphi 0, %s275
      %s277 = sphi 0, %s275
      %s278 = sphi 0, %s277
      %s292 = sphi 0, %s278
      %s296 = sphi 0, %s296
      %s298 = sphi 0, %s296
      %s299 = sphi 0, %s298
      %s313 = sphi 0, %s299
      %s317 = sphi 0, %s317
      %s319 = sphi 0, %s317
      %s320 = sphi 0, %s319
      %s334 = sphi 0, %s320
      %s338 = sphi 0, %s338
      %s340 = sphi 0, %s338
      %s341 = sphi 0, %s340
      %s355 = sphi 0, %s341
      %s359 = sphi 0, %s359
      %s361 = sphi 0, %s359
      %s362 = sphi 0, %s361
      %s376 = sphi 0, %s362
      %s380 = sphi 0, %s380
      %s382 = sphi 0, %s380
      %s383 = sphi 0, %s382
      %s397 = sphi 0, %s383
      %s401 = sphi 0, %s401
      %s403 = sphi 0, %s401
      %s404 = sphi 0, %s403
      %s418 = sphi 0, %s404
      %s422 = sphi 0, %s422
      %s424 = sphi 0, %s422
      %s425 = sphi 0, %s424
      %s439 = sphi 0, %s425
      %s443 = sphi 0, %s443
      %s445 = sphi 0, %s443
      %s446 = sphi 0, %s445
      %s460 = sphi 0, %s446
      %s464 = sphi 0, %s464
      %s466 = sphi 0, %s464
      %s467 = sphi 0, %s466
      %s481 = sphi 0, %s467
      %s485 = sphi 0, %s485
      %s487 = sphi 0, %s485
      %s488 = sphi 0, %s487
      %s502 = sphi 0, %s488
      %s506 = sphi 0, %s506
      %s508 = sphi 0, %s506
      %s509 = sphi 0, %s508
      %s523 = sphi 0, %s509
      %s527 = sphi 0, %s527
      %s529 = sphi 0, %s527
      %s530 = sphi 0, %s529
      %s544 = sphi 0, %s530
      %s548 = sphi 0, %s548
      %s550 = sphi 0, %s548
      %s551 = sphi 0, %s550
      %s565 = sphi 0, %s551
      %s569 = sphi 0, %s569
      %s571 = sphi 0, %s569
      %s572 = sphi 0, %s571
      %s586 = sphi 0, %s572
      %s590 = sphi 0, %s590
      %s592 = sphi 0, %s590
      %s593 = sphi 0, %s592
      %s607 = sphi 0, %s593
      %s611 = sphi 0, %s611
      %s613 = sphi 0, %s611
      %s614 = sphi 0, %s613
      %s628 = sphi 0, %s614
      %s632 = sphi 0, %s632
      %s634 = sphi 0, %s632
      %s635 = sphi 0, %s634
      %s649 = sphi 0, %s635
      %s653 = sphi 0, %s653
      %s655 = sphi 0, %s653
      %s656 = sphi 0, %s655
      %s670 = sphi 0, %s656
      %s674 = sphi 0, %s674
      %s676 = sphi 0, %s674
      %s677 = sphi 0, %s676
      %s691 = sphi 0, %s677
      %s695 = sphi 0, %s695
      %s697 = sphi 0, %s695
      %s698 = sphi 0, %s697
      %s712 = sphi 0, %s698
      %s716 = sphi 0, %s716
      %s718 = sphi 0, %s716
      %s719 = sphi 0, %s718
      %s733 = sphi 0, %s719
      %s737 = sphi 0, %s737
      %s739 = sphi 0, %s737
      %s740 = sphi 0, %s739
      %s754 = sphi 0, %s740
      %s758 = sphi 0, %s758
      %s760 = sphi 0, %s758
      %s761 = sphi 0, %s760
      %s775 = sphi 0, %s761
      %s779 = sphi 0, %s779
      %s781 = sphi 0, %s779
      %s782 = sphi 0, %s781
      %s796 = sphi 0, %s782
      %s800 = sphi 0, %s800
      %s802 = sphi 0, %s800
      %s803 = sphi 0, %s802
      %s817 = sphi 0, %s803
      %s821 = sphi 0, %s821
      %s823 = sphi 0, %s821
      %s824 = sphi 0, %s823
      %s838 = sphi 0, %s824
      %s842 = sphi 0, %s842
      %s844 = sphi 0, %s842
      %s845 = sphi 0, %s844
      %s859 = sphi 0, %s845
      %s863 = sphi 0, %s863
      %s865 = sphi 0, %s863
      %s866 = sphi 0, %s865
      %s880 = sphi 0, %s866
      %s884 = sphi 0, %s884
      %s886 = sphi 0, %s884
      %s887 = sphi 0, %s886
      %s901 = sphi 0, %s887
      %s905 = sphi 0, %s905
      %s907 = sphi 0, %s905
      %s908 = sphi 0, %s907
      %s922 = sphi 0, %s908
      %s926 = sphi 0, %s926
      %s928 = sphi 0, %s926
      %s929 = sphi 0, %s928
      %s943 = sphi 0, %s929
      %s947 = sphi 0, %s947
      %s949 = sphi 0, %s947
      %s950 = sphi 0, %s949
      %s964 = sphi 0, %s950
      %s968 = sphi 0, %s968
      %s970 = sphi 0, %s968
      %s971 = sphi 0, %s970
      %s985 = sphi 0, %s971
      %s989 = sphi 0, %s989
      %s991 = sphi 0, %s989
      %s992 = sphi 0, %s991
      %s1006 = sphi 0, %s992
      %s1010 = sphi 0, %s1010
      %s1012 = sphi 0, %s1010
      %s1013 = sphi 0, %s1012
      %s1027 = sphi 0, %s1013
      %s1031 = sphi 0, %s1031
      %s1033 = sphi 0, %s1031
      %s1034 = sphi 0, %s1033
      %s1048 = sphi 0, %s1034
      %s1052 = sphi 0, %s1052
      %s1054 = sphi 0, %s1052
      %s1055 = sphi 0, %s1054
      %s1069 = sphi 0, %s1055
      %s1075 = sphi 0, %s1077
      %s1078 = sphi 0, %s1075
      %s1079 = sphi 0, %s1078
      %s1095 = sphi 0, %s1079
      %s1101 = sphi 0, %s1103
      %s1104 = sphi 0, %s1101
      %s1105 = sphi 0, %s1104
      %s1121 = sphi 0, %s1105
    $region4: #{translation_model_forward.1} parent=1 // loop_header_branch
      %108 = sbr.rel (%p106) target = $region8
    $region5: #{translation_model_forward.1} parent=1 // loop_body
      %s110 = ssub.s32 %s105, 1
      %s111 = ssub.s32 %s105, 2
      %s112 = sadd.s32 %s105, 1
      %s113 = ssub.s32 %s105, %s112
      %p114 = scmp.eq.s32.totalorder %s113, 0
      %s116 = sadd.s32 %s115, 1
      %s117 = scalar_select %p114, %s115, %s116
      %p120 = pneg %p114
      %p121 = scmp.eq.s32.totalorder %s105, 1
      %p122 = por %p120, %p121
      %p123 = scmp.ne.s32.totalorder %s115, %s118
      %p124 = scmp.eq.s32.totalorder %s105, 0
      %p125 = por %p123, %p124
      %p126 = scmp.ne.s32.totalorder %s115, %s118
      %p127 = scmp.eq.s32.totalorder %s110, 1
      %p128 = por %p126, %p127
      %p129 = scmp.ne.s32.totalorder %s118, %s119
      %p130 = scmp.eq.s32.totalorder %s110, 0
      %p131 = por %p129, %p130
      %p132 = scmp.ne.s32.totalorder %s118, %s119
      %p133 = scmp.eq.s32.totalorder %s111, 1
      %p134 = por %p132, %p133
      %p136 = scmp.ne.s32.totalorder %s119, %s135
      %p137 = scmp.eq.s32.totalorder %s111, 0
      %p138 = por %p136, %p137
      %s139 = ssub.s32 %s105, %s112
      %p140 = scmp.eq.s32.totalorder %s139, 0
      %s142 = sadd.s32 %s141, 1
      %s143 = scalar_select %p140, %s141, %s142
      %p146 = pneg %p140
      %p147 = scmp.eq.s32.totalorder %s105, 1
      %p148 = por %p146, %p147
      %p149 = scmp.ne.s32.totalorder %s141, %s144
      %p150 = scmp.eq.s32.totalorder %s105, 0
      %p151 = por %p149, %p150
      %p152 = scmp.ne.s32.totalorder %s141, %s144
      %p153 = scmp.eq.s32.totalorder %s110, 1
      %p154 = por %p152, %p153
      %p155 = scmp.ne.s32.totalorder %s144, %s145
      %p156 = scmp.eq.s32.totalorder %s110, 0
      %p157 = por %p155, %p156
      %p158 = scmp.ne.s32.totalorder %s144, %s145
      %p159 = scmp.eq.s32.totalorder %s111, 1
      %p160 = por %p158, %p159
      %p162 = scmp.ne.s32.totalorder %s145, %s161
      %p163 = scmp.eq.s32.totalorder %s111, 0
      %p164 = por %p162, %p163
      %s165 = ssub.s32 %s105, %s112
      %p166 = scmp.eq.s32.totalorder %s165, 0
      %s168 = sadd.s32 %s167, 1
      %s169 = scalar_select %p166, %s167, %s168
      %p172 = pneg %p166
      %p173 = scmp.eq.s32.totalorder %s105, 1
      %p174 = por %p172, %p173
      %p175 = scmp.ne.s32.totalorder %s167, %s170
      %p176 = scmp.eq.s32.totalorder %s105, 0
      %p177 = por %p175, %p176
      %p178 = scmp.ne.s32.totalorder %s167, %s170
      %p179 = scmp.eq.s32.totalorder %s110, 1
      %p180 = por %p178, %p179
      %p181 = scmp.ne.s32.totalorder %s170, %s171
      %p182 = scmp.eq.s32.totalorder %s110, 0
      %p183 = por %p181, %p182
      %p184 = scmp.ne.s32.totalorder %s170, %s171
      %p185 = scmp.eq.s32.totalorder %s111, 1
      %p186 = por %p184, %p185
      %p188 = scmp.ne.s32.totalorder %s171, %s187
      %p189 = scmp.eq.s32.totalorder %s111, 0
      %p190 = por %p188, %p189
      %s192 = sadd.s32 %s191, 1
      %p195 = scmp.eq.s32.totalorder %s105, 1
      %p196 = scmp.ne.s32.totalorder %s191, %s193
      %p197 = scmp.eq.s32.totalorder %s105, 0
      %p198 = por %p196, %p197
      %p199 = scmp.ne.s32.totalorder %s191, %s193
      %p200 = scmp.eq.s32.totalorder %s110, 1
      %p201 = por %p199, %p200
      %p202 = scmp.ne.s32.totalorder %s193, %s194
      %p203 = scmp.eq.s32.totalorder %s110, 0
      %p204 = por %p202, %p203
      %p205 = scmp.ne.s32.totalorder %s193, %s194
      %p206 = scmp.eq.s32.totalorder %s111, 1
      %p207 = por %p205, %p206
      %p209 = scmp.ne.s32.totalorder %s194, %s208
      %p210 = scmp.eq.s32.totalorder %s111, 0
      %p211 = por %p209, %p210
      %s213 = sadd.s32 %s212, 1
      %p216 = scmp.eq.s32.totalorder %s105, 1
      %p217 = scmp.ne.s32.totalorder %s212, %s214
      %p218 = scmp.eq.s32.totalorder %s105, 0
      %p219 = por %p217, %p218
      %p220 = scmp.ne.s32.totalorder %s212, %s214
      %p221 = scmp.eq.s32.totalorder %s110, 1
      %p222 = por %p220, %p221
      %p223 = scmp.ne.s32.totalorder %s214, %s215
      %p224 = scmp.eq.s32.totalorder %s110, 0
      %p225 = por %p223, %p224
      %p226 = scmp.ne.s32.totalorder %s214, %s215
      %p227 = scmp.eq.s32.totalorder %s111, 1
      %p228 = por %p226, %p227
      %p230 = scmp.ne.s32.totalorder %s215, %s229
      %p231 = scmp.eq.s32.totalorder %s111, 0
      %p232 = por %p230, %p231
      %s234 = sadd.s32 %s233, 1
      %p237 = scmp.eq.s32.totalorder %s105, 1
      %p238 = scmp.ne.s32.totalorder %s233, %s235
      %p239 = scmp.eq.s32.totalorder %s105, 0
      %p240 = por %p238, %p239
      %p241 = scmp.ne.s32.totalorder %s233, %s235
      %p242 = scmp.eq.s32.totalorder %s110, 1
      %p243 = por %p241, %p242
      %p244 = scmp.ne.s32.totalorder %s235, %s236
      %p245 = scmp.eq.s32.totalorder %s110, 0
      %p246 = por %p244, %p245
      %p247 = scmp.ne.s32.totalorder %s235, %s236
      %p248 = scmp.eq.s32.totalorder %s111, 1
      %p249 = por %p247, %p248
      %p251 = scmp.ne.s32.totalorder %s236, %s250
      %p252 = scmp.eq.s32.totalorder %s111, 0
      %p253 = por %p251, %p252
      %s255 = sadd.s32 %s254, 1
      %p258 = scmp.eq.s32.totalorder %s105, 1
      %p259 = scmp.ne.s32.totalorder %s254, %s256
      %p260 = scmp.eq.s32.totalorder %s105, 0
      %p261 = por %p259, %p260
      %p262 = scmp.ne.s32.totalorder %s254, %s256
      %p263 = scmp.eq.s32.totalorder %s110, 1
      %p264 = por %p262, %p263
      %p265 = scmp.ne.s32.totalorder %s256, %s257
      %p266 = scmp.eq.s32.totalorder %s110, 0
      %p267 = por %p265, %p266
      %p268 = scmp.ne.s32.totalorder %s256, %s257
      %p269 = scmp.eq.s32.totalorder %s111, 1
      %p270 = por %p268, %p269
      %p272 = scmp.ne.s32.totalorder %s257, %s271
      %p273 = scmp.eq.s32.totalorder %s111, 0
      %p274 = por %p272, %p273
      %s276 = sadd.s32 %s275, 1
      %p279 = scmp.eq.s32.totalorder %s105, 1
      %p280 = scmp.ne.s32.totalorder %s275, %s277
      %p281 = scmp.eq.s32.totalorder %s105, 0
      %p282 = por %p280, %p281
      %p283 = scmp.ne.s32.totalorder %s275, %s277
      %p284 = scmp.eq.s32.totalorder %s110, 1
      %p285 = por %p283, %p284
      %p286 = scmp.ne.s32.totalorder %s277, %s278
      %p287 = scmp.eq.s32.totalorder %s110, 0
      %p288 = por %p286, %p287
      %p289 = scmp.ne.s32.totalorder %s277, %s278
      %p290 = scmp.eq.s32.totalorder %s111, 1
      %p291 = por %p289, %p290
      %p293 = scmp.ne.s32.totalorder %s278, %s292
      %p294 = scmp.eq.s32.totalorder %s111, 0
      %p295 = por %p293, %p294
      %s297 = sadd.s32 %s296, 1
      %p300 = scmp.eq.s32.totalorder %s105, 1
      %p301 = scmp.ne.s32.totalorder %s296, %s298
      %p302 = scmp.eq.s32.totalorder %s105, 0
      %p303 = por %p301, %p302
      %p304 = scmp.ne.s32.totalorder %s296, %s298
      %p305 = scmp.eq.s32.totalorder %s110, 1
      %p306 = por %p304, %p305
      %p307 = scmp.ne.s32.totalorder %s298, %s299
      %p308 = scmp.eq.s32.totalorder %s110, 0
      %p309 = por %p307, %p308
      %p310 = scmp.ne.s32.totalorder %s298, %s299
      %p311 = scmp.eq.s32.totalorder %s111, 1
      %p312 = por %p310, %p311
      %p314 = scmp.ne.s32.totalorder %s299, %s313
      %p315 = scmp.eq.s32.totalorder %s111, 0
      %p316 = por %p314, %p315
      %s318 = sadd.s32 %s317, 1
      %p321 = scmp.eq.s32.totalorder %s105, 1
      %p322 = scmp.ne.s32.totalorder %s317, %s319
      %p323 = scmp.eq.s32.totalorder %s105, 0
      %p324 = por %p322, %p323
      %p325 = scmp.ne.s32.totalorder %s317, %s319
      %p326 = scmp.eq.s32.totalorder %s110, 1
      %p327 = por %p325, %p326
      %p328 = scmp.ne.s32.totalorder %s319, %s320
      %p329 = scmp.eq.s32.totalorder %s110, 0
      %p330 = por %p328, %p329
      %p331 = scmp.ne.s32.totalorder %s319, %s320
      %p332 = scmp.eq.s32.totalorder %s111, 1
      %p333 = por %p331, %p332
      %p335 = scmp.ne.s32.totalorder %s320, %s334
      %p336 = scmp.eq.s32.totalorder %s111, 0
      %p337 = por %p335, %p336
      %s339 = sadd.s32 %s338, 1
      %p342 = scmp.eq.s32.totalorder %s105, 1
      %p343 = scmp.ne.s32.totalorder %s338, %s340
      %p344 = scmp.eq.s32.totalorder %s105, 0
      %p345 = por %p343, %p344
      %p346 = scmp.ne.s32.totalorder %s338, %s340
      %p347 = scmp.eq.s32.totalorder %s110, 1
      %p348 = por %p346, %p347
      %p349 = scmp.ne.s32.totalorder %s340, %s341
      %p350 = scmp.eq.s32.totalorder %s110, 0
      %p351 = por %p349, %p350
      %p352 = scmp.ne.s32.totalorder %s340, %s341
      %p353 = scmp.eq.s32.totalorder %s111, 1
      %p354 = por %p352, %p353
      %p356 = scmp.ne.s32.totalorder %s341, %s355
      %p357 = scmp.eq.s32.totalorder %s111, 0
      %p358 = por %p356, %p357
      %s360 = sadd.s32 %s359, 1
      %p363 = scmp.eq.s32.totalorder %s105, 1
      %p364 = scmp.ne.s32.totalorder %s359, %s361
      %p365 = scmp.eq.s32.totalorder %s105, 0
      %p366 = por %p364, %p365
      %p367 = scmp.ne.s32.totalorder %s359, %s361
      %p368 = scmp.eq.s32.totalorder %s110, 1
      %p369 = por %p367, %p368
      %p370 = scmp.ne.s32.totalorder %s361, %s362
      %p371 = scmp.eq.s32.totalorder %s110, 0
      %p372 = por %p370, %p371
      %p373 = scmp.ne.s32.totalorder %s361, %s362
      %p374 = scmp.eq.s32.totalorder %s111, 1
      %p375 = por %p373, %p374
      %p377 = scmp.ne.s32.totalorder %s362, %s376
      %p378 = scmp.eq.s32.totalorder %s111, 0
      %p379 = por %p377, %p378
      %s381 = sadd.s32 %s380, 1
      %p384 = scmp.eq.s32.totalorder %s105, 1
      %p385 = scmp.ne.s32.totalorder %s380, %s382
      %p386 = scmp.eq.s32.totalorder %s105, 0
      %p387 = por %p385, %p386
      %p388 = scmp.ne.s32.totalorder %s380, %s382
      %p389 = scmp.eq.s32.totalorder %s110, 1
      %p390 = por %p388, %p389
      %p391 = scmp.ne.s32.totalorder %s382, %s383
      %p392 = scmp.eq.s32.totalorder %s110, 0
      %p393 = por %p391, %p392
      %p394 = scmp.ne.s32.totalorder %s382, %s383
      %p395 = scmp.eq.s32.totalorder %s111, 1
      %p396 = por %p394, %p395
      %p398 = scmp.ne.s32.totalorder %s383, %s397
      %p399 = scmp.eq.s32.totalorder %s111, 0
      %p400 = por %p398, %p399
      %s402 = sadd.s32 %s401, 1
      %p405 = scmp.eq.s32.totalorder %s105, 1
      %p406 = scmp.ne.s32.totalorder %s401, %s403
      %p407 = scmp.eq.s32.totalorder %s105, 0
      %p408 = por %p406, %p407
      %p409 = scmp.ne.s32.totalorder %s401, %s403
      %p410 = scmp.eq.s32.totalorder %s110, 1
      %p411 = por %p409, %p410
      %p412 = scmp.ne.s32.totalorder %s403, %s404
      %p413 = scmp.eq.s32.totalorder %s110, 0
      %p414 = por %p412, %p413
      %p415 = scmp.ne.s32.totalorder %s403, %s404
      %p416 = scmp.eq.s32.totalorder %s111, 1
      %p417 = por %p415, %p416
      %p419 = scmp.ne.s32.totalorder %s404, %s418
      %p420 = scmp.eq.s32.totalorder %s111, 0
      %p421 = por %p419, %p420
      %s423 = sadd.s32 %s422, 1
      %p426 = scmp.eq.s32.totalorder %s105, 1
      %p427 = scmp.ne.s32.totalorder %s422, %s424
      %p428 = scmp.eq.s32.totalorder %s105, 0
      %p429 = por %p427, %p428
      %p430 = scmp.ne.s32.totalorder %s422, %s424
      %p431 = scmp.eq.s32.totalorder %s110, 1
      %p432 = por %p430, %p431
      %p433 = scmp.ne.s32.totalorder %s424, %s425
      %p434 = scmp.eq.s32.totalorder %s110, 0
      %p435 = por %p433, %p434
      %p436 = scmp.ne.s32.totalorder %s424, %s425
      %p437 = scmp.eq.s32.totalorder %s111, 1
      %p438 = por %p436, %p437
      %p440 = scmp.ne.s32.totalorder %s425, %s439
      %p441 = scmp.eq.s32.totalorder %s111, 0
      %p442 = por %p440, %p441
      %s444 = sadd.s32 %s443, 1
      %p447 = scmp.eq.s32.totalorder %s105, 1
      %p448 = scmp.ne.s32.totalorder %s443, %s445
      %p449 = scmp.eq.s32.totalorder %s105, 0
      %p450 = por %p448, %p449
      %p451 = scmp.ne.s32.totalorder %s443, %s445
      %p452 = scmp.eq.s32.totalorder %s110, 1
      %p453 = por %p451, %p452
      %p454 = scmp.ne.s32.totalorder %s445, %s446
      %p455 = scmp.eq.s32.totalorder %s110, 0
      %p456 = por %p454, %p455
      %p457 = scmp.ne.s32.totalorder %s445, %s446
      %p458 = scmp.eq.s32.totalorder %s111, 1
      %p459 = por %p457, %p458
      %p461 = scmp.ne.s32.totalorder %s446, %s460
      %p462 = scmp.eq.s32.totalorder %s111, 0
      %p463 = por %p461, %p462
      %s465 = sadd.s32 %s464, 1
      %p468 = scmp.eq.s32.totalorder %s105, 1
      %p469 = scmp.ne.s32.totalorder %s464, %s466
      %p470 = scmp.eq.s32.totalorder %s105, 0
      %p471 = por %p469, %p470
      %p472 = scmp.ne.s32.totalorder %s464, %s466
      %p473 = scmp.eq.s32.totalorder %s110, 1
      %p474 = por %p472, %p473
      %p475 = scmp.ne.s32.totalorder %s466, %s467
      %p476 = scmp.eq.s32.totalorder %s110, 0
      %p477 = por %p475, %p476
      %p478 = scmp.ne.s32.totalorder %s466, %s467
      %p479 = scmp.eq.s32.totalorder %s111, 1
      %p480 = por %p478, %p479
      %p482 = scmp.ne.s32.totalorder %s467, %s481
      %p483 = scmp.eq.s32.totalorder %s111, 0
      %p484 = por %p482, %p483
      %s486 = sadd.s32 %s485, 1
      %p489 = scmp.eq.s32.totalorder %s105, 1
      %p490 = scmp.ne.s32.totalorder %s485, %s487
      %p491 = scmp.eq.s32.totalorder %s105, 0
      %p492 = por %p490, %p491
      %p493 = scmp.ne.s32.totalorder %s485, %s487
      %p494 = scmp.eq.s32.totalorder %s110, 1
      %p495 = por %p493, %p494
      %p496 = scmp.ne.s32.totalorder %s487, %s488
      %p497 = scmp.eq.s32.totalorder %s110, 0
      %p498 = por %p496, %p497
      %p499 = scmp.ne.s32.totalorder %s487, %s488
      %p500 = scmp.eq.s32.totalorder %s111, 1
      %p501 = por %p499, %p500
      %p503 = scmp.ne.s32.totalorder %s488, %s502
      %p504 = scmp.eq.s32.totalorder %s111, 0
      %p505 = por %p503, %p504
      %s507 = sadd.s32 %s506, 1
      %p510 = scmp.eq.s32.totalorder %s105, 1
      %p511 = scmp.ne.s32.totalorder %s506, %s508
      %p512 = scmp.eq.s32.totalorder %s105, 0
      %p513 = por %p511, %p512
      %p514 = scmp.ne.s32.totalorder %s506, %s508
      %p515 = scmp.eq.s32.totalorder %s110, 1
      %p516 = por %p514, %p515
      %p517 = scmp.ne.s32.totalorder %s508, %s509
      %p518 = scmp.eq.s32.totalorder %s110, 0
      %p519 = por %p517, %p518
      %p520 = scmp.ne.s32.totalorder %s508, %s509
      %p521 = scmp.eq.s32.totalorder %s111, 1
      %p522 = por %p520, %p521
      %p524 = scmp.ne.s32.totalorder %s509, %s523
      %p525 = scmp.eq.s32.totalorder %s111, 0
      %p526 = por %p524, %p525
      %s528 = sadd.s32 %s527, 1
      %p531 = scmp.eq.s32.totalorder %s105, 1
      %p532 = scmp.ne.s32.totalorder %s527, %s529
      %p533 = scmp.eq.s32.totalorder %s105, 0
      %p534 = por %p532, %p533
      %p535 = scmp.ne.s32.totalorder %s527, %s529
      %p536 = scmp.eq.s32.totalorder %s110, 1
      %p537 = por %p535, %p536
      %p538 = scmp.ne.s32.totalorder %s529, %s530
      %p539 = scmp.eq.s32.totalorder %s110, 0
      %p540 = por %p538, %p539
      %p541 = scmp.ne.s32.totalorder %s529, %s530
      %p542 = scmp.eq.s32.totalorder %s111, 1
      %p543 = por %p541, %p542
      %p545 = scmp.ne.s32.totalorder %s530, %s544
      %p546 = scmp.eq.s32.totalorder %s111, 0
      %p547 = por %p545, %p546
      %s549 = sadd.s32 %s548, 1
      %p552 = scmp.eq.s32.totalorder %s105, 1
      %p553 = scmp.ne.s32.totalorder %s548, %s550
      %p554 = scmp.eq.s32.totalorder %s105, 0
      %p555 = por %p553, %p554
      %p556 = scmp.ne.s32.totalorder %s548, %s550
      %p557 = scmp.eq.s32.totalorder %s110, 1
      %p558 = por %p556, %p557
      %p559 = scmp.ne.s32.totalorder %s550, %s551
      %p560 = scmp.eq.s32.totalorder %s110, 0
      %p561 = por %p559, %p560
      %p562 = scmp.ne.s32.totalorder %s550, %s551
      %p563 = scmp.eq.s32.totalorder %s111, 1
      %p564 = por %p562, %p563
      %p566 = scmp.ne.s32.totalorder %s551, %s565
      %p567 = scmp.eq.s32.totalorder %s111, 0
      %p568 = por %p566, %p567
      %s570 = sadd.s32 %s569, 1
      %p573 = scmp.eq.s32.totalorder %s105, 1
      %p574 = scmp.ne.s32.totalorder %s569, %s571
      %p575 = scmp.eq.s32.totalorder %s105, 0
      %p576 = por %p574, %p575
      %p577 = scmp.ne.s32.totalorder %s569, %s571
      %p578 = scmp.eq.s32.totalorder %s110, 1
      %p579 = por %p577, %p578
      %p580 = scmp.ne.s32.totalorder %s571, %s572
      %p581 = scmp.eq.s32.totalorder %s110, 0
      %p582 = por %p580, %p581
      %p583 = scmp.ne.s32.totalorder %s571, %s572
      %p584 = scmp.eq.s32.totalorder %s111, 1
      %p585 = por %p583, %p584
      %p587 = scmp.ne.s32.totalorder %s572, %s586
      %p588 = scmp.eq.s32.totalorder %s111, 0
      %p589 = por %p587, %p588
      %s591 = sadd.s32 %s590, 1
      %p594 = scmp.eq.s32.totalorder %s105, 1
      %p595 = scmp.ne.s32.totalorder %s590, %s592
      %p596 = scmp.eq.s32.totalorder %s105, 0
      %p597 = por %p595, %p596
      %p598 = scmp.ne.s32.totalorder %s590, %s592
      %p599 = scmp.eq.s32.totalorder %s110, 1
      %p600 = por %p598, %p599
      %p601 = scmp.ne.s32.totalorder %s592, %s593
      %p602 = scmp.eq.s32.totalorder %s110, 0
      %p603 = por %p601, %p602
      %p604 = scmp.ne.s32.totalorder %s592, %s593
      %p605 = scmp.eq.s32.totalorder %s111, 1
      %p606 = por %p604, %p605
      %p608 = scmp.ne.s32.totalorder %s593, %s607
      %p609 = scmp.eq.s32.totalorder %s111, 0
      %p610 = por %p608, %p609
      %s612 = sadd.s32 %s611, 1
      %p615 = scmp.eq.s32.totalorder %s105, 1
      %p616 = scmp.ne.s32.totalorder %s611, %s613
      %p617 = scmp.eq.s32.totalorder %s105, 0
      %p618 = por %p616, %p617
      %p619 = scmp.ne.s32.totalorder %s611, %s613
      %p620 = scmp.eq.s32.totalorder %s110, 1
      %p621 = por %p619, %p620
      %p622 = scmp.ne.s32.totalorder %s613, %s614
      %p623 = scmp.eq.s32.totalorder %s110, 0
      %p624 = por %p622, %p623
      %p625 = scmp.ne.s32.totalorder %s613, %s614
      %p626 = scmp.eq.s32.totalorder %s111, 1
      %p627 = por %p625, %p626
      %p629 = scmp.ne.s32.totalorder %s614, %s628
      %p630 = scmp.eq.s32.totalorder %s111, 0
      %p631 = por %p629, %p630
      %s633 = sadd.s32 %s632, 1
      %p636 = scmp.eq.s32.totalorder %s105, 1
      %p637 = scmp.ne.s32.totalorder %s632, %s634
      %p638 = scmp.eq.s32.totalorder %s105, 0
      %p639 = por %p637, %p638
      %p640 = scmp.ne.s32.totalorder %s632, %s634
      %p641 = scmp.eq.s32.totalorder %s110, 1
      %p642 = por %p640, %p641
      %p643 = scmp.ne.s32.totalorder %s634, %s635
      %p644 = scmp.eq.s32.totalorder %s110, 0
      %p645 = por %p643, %p644
      %p646 = scmp.ne.s32.totalorder %s634, %s635
      %p647 = scmp.eq.s32.totalorder %s111, 1
      %p648 = por %p646, %p647
      %p650 = scmp.ne.s32.totalorder %s635, %s649
      %p651 = scmp.eq.s32.totalorder %s111, 0
      %p652 = por %p650, %p651
      %s654 = sadd.s32 %s653, 1
      %p657 = scmp.eq.s32.totalorder %s105, 1
      %p658 = scmp.ne.s32.totalorder %s653, %s655
      %p659 = scmp.eq.s32.totalorder %s105, 0
      %p660 = por %p658, %p659
      %p661 = scmp.ne.s32.totalorder %s653, %s655
      %p662 = scmp.eq.s32.totalorder %s110, 1
      %p663 = por %p661, %p662
      %p664 = scmp.ne.s32.totalorder %s655, %s656
      %p665 = scmp.eq.s32.totalorder %s110, 0
      %p666 = por %p664, %p665
      %p667 = scmp.ne.s32.totalorder %s655, %s656
      %p668 = scmp.eq.s32.totalorder %s111, 1
      %p669 = por %p667, %p668
      %p671 = scmp.ne.s32.totalorder %s656, %s670
      %p672 = scmp.eq.s32.totalorder %s111, 0
      %p673 = por %p671, %p672
      %s675 = sadd.s32 %s674, 1
      %p678 = scmp.eq.s32.totalorder %s105, 1
      %p679 = scmp.ne.s32.totalorder %s674, %s676
      %p680 = scmp.eq.s32.totalorder %s105, 0
      %p681 = por %p679, %p680
      %p682 = scmp.ne.s32.totalorder %s674, %s676
      %p683 = scmp.eq.s32.totalorder %s110, 1
      %p684 = por %p682, %p683
      %p685 = scmp.ne.s32.totalorder %s676, %s677
      %p686 = scmp.eq.s32.totalorder %s110, 0
      %p687 = por %p685, %p686
      %p688 = scmp.ne.s32.totalorder %s676, %s677
      %p689 = scmp.eq.s32.totalorder %s111, 1
      %p690 = por %p688, %p689
      %p692 = scmp.ne.s32.totalorder %s677, %s691
      %p693 = scmp.eq.s32.totalorder %s111, 0
      %p694 = por %p692, %p693
      %s696 = sadd.s32 %s695, 1
      %p699 = scmp.eq.s32.totalorder %s105, 1
      %p700 = scmp.ne.s32.totalorder %s695, %s697
      %p701 = scmp.eq.s32.totalorder %s105, 0
      %p702 = por %p700, %p701
      %p703 = scmp.ne.s32.totalorder %s695, %s697
      %p704 = scmp.eq.s32.totalorder %s110, 1
      %p705 = por %p703, %p704
      %p706 = scmp.ne.s32.totalorder %s697, %s698
      %p707 = scmp.eq.s32.totalorder %s110, 0
      %p708 = por %p706, %p707
      %p709 = scmp.ne.s32.totalorder %s697, %s698
      %p710 = scmp.eq.s32.totalorder %s111, 1
      %p711 = por %p709, %p710
      %p713 = scmp.ne.s32.totalorder %s698, %s712
      %p714 = scmp.eq.s32.totalorder %s111, 0
      %p715 = por %p713, %p714
      %s717 = sadd.s32 %s716, 1
      %p720 = scmp.eq.s32.totalorder %s105, 1
      %p721 = scmp.ne.s32.totalorder %s716, %s718
      %p722 = scmp.eq.s32.totalorder %s105, 0
      %p723 = por %p721, %p722
      %p724 = scmp.ne.s32.totalorder %s716, %s718
      %p725 = scmp.eq.s32.totalorder %s110, 1
      %p726 = por %p724, %p725
      %p727 = scmp.ne.s32.totalorder %s718, %s719
      %p728 = scmp.eq.s32.totalorder %s110, 0
      %p729 = por %p727, %p728
      %p730 = scmp.ne.s32.totalorder %s718, %s719
      %p731 = scmp.eq.s32.totalorder %s111, 1
      %p732 = por %p730, %p731
      %p734 = scmp.ne.s32.totalorder %s719, %s733
      %p735 = scmp.eq.s32.totalorder %s111, 0
      %p736 = por %p734, %p735
      %s738 = sadd.s32 %s737, 1
      %p741 = scmp.eq.s32.totalorder %s105, 1
      %p742 = scmp.ne.s32.totalorder %s737, %s739
      %p743 = scmp.eq.s32.totalorder %s105, 0
      %p744 = por %p742, %p743
      %p745 = scmp.ne.s32.totalorder %s737, %s739
      %p746 = scmp.eq.s32.totalorder %s110, 1
      %p747 = por %p745, %p746
      %p748 = scmp.ne.s32.totalorder %s739, %s740
      %p749 = scmp.eq.s32.totalorder %s110, 0
      %p750 = por %p748, %p749
      %p751 = scmp.ne.s32.totalorder %s739, %s740
      %p752 = scmp.eq.s32.totalorder %s111, 1
      %p753 = por %p751, %p752
      %p755 = scmp.ne.s32.totalorder %s740, %s754
      %p756 = scmp.eq.s32.totalorder %s111, 0
      %p757 = por %p755, %p756
      %s759 = sadd.s32 %s758, 1
      %p762 = scmp.eq.s32.totalorder %s105, 1
      %p763 = scmp.ne.s32.totalorder %s758, %s760
      %p764 = scmp.eq.s32.totalorder %s105, 0
      %p765 = por %p763, %p764
      %p766 = scmp.ne.s32.totalorder %s758, %s760
      %p767 = scmp.eq.s32.totalorder %s110, 1
      %p768 = por %p766, %p767
      %p769 = scmp.ne.s32.totalorder %s760, %s761
      %p770 = scmp.eq.s32.totalorder %s110, 0
      %p771 = por %p769, %p770
      %p772 = scmp.ne.s32.totalorder %s760, %s761
      %p773 = scmp.eq.s32.totalorder %s111, 1
      %p774 = por %p772, %p773
      %p776 = scmp.ne.s32.totalorder %s761, %s775
      %p777 = scmp.eq.s32.totalorder %s111, 0
      %p778 = por %p776, %p777
      %s780 = sadd.s32 %s779, 1
      %p783 = scmp.eq.s32.totalorder %s105, 1
      %p784 = scmp.ne.s32.totalorder %s779, %s781
      %p785 = scmp.eq.s32.totalorder %s105, 0
      %p786 = por %p784, %p785
      %p787 = scmp.ne.s32.totalorder %s779, %s781
      %p788 = scmp.eq.s32.totalorder %s110, 1
      %p789 = por %p787, %p788
      %p790 = scmp.ne.s32.totalorder %s781, %s782
      %p791 = scmp.eq.s32.totalorder %s110, 0
      %p792 = por %p790, %p791
      %p793 = scmp.ne.s32.totalorder %s781, %s782
      %p794 = scmp.eq.s32.totalorder %s111, 1
      %p795 = por %p793, %p794
      %p797 = scmp.ne.s32.totalorder %s782, %s796
      %p798 = scmp.eq.s32.totalorder %s111, 0
      %p799 = por %p797, %p798
      %s801 = sadd.s32 %s800, 1
      %p804 = scmp.eq.s32.totalorder %s105, 1
      %p805 = scmp.ne.s32.totalorder %s800, %s802
      %p806 = scmp.eq.s32.totalorder %s105, 0
      %p807 = por %p805, %p806
      %p808 = scmp.ne.s32.totalorder %s800, %s802
      %p809 = scmp.eq.s32.totalorder %s110, 1
      %p810 = por %p808, %p809
      %p811 = scmp.ne.s32.totalorder %s802, %s803
      %p812 = scmp.eq.s32.totalorder %s110, 0
      %p813 = por %p811, %p812
      %p814 = scmp.ne.s32.totalorder %s802, %s803
      %p815 = scmp.eq.s32.totalorder %s111, 1
      %p816 = por %p814, %p815
      %p818 = scmp.ne.s32.totalorder %s803, %s817
      %p819 = scmp.eq.s32.totalorder %s111, 0
      %p820 = por %p818, %p819
      %s822 = sadd.s32 %s821, 1
      %p825 = scmp.eq.s32.totalorder %s105, 1
      %p826 = scmp.ne.s32.totalorder %s821, %s823
      %p827 = scmp.eq.s32.totalorder %s105, 0
      %p828 = por %p826, %p827
      %p829 = scmp.ne.s32.totalorder %s821, %s823
      %p830 = scmp.eq.s32.totalorder %s110, 1
      %p831 = por %p829, %p830
      %p832 = scmp.ne.s32.totalorder %s823, %s824
      %p833 = scmp.eq.s32.totalorder %s110, 0
      %p834 = por %p832, %p833
      %p835 = scmp.ne.s32.totalorder %s823, %s824
      %p836 = scmp.eq.s32.totalorder %s111, 1
      %p837 = por %p835, %p836
      %p839 = scmp.ne.s32.totalorder %s824, %s838
      %p840 = scmp.eq.s32.totalorder %s111, 0
      %p841 = por %p839, %p840
      %s843 = sadd.s32 %s842, 1
      %p846 = scmp.eq.s32.totalorder %s105, 1
      %p847 = scmp.ne.s32.totalorder %s842, %s844
      %p848 = scmp.eq.s32.totalorder %s105, 0
      %p849 = por %p847, %p848
      %p850 = scmp.ne.s32.totalorder %s842, %s844
      %p851 = scmp.eq.s32.totalorder %s110, 1
      %p852 = por %p850, %p851
      %p853 = scmp.ne.s32.totalorder %s844, %s845
      %p854 = scmp.eq.s32.totalorder %s110, 0
      %p855 = por %p853, %p854
      %p856 = scmp.ne.s32.totalorder %s844, %s845
      %p857 = scmp.eq.s32.totalorder %s111, 1
      %p858 = por %p856, %p857
      %p860 = scmp.ne.s32.totalorder %s845, %s859
      %p861 = scmp.eq.s32.totalorder %s111, 0
      %p862 = por %p860, %p861
      %s864 = sadd.s32 %s863, 1
      %p867 = scmp.eq.s32.totalorder %s105, 1
      %p868 = scmp.ne.s32.totalorder %s863, %s865
      %p869 = scmp.eq.s32.totalorder %s105, 0
      %p870 = por %p868, %p869
      %p871 = scmp.ne.s32.totalorder %s863, %s865
      %p872 = scmp.eq.s32.totalorder %s110, 1
      %p873 = por %p871, %p872
      %p874 = scmp.ne.s32.totalorder %s865, %s866
      %p875 = scmp.eq.s32.totalorder %s110, 0
      %p876 = por %p874, %p875
      %p877 = scmp.ne.s32.totalorder %s865, %s866
      %p878 = scmp.eq.s32.totalorder %s111, 1
      %p879 = por %p877, %p878
      %p881 = scmp.ne.s32.totalorder %s866, %s880
      %p882 = scmp.eq.s32.totalorder %s111, 0
      %p883 = por %p881, %p882
      %s885 = sadd.s32 %s884, 1
      %p888 = scmp.eq.s32.totalorder %s105, 1
      %p889 = scmp.ne.s32.totalorder %s884, %s886
      %p890 = scmp.eq.s32.totalorder %s105, 0
      %p891 = por %p889, %p890
      %p892 = scmp.ne.s32.totalorder %s884, %s886
      %p893 = scmp.eq.s32.totalorder %s110, 1
      %p894 = por %p892, %p893
      %p895 = scmp.ne.s32.totalorder %s886, %s887
      %p896 = scmp.eq.s32.totalorder %s110, 0
      %p897 = por %p895, %p896
      %p898 = scmp.ne.s32.totalorder %s886, %s887
      %p899 = scmp.eq.s32.totalorder %s111, 1
      %p900 = por %p898, %p899
      %p902 = scmp.ne.s32.totalorder %s887, %s901
      %p903 = scmp.eq.s32.totalorder %s111, 0
      %p904 = por %p902, %p903
      %s906 = sadd.s32 %s905, 1
      %p909 = scmp.eq.s32.totalorder %s105, 1
      %p910 = scmp.ne.s32.totalorder %s905, %s907
      %p911 = scmp.eq.s32.totalorder %s105, 0
      %p912 = por %p910, %p911
      %p913 = scmp.ne.s32.totalorder %s905, %s907
      %p914 = scmp.eq.s32.totalorder %s110, 1
      %p915 = por %p913, %p914
      %p916 = scmp.ne.s32.totalorder %s907, %s908
      %p917 = scmp.eq.s32.totalorder %s110, 0
      %p918 = por %p916, %p917
      %p919 = scmp.ne.s32.totalorder %s907, %s908
      %p920 = scmp.eq.s32.totalorder %s111, 1
      %p921 = por %p919, %p920
      %p923 = scmp.ne.s32.totalorder %s908, %s922
      %p924 = scmp.eq.s32.totalorder %s111, 0
      %p925 = por %p923, %p924
      %s927 = sadd.s32 %s926, 1
      %p930 = scmp.eq.s32.totalorder %s105, 1
      %p931 = scmp.ne.s32.totalorder %s926, %s928
      %p932 = scmp.eq.s32.totalorder %s105, 0
      %p933 = por %p931, %p932
      %p934 = scmp.ne.s32.totalorder %s926, %s928
      %p935 = scmp.eq.s32.totalorder %s110, 1
      %p936 = por %p934, %p935
      %p937 = scmp.ne.s32.totalorder %s928, %s929
      %p938 = scmp.eq.s32.totalorder %s110, 0
      %p939 = por %p937, %p938
      %p940 = scmp.ne.s32.totalorder %s928, %s929
      %p941 = scmp.eq.s32.totalorder %s111, 1
      %p942 = por %p940, %p941
      %p944 = scmp.ne.s32.totalorder %s929, %s943
      %p945 = scmp.eq.s32.totalorder %s111, 0
      %p946 = por %p944, %p945
      %s948 = sadd.s32 %s947, 1
      %p951 = scmp.eq.s32.totalorder %s105, 1
      %p952 = scmp.ne.s32.totalorder %s947, %s949
      %p953 = scmp.eq.s32.totalorder %s105, 0
      %p954 = por %p952, %p953
      %p955 = scmp.ne.s32.totalorder %s947, %s949
      %p956 = scmp.eq.s32.totalorder %s110, 1
      %p957 = por %p955, %p956
      %p958 = scmp.ne.s32.totalorder %s949, %s950
      %p959 = scmp.eq.s32.totalorder %s110, 0
      %p960 = por %p958, %p959
      %p961 = scmp.ne.s32.totalorder %s949, %s950
      %p962 = scmp.eq.s32.totalorder %s111, 1
      %p963 = por %p961, %p962
      %p965 = scmp.ne.s32.totalorder %s950, %s964
      %p966 = scmp.eq.s32.totalorder %s111, 0
      %p967 = por %p965, %p966
      %s969 = sadd.s32 %s968, 1
      %p972 = scmp.eq.s32.totalorder %s105, 1
      %p973 = scmp.ne.s32.totalorder %s968, %s970
      %p974 = scmp.eq.s32.totalorder %s105, 0
      %p975 = por %p973, %p974
      %p976 = scmp.ne.s32.totalorder %s968, %s970
      %p977 = scmp.eq.s32.totalorder %s110, 1
      %p978 = por %p976, %p977
      %p979 = scmp.ne.s32.totalorder %s970, %s971
      %p980 = scmp.eq.s32.totalorder %s110, 0
      %p981 = por %p979, %p980
      %p982 = scmp.ne.s32.totalorder %s970, %s971
      %p983 = scmp.eq.s32.totalorder %s111, 1
      %p984 = por %p982, %p983
      %p986 = scmp.ne.s32.totalorder %s971, %s985
      %p987 = scmp.eq.s32.totalorder %s111, 0
      %p988 = por %p986, %p987
      %s990 = sadd.s32 %s989, 1
      %p993 = scmp.eq.s32.totalorder %s105, 1
      %p994 = scmp.ne.s32.totalorder %s989, %s991
      %p995 = scmp.eq.s32.totalorder %s105, 0
      %p996 = por %p994, %p995
      %p997 = scmp.ne.s32.totalorder %s989, %s991
      %p998 = scmp.eq.s32.totalorder %s110, 1
      %p999 = por %p997, %p998
      %p1000 = scmp.ne.s32.totalorder %s991, %s992
      %p1001 = scmp.eq.s32.totalorder %s110, 0
      %p1002 = por %p1000, %p1001
      %p1003 = scmp.ne.s32.totalorder %s991, %s992
      %p1004 = scmp.eq.s32.totalorder %s111, 1
      %p1005 = por %p1003, %p1004
      %p1007 = scmp.ne.s32.totalorder %s992, %s1006
      %p1008 = scmp.eq.s32.totalorder %s111, 0
      %p1009 = por %p1007, %p1008
      %s1011 = sadd.s32 %s1010, 1
      %p1014 = scmp.eq.s32.totalorder %s105, 1
      %p1015 = scmp.ne.s32.totalorder %s1010, %s1012
      %p1016 = scmp.eq.s32.totalorder %s105, 0
      %p1017 = por %p1015, %p1016
      %p1018 = scmp.ne.s32.totalorder %s1010, %s1012
      %p1019 = scmp.eq.s32.totalorder %s110, 1
      %p1020 = por %p1018, %p1019
      %p1021 = scmp.ne.s32.totalorder %s1012, %s1013
      %p1022 = scmp.eq.s32.totalorder %s110, 0
      %p1023 = por %p1021, %p1022
      %p1024 = scmp.ne.s32.totalorder %s1012, %s1013
      %p1025 = scmp.eq.s32.totalorder %s111, 1
      %p1026 = por %p1024, %p1025
      %p1028 = scmp.ne.s32.totalorder %s1013, %s1027
      %p1029 = scmp.eq.s32.totalorder %s111, 0
      %p1030 = por %p1028, %p1029
      %s1032 = sadd.s32 %s1031, 1
      %p1035 = scmp.eq.s32.totalorder %s105, 1
      %p1036 = scmp.ne.s32.totalorder %s1031, %s1033
      %p1037 = scmp.eq.s32.totalorder %s105, 0
      %p1038 = por %p1036, %p1037
      %p1039 = scmp.ne.s32.totalorder %s1031, %s1033
      %p1040 = scmp.eq.s32.totalorder %s110, 1
      %p1041 = por %p1039, %p1040
      %p1042 = scmp.ne.s32.totalorder %s1033, %s1034
      %p1043 = scmp.eq.s32.totalorder %s110, 0
      %p1044 = por %p1042, %p1043
      %p1045 = scmp.ne.s32.totalorder %s1033, %s1034
      %p1046 = scmp.eq.s32.totalorder %s111, 1
      %p1047 = por %p1045, %p1046
      %p1049 = scmp.ne.s32.totalorder %s1034, %s1048
      %p1050 = scmp.eq.s32.totalorder %s111, 0
      %p1051 = por %p1049, %p1050
      %s1053 = sadd.s32 %s1052, 1
      %p1056 = scmp.eq.s32.totalorder %s105, 1
      %p1057 = scmp.ne.s32.totalorder %s1052, %s1054
      %p1058 = scmp.eq.s32.totalorder %s105, 0
      %p1059 = por %p1057, %p1058
      %p1060 = scmp.ne.s32.totalorder %s1052, %s1054
      %p1061 = scmp.eq.s32.totalorder %s110, 1
      %p1062 = por %p1060, %p1061
      %p1063 = scmp.ne.s32.totalorder %s1054, %s1055
      %p1064 = scmp.eq.s32.totalorder %s110, 0
      %p1065 = por %p1063, %p1064
      %p1066 = scmp.ne.s32.totalorder %s1054, %s1055
      %p1067 = scmp.eq.s32.totalorder %s111, 1
      %p1068 = por %p1066, %p1067
      %p1070 = scmp.ne.s32.totalorder %s1055, %s1069
      %p1071 = scmp.eq.s32.totalorder %s111, 0
      %p1072 = por %p1070, %p1071
      %s1073 = ssub.s32 %s105, %s112
      %p1074 = scmp.eq.s32.totalorder %s1073, 0
      %s1076 = sadd.s32 %s1075, 1
      %s1077 = scalar_select %p1074, %s1075, %s1076
      %p1080 = pneg %p1074
      %p1081 = scmp.eq.s32.totalorder %s105, 1
      %p1082 = por %p1080, %p1081
      %p1083 = scmp.ne.s32.totalorder %s1075, %s1078
      %p1084 = scmp.eq.s32.totalorder %s105, 0
      %p1085 = por %p1083, %p1084
      %p1086 = scmp.ne.s32.totalorder %s1075, %s1078
      %p1087 = scmp.eq.s32.totalorder %s110, 1
      %p1088 = por %p1086, %p1087
      %p1089 = scmp.ne.s32.totalorder %s1078, %s1079
      %p1090 = scmp.eq.s32.totalorder %s110, 0
      %p1091 = por %p1089, %p1090
      %p1092 = scmp.ne.s32.totalorder %s1078, %s1079
      %p1093 = scmp.eq.s32.totalorder %s111, 1
      %p1094 = por %p1092, %p1093
      %p1096 = scmp.ne.s32.totalorder %s1079, %s1095
      %p1097 = scmp.eq.s32.totalorder %s111, 0
      %p1098 = por %p1096, %p1097
      %s1099 = ssub.s32 %s105, %s112
      %p1100 = scmp.eq.s32.totalorder %s1099, 0
      %s1102 = sadd.s32 %s1101, 1
      %s1103 = scalar_select %p1100, %s1101, %s1102
      %p1106 = pneg %p1100
      %p1107 = scmp.eq.s32.totalorder %s105, 1
      %p1108 = por %p1106, %p1107
      %p1109 = scmp.ne.s32.totalorder %s1101, %s1104
      %p1110 = scmp.eq.s32.totalorder %s105, 0
      %p1111 = por %p1109, %p1110
      %p1112 = scmp.ne.s32.totalorder %s1101, %s1104
      %p1113 = scmp.eq.s32.totalorder %s110, 1
      %p1114 = por %p1112, %p1113
      %p1115 = scmp.ne.s32.totalorder %s1104, %s1105
      %p1116 = scmp.eq.s32.totalorder %s110, 0
      %p1117 = por %p1115, %p1116
      %p1118 = scmp.ne.s32.totalorder %s1104, %s1105
      %p1119 = scmp.eq.s32.totalorder %s111, 1
      %p1120 = por %p1118, %p1119
      %p1122 = scmp.ne.s32.totalorder %s1105, %s1121
      %p1123 = scmp.eq.s32.totalorder %s111, 0
      %p1124 = por %p1122, %p1123
      %p1125 = scmp.le.s32.totalorder 1, %s105
      %p1126 = scmp.lt.s32.totalorder %s105, 3
      %p1127 = pnand %p1125, %p1126
      %p1128 = pneg %p1127
      // Predicated region
      $region9: #{translation_model_forward.1} parent=5 // pred_check
        _
      $region10: #{translation_model_forward.1} parent=5 // pred_check_branch
        %1130 = sbr.rel (%p1127) target = $region12
      $region11: #{translation_model_forward.1} parent=5 // pred_region
        %s1131 = ssub.s32 %s105, 1
        // Predicated region
        $region13: #{translation_model_forward.1} parent=11 // pred_check
          %p1132 = pneg %p204
        $region14: #{translation_model_forward.1} parent=11 // pred_check_branch
          %1134 = sbr.rel (%p1132) target = $region16
        $region15: #{translation_model_forward.1} parent=11 // pred_region
          _
        $region16: #{translation_model_forward.1} parent=11 // pred_fallthru
          _
        // Predicated region
        $region17: #{translation_model_forward.1} parent=11 // pred_check
          %p1135 = pneg %p225
        $region18: #{translation_model_forward.1} parent=11 // pred_check_branch
          %1137 = sbr.rel (%p1135) target = $region20
        $region19: #{translation_model_forward.1} parent=11 // pred_region
          _
        $region20: #{translation_model_forward.1} parent=11 // pred_fallthru
          _
        // Predicated region
        $region21: #{translation_model_forward.1} parent=11 // pred_check
          %p1138 = pneg %p246
        $region22: #{translation_model_forward.1} parent=11 // pred_check_branch
          %1140 = sbr.rel (%p1138) target = $region24
        $region23: #{translation_model_forward.1} parent=11 // pred_region
          _
        $region24: #{translation_model_forward.1} parent=11 // pred_fallthru
          _
        // Predicated region
        $region25: #{translation_model_forward.1} parent=11 // pred_check
          %p1141 = pneg %p267
        $region26: #{translation_model_forward.1} parent=11 // pred_check_branch
          %1143 = sbr.rel (%p1141) target = $region28
        $region27: #{translation_model_forward.1} parent=11 // pred_region
          _
        $region28: #{translation_model_forward.1} parent=11 // pred_fallthru
          _
        // Predicated region
        $region29: #{translation_model_forward.1} parent=11 // pred_check
          %p1144 = pneg %p288
        $region30: #{translation_model_forward.1} parent=11 // pred_check_branch
          %1146 = sbr.rel (%p1144) target = $region32
        $region31: #{translation_model_forward.1} parent=11 // pred_region
          _
        $region32: #{translation_model_forward.1} parent=11 // pred_fallthru
          _
        // Predicated region
        $region33: #{translation_model_forward.1} parent=11 // pred_check
          %p1147 = pneg %p309
        $region34: #{translation_model_forward.1} parent=11 // pred_check_branch
          %1149 = sbr.rel (%p1147) target = $region36
        $region35: #{translation_model_forward.1} parent=11 // pred_region
          _
        $region36: #{translation_model_forward.1} parent=11 // pred_fallthru
          _
        // Predicated region
        $region37: #{translation_model_forward.1} parent=11 // pred_check
          %p1150 = pneg %p330
        $region38: #{translation_model_forward.1} parent=11 // pred_check_branch
          %1152 = sbr.rel (%p1150) target = $region40
        $region39: #{translation_model_forward.1} parent=11 // pred_region
          _
        $region40: #{translation_model_forward.1} parent=11 // pred_fallthru
          _
        // Predicated region
        $region41: #{translation_model_forward.1} parent=11 // pred_check
          %p1153 = pneg %p351
        $region42: #{translation_model_forward.1} parent=11 // pred_check_branch
          %1155 = sbr.rel (%p1153) target = $region44
        $region43: #{translation_model_forward.1} parent=11 // pred_region
          _
        $region44: #{translation_model_forward.1} parent=11 // pred_fallthru
          _
        // Predicated region
        $region45: #{translation_model_forward.1} parent=11 // pred_check
          %p1156 = pneg %p372
        $region46: #{translation_model_forward.1} parent=11 // pred_check_branch
          %1158 = sbr.rel (%p1156) target = $region48
        $region47: #{translation_model_forward.1} parent=11 // pred_region
          _
        $region48: #{translation_model_forward.1} parent=11 // pred_fallthru
          _
        // Predicated region
        $region49: #{translation_model_forward.1} parent=11 // pred_check
          %p1159 = pneg %p393
        $region50: #{translation_model_forward.1} parent=11 // pred_check_branch
          %1161 = sbr.rel (%p1159) target = $region52
        $region51: #{translation_model_forward.1} parent=11 // pred_region
          _
        $region52: #{translation_model_forward.1} parent=11 // pred_fallthru
          _
        // Predicated region
        $region53: #{translation_model_forward.1} parent=11 // pred_check
          %p1162 = pneg %p414
        $region54: #{translation_model_forward.1} parent=11 // pred_check_branch
          %1164 = sbr.rel (%p1162) target = $region56
        $region55: #{translation_model_forward.1} parent=11 // pred_region
          _
        $region56: #{translation_model_forward.1} parent=11 // pred_fallthru
          _
        // Predicated region
        $region57: #{translation_model_forward.1} parent=11 // pred_check
          %p1165 = pneg %p435
        $region58: #{translation_model_forward.1} parent=11 // pred_check_branch
          %1167 = sbr.rel (%p1165) target = $region60
        $region59: #{translation_model_forward.1} parent=11 // pred_region
          _
        $region60: #{translation_model_forward.1} parent=11 // pred_fallthru
          _
        // Predicated region
        $region61: #{translation_model_forward.1} parent=11 // pred_check
          %p1168 = pneg %p456
        $region62: #{translation_model_forward.1} parent=11 // pred_check_branch
          %1170 = sbr.rel (%p1168) target = $region64
        $region63: #{translation_model_forward.1} parent=11 // pred_region
          _
        $region64: #{translation_model_forward.1} parent=11 // pred_fallthru
          _
        // Predicated region
        $region65: #{translation_model_forward.1} parent=11 // pred_check
          %p1171 = pneg %p477
        $region66: #{translation_model_forward.1} parent=11 // pred_check_branch
          %1173 = sbr.rel (%p1171) target = $region68
        $region67: #{translation_model_forward.1} parent=11 // pred_region
          _
        $region68: #{translation_model_forward.1} parent=11 // pred_fallthru
          _
        // Predicated region
        $region69: #{translation_model_forward.1} parent=11 // pred_check
          %p1174 = pneg %p498
        $region70: #{translation_model_forward.1} parent=11 // pred_check_branch
          %1176 = sbr.rel (%p1174) target = $region72
        $region71: #{translation_model_forward.1} parent=11 // pred_region
          _
        $region72: #{translation_model_forward.1} parent=11 // pred_fallthru
          _
        // Predicated region
        $region73: #{translation_model_forward.1} parent=11 // pred_check
          %p1177 = pneg %p519
        $region74: #{translation_model_forward.1} parent=11 // pred_check_branch
          %1179 = sbr.rel (%p1177) target = $region76
        $region75: #{translation_model_forward.1} parent=11 // pred_region
          _
        $region76: #{translation_model_forward.1} parent=11 // pred_fallthru
          _
        // Predicated region
        $region77: #{translation_model_forward.1} parent=11 // pred_check
          %p1180 = pneg %p540
        $region78: #{translation_model_forward.1} parent=11 // pred_check_branch
          %1182 = sbr.rel (%p1180) target = $region80
        $region79: #{translation_model_forward.1} parent=11 // pred_region
          _
        $region80: #{translation_model_forward.1} parent=11 // pred_fallthru
          _
        // Predicated region
        $region81: #{translation_model_forward.1} parent=11 // pred_check
          %p1183 = pneg %p561
        $region82: #{translation_model_forward.1} parent=11 // pred_check_branch
          %1185 = sbr.rel (%p1183) target = $region84
        $region83: #{translation_model_forward.1} parent=11 // pred_region
          _
        $region84: #{translation_model_forward.1} parent=11 // pred_fallthru
          _
        // Predicated region
        $region85: #{translation_model_forward.1} parent=11 // pred_check
          %p1186 = pneg %p582
        $region86: #{translation_model_forward.1} parent=11 // pred_check_branch
          %1188 = sbr.rel (%p1186) target = $region88
        $region87: #{translation_model_forward.1} parent=11 // pred_region
          _
        $region88: #{translation_model_forward.1} parent=11 // pred_fallthru
          _
        // Predicated region
        $region89: #{translation_model_forward.1} parent=11 // pred_check
          %p1189 = pneg %p603
        $region90: #{translation_model_forward.1} parent=11 // pred_check_branch
          %1191 = sbr.rel (%p1189) target = $region92
        $region91: #{translation_model_forward.1} parent=11 // pred_region
          _
        $region92: #{translation_model_forward.1} parent=11 // pred_fallthru
          _
        // Predicated region
        $region93: #{translation_model_forward.1} parent=11 // pred_check
          %p1192 = pneg %p624
        $region94: #{translation_model_forward.1} parent=11 // pred_check_branch
          %1194 = sbr.rel (%p1192) target = $region96
        $region95: #{translation_model_forward.1} parent=11 // pred_region
          _
        $region96: #{translation_model_forward.1} parent=11 // pred_fallthru
          _
        // Predicated region
        $region97: #{translation_model_forward.1} parent=11 // pred_check
          %p1195 = pneg %p645
        $region98: #{translation_model_forward.1} parent=11 // pred_check_branch
          %1197 = sbr.rel (%p1195) target = $region100
        $region99: #{translation_model_forward.1} parent=11 // pred_region
          _
        $region100: #{translation_model_forward.1} parent=11 // pred_fallthru
          _
        // Predicated region
        $region101: #{translation_model_forward.1} parent=11 // pred_check
          %p1198 = pneg %p666
        $region102: #{translation_model_forward.1} parent=11 // pred_check_branch
          %1200 = sbr.rel (%p1198) target = $region104
        $region103: #{translation_model_forward.1} parent=11 // pred_region
          _
        $region104: #{translation_model_forward.1} parent=11 // pred_fallthru
          _
        // Predicated region
        $region105: #{translation_model_forward.1} parent=11 // pred_check
          %p1201 = pneg %p687
        $region106: #{translation_model_forward.1} parent=11 // pred_check_branch
          %1203 = sbr.rel (%p1201) target = $region108
        $region107: #{translation_model_forward.1} parent=11 // pred_region
          _
        $region108: #{translation_model_forward.1} parent=11 // pred_fallthru
          _
        // Predicated region
        $region109: #{translation_model_forward.1} parent=11 // pred_check
          %p1204 = pneg %p708
        $region110: #{translation_model_forward.1} parent=11 // pred_check_branch
          %1206 = sbr.rel (%p1204) target = $region112
        $region111: #{translation_model_forward.1} parent=11 // pred_region
          _
        $region112: #{translation_model_forward.1} parent=11 // pred_fallthru
          _
        // Predicated region
        $region113: #{translation_model_forward.1} parent=11 // pred_check
          %p1207 = pneg %p729
        $region114: #{translation_model_forward.1} parent=11 // pred_check_branch
          %1209 = sbr.rel (%p1207) target = $region116
        $region115: #{translation_model_forward.1} parent=11 // pred_region
          _
        $region116: #{translation_model_forward.1} parent=11 // pred_fallthru
          _
        // Predicated region
        $region117: #{translation_model_forward.1} parent=11 // pred_check
          %p1210 = pneg %p750
        $region118: #{translation_model_forward.1} parent=11 // pred_check_branch
          %1212 = sbr.rel (%p1210) target = $region120
        $region119: #{translation_model_forward.1} parent=11 // pred_region
          _
        $region120: #{translation_model_forward.1} parent=11 // pred_fallthru
          _
        // Predicated region
        $region121: #{translation_model_forward.1} parent=11 // pred_check
          %p1213 = pneg %p771
        $region122: #{translation_model_forward.1} parent=11 // pred_check_branch
          %1215 = sbr.rel (%p1213) target = $region124
        $region123: #{translation_model_forward.1} parent=11 // pred_region
          _
        $region124: #{translation_model_forward.1} parent=11 // pred_fallthru
          _
        // Predicated region
        $region125: #{translation_model_forward.1} parent=11 // pred_check
          %p1216 = pneg %p792
        $region126: #{translation_model_forward.1} parent=11 // pred_check_branch
          %1218 = sbr.rel (%p1216) target = $region128
        $region127: #{translation_model_forward.1} parent=11 // pred_region
          _
        $region128: #{translation_model_forward.1} parent=11 // pred_fallthru
          _
        // Predicated region
        $region129: #{translation_model_forward.1} parent=11 // pred_check
          %p1219 = pneg %p813
        $region130: #{translation_model_forward.1} parent=11 // pred_check_branch
          %1221 = sbr.rel (%p1219) target = $region132
        $region131: #{translation_model_forward.1} parent=11 // pred_region
          _
        $region132: #{translation_model_forward.1} parent=11 // pred_fallthru
          _
        // Predicated region
        $region133: #{translation_model_forward.1} parent=11 // pred_check
          %p1222 = pneg %p834
        $region134: #{translation_model_forward.1} parent=11 // pred_check_branch
          %1224 = sbr.rel (%p1222) target = $region136
        $region135: #{translation_model_forward.1} parent=11 // pred_region
          _
        $region136: #{translation_model_forward.1} parent=11 // pred_fallthru
          _
        // Predicated region
        $region137: #{translation_model_forward.1} parent=11 // pred_check
          %p1225 = pneg %p855
        $region138: #{translation_model_forward.1} parent=11 // pred_check_branch
          %1227 = sbr.rel (%p1225) target = $region140
        $region139: #{translation_model_forward.1} parent=11 // pred_region
          _
        $region140: #{translation_model_forward.1} parent=11 // pred_fallthru
          _
        // Predicated region
        $region141: #{translation_model_forward.1} parent=11 // pred_check
          %p1228 = pneg %p876
        $region142: #{translation_model_forward.1} parent=11 // pred_check_branch
          %1230 = sbr.rel (%p1228) target = $region144
        $region143: #{translation_model_forward.1} parent=11 // pred_region
          _
        $region144: #{translation_model_forward.1} parent=11 // pred_fallthru
          _
        // Predicated region
        $region145: #{translation_model_forward.1} parent=11 // pred_check
          %p1231 = pneg %p897
        $region146: #{translation_model_forward.1} parent=11 // pred_check_branch
          %1233 = sbr.rel (%p1231) target = $region148
        $region147: #{translation_model_forward.1} parent=11 // pred_region
          _
        $region148: #{translation_model_forward.1} parent=11 // pred_fallthru
          _
        // Predicated region
        $region149: #{translation_model_forward.1} parent=11 // pred_check
          %p1234 = pneg %p918
        $region150: #{translation_model_forward.1} parent=11 // pred_check_branch
          %1236 = sbr.rel (%p1234) target = $region152
        $region151: #{translation_model_forward.1} parent=11 // pred_region
          _
        $region152: #{translation_model_forward.1} parent=11 // pred_fallthru
          _
        // Predicated region
        $region153: #{translation_model_forward.1} parent=11 // pred_check
          %p1237 = pneg %p939
        $region154: #{translation_model_forward.1} parent=11 // pred_check_branch
          %1239 = sbr.rel (%p1237) target = $region156
        $region155: #{translation_model_forward.1} parent=11 // pred_region
          _
        $region156: #{translation_model_forward.1} parent=11 // pred_fallthru
          _
        // Predicated region
        $region157: #{translation_model_forward.1} parent=11 // pred_check
          %p1240 = pneg %p960
        $region158: #{translation_model_forward.1} parent=11 // pred_check_branch
          %1242 = sbr.rel (%p1240) target = $region160
        $region159: #{translation_model_forward.1} parent=11 // pred_region
          _
        $region160: #{translation_model_forward.1} parent=11 // pred_fallthru
          _
        // Predicated region
        $region161: #{translation_model_forward.1} parent=11 // pred_check
          %p1243 = pneg %p981
        $region162: #{translation_model_forward.1} parent=11 // pred_check_branch
          %1245 = sbr.rel (%p1243) target = $region164
        $region163: #{translation_model_forward.1} parent=11 // pred_region
          _
        $region164: #{translation_model_forward.1} parent=11 // pred_fallthru
          _
        // Predicated region
        $region165: #{translation_model_forward.1} parent=11 // pred_check
          %p1246 = pneg %p1002
        $region166: #{translation_model_forward.1} parent=11 // pred_check_branch
          %1248 = sbr.rel (%p1246) target = $region168
        $region167: #{translation_model_forward.1} parent=11 // pred_region
          %s1250 = ssub.s32 16, 16
          %1251 = vsyncadd [#allocation3], %s1250
          %s1253 = sshll.u32 [#allocation2], 4
          %s1254 = int_to_ptr.vmem [resolvable:$true] %s1253
          %1256 = dma.hbm_to_vmem [thread:$0]  %s83, 16, %s1254, [#allocation3]
        $region168: #{translation_model_forward.1} parent=11 // pred_fallthru
          _
        // Predicated region
        $region169: #{translation_model_forward.1} parent=11 // pred_check
          %p1257 = pneg %p1023
        $region170: #{translation_model_forward.1} parent=11 // pred_check_branch
          %1259 = sbr.rel (%p1257) target = $region172
        $region171: #{translation_model_forward.1} parent=11 // pred_region
          %s1261 = ssub.s32 16, 16
          %1262 = vsyncadd [#allocation6], %s1261
          %s1264 = sshll.u32 [#allocation5], 4
          %s1265 = int_to_ptr.vmem [resolvable:$true] %s1264
          %1267 = dma.hbm_to_vmem [thread:$0]  %s85, 16, %s1265, [#allocation6]
        $region172: #{translation_model_forward.1} parent=11 // pred_fallthru
          _
        // Predicated region
        $region173: #{translation_model_forward.1} parent=11 // pred_check
          %p1268 = pneg %p1044
        $region174: #{translation_model_forward.1} parent=11 // pred_check_branch
          %1270 = sbr.rel (%p1268) target = $region176
        $region175: #{translation_model_forward.1} parent=11 // pred_region
          _
        $region176: #{translation_model_forward.1} parent=11 // pred_fallthru
          _
        // Predicated region
        $region177: #{translation_model_forward.1} parent=11 // pred_check
          %p1271 = pneg %p1065
        $region178: #{translation_model_forward.1} parent=11 // pred_check_branch
          %1273 = sbr.rel (%p1271) target = $region180
        $region179: #{translation_model_forward.1} parent=11 // pred_region
          %s1275 = ssub.s32 16, 16
          %1276 = vsyncadd [#allocation6], %s1275
          %s1278 = sshll.u32 [#allocation7], 4
          %s1279 = int_to_ptr.vmem [resolvable:$true] %s1278
          %1281 = dma.hbm_to_vmem [thread:$0]  %s89, 16, %s1279, [#allocation6]
        $region180: #{translation_model_forward.1} parent=11 // pred_fallthru
          _
      $region12: #{translation_model_forward.1} parent=5 // pred_fallthru
        _
      %p1282 = scmp.lt.s32.totalorder %s105, 2
      // Predicated region
      $region181: #{translation_model_forward.1} parent=5 // pred_check
        %p1283 = pneg %p1282
      $region182: #{translation_model_forward.1} parent=5 // pred_check_branch
        %1285 = sbr.rel (%p1283) target = $region184
      $region183: #{translation_model_forward.1} parent=5 // pred_region
        // Predicated region
        $region185: #{translation_model_forward.1} parent=183 // pred_check
          %p1286 = pneg %p125
        $region186: #{translation_model_forward.1} parent=183 // pred_check_branch
          %1288 = sbr.rel (%p1286) target = $region188
        $region187: #{translation_model_forward.1} parent=183 // pred_region
          %p1289 = scmp.lt.s32.totalorder %s105, 1
          %s1290 = scalar_select %p1289, %s105, 1
          %s1291 = smul.addr %s1290, 8
          %s1292 = scalar_lea.vmem %s1, %s1291
        $region188: #{translation_model_forward.1} parent=183 // pred_fallthru
          _
        // Predicated region
        $region189: #{translation_model_forward.1} parent=183 // pred_check
          %p1293 = pneg %p151
        $region190: #{translation_model_forward.1} parent=183 // pred_check_branch
          %1295 = sbr.rel (%p1293) target = $region192
        $region191: #{translation_model_forward.1} parent=183 // pred_region
          %p1296 = scmp.lt.s32.totalorder %s105, 1
          %s1297 = scalar_select %p1296, %s105, 1
          %s1298 = smul.addr %s1297, 8
          %s1299 = scalar_lea.vmem %s3, %s1298
        $region192: #{translation_model_forward.1} parent=183 // pred_fallthru
          _
        // Predicated region
        $region193: #{translation_model_forward.1} parent=183 // pred_check
          %p1300 = pneg %p177
        $region194: #{translation_model_forward.1} parent=183 // pred_check_branch
          %1302 = sbr.rel (%p1300) target = $region196
        $region195: #{translation_model_forward.1} parent=183 // pred_region
          %p1303 = scmp.lt.s32.totalorder %s105, 1
          %s1304 = scalar_select %p1303, %s105, 1
          %s1305 = smul.addr %s1304, 8
          %s1306 = scalar_lea.vmem %s5, %s1305
        $region196: #{translation_model_forward.1} parent=183 // pred_fallthru
          _
      $region184: #{translation_model_forward.1} parent=5 // pred_fallthru
        _
      %p1307 = scmp.le.s32.totalorder 1, %s105
      %p1308 = scmp.lt.s32.totalorder %s105, 3
      %p1309 = pnand %p1307, %p1308
      %p1310 = pneg %p1309
      // Predicated region
      $region197: #{translation_model_forward.1} parent=5 // pred_check
        _
      $region198: #{translation_model_forward.1} parent=5 // pred_check_branch
        %1312 = sbr.rel (%p1309) target = $region200
      $region199: #{translation_model_forward.1} parent=5 // pred_region
        %s1313 = ssub.s32 %s105, 1
        // Predicated region
        $region201: #{translation_model_forward.1} parent=199 // pred_check
          %p1314 = pneg %p1002
        $region202: #{translation_model_forward.1} parent=199 // pred_check_branch
          %1316 = sbr.rel (%p1314) target = $region204
        $region203: #{translation_model_forward.1} parent=199 // pred_region
          %1317 = dma.done [#allocation3], 16
        $region204: #{translation_model_forward.1} parent=199 // pred_fallthru
          _
        // Predicated region
        $region205: #{translation_model_forward.1} parent=199 // pred_check
          %p1318 = pneg %p1023
        $region206: #{translation_model_forward.1} parent=199 // pred_check_branch
          %1320 = sbr.rel (%p1318) target = $region208
        $region207: #{translation_model_forward.1} parent=199 // pred_region
          %1321 = dma.done [#allocation6], 16
        $region208: #{translation_model_forward.1} parent=199 // pred_fallthru
          _
        // Predicated region
        $region209: #{translation_model_forward.1} parent=199 // pred_check
          %p1322 = pneg %p1065
        $region210: #{translation_model_forward.1} parent=199 // pred_check_branch
          %1324 = sbr.rel (%p1322) target = $region212
        $region211: #{translation_model_forward.1} parent=199 // pred_region
          %1325 = dma.done [#allocation6], 16
        $region212: #{translation_model_forward.1} parent=199 // pred_fallthru
          _
        %p1326 = scmp.lt.s32.totalorder %s110, 1
        %s1327 = scalar_select %p1326, %s110, 1
        %s1328 = smul.addr %s1327, 8
        %s1329 = scalar_lea.vmem %s1, %s1328
        %p1330 = pneg %p131
        %p1331 = pneg %p128
        %p1332 = scmp.lt.s32.totalorder %s110, 1
        %s1333 = scalar_select %p1332, %s110, 1
        %s1334 = smul.addr %s1333, 8
        %s1335 = scalar_lea.vmem %s3, %s1334
        %p1336 = pneg %p157
        %p1337 = pneg %p154
        %p1338 = scmp.lt.s32.totalorder %s110, 1
        %s1339 = scalar_select %p1338, %s110, 1
        %s1340 = smul.addr %s1339, 8
        %s1341 = scalar_lea.vmem %s5, %s1340
        %p1342 = pneg %p183
        %p1343 = pneg %p180
        %p1344 = pneg %p204
        %p1345 = pneg %p201
        %p1346 = pneg %p225
        %p1347 = pneg %p222
        %p1348 = pneg %p246
        %p1349 = pneg %p243
        %p1350 = pneg %p267
        %p1351 = pneg %p264
        %p1352 = pneg %p288
        %p1353 = pneg %p285
        %p1354 = pneg %p309
        %p1355 = pneg %p306
        %p1356 = pneg %p330
        %p1357 = pneg %p327
        %p1358 = pneg %p351
        %p1359 = pneg %p348
        %p1360 = pneg %p372
        %p1361 = pneg %p369
        %p1362 = pneg %p393
        %p1363 = pneg %p390
        %p1364 = pneg %p414
        %p1365 = pneg %p411
        %p1366 = pneg %p435
        %p1367 = pneg %p432
        %p1368 = pneg %p456
        %p1369 = pneg %p453
        %p1370 = pneg %p477
        %p1371 = pneg %p474
        %p1372 = pneg %p498
        %p1373 = pneg %p495
        %p1374 = pneg %p519
        %p1375 = pneg %p516
        %p1376 = pneg %p540
        %p1377 = pneg %p537
        %p1378 = pneg %p561
        %p1379 = pneg %p558
        %p1380 = pneg %p582
        %p1381 = pneg %p579
        %p1382 = pneg %p603
        %p1383 = pneg %p600
        %p1384 = pneg %p624
        %p1385 = pneg %p621
        %p1386 = pneg %p645
        %p1387 = pneg %p642
        %p1388 = pneg %p666
        %p1389 = pneg %p663
        %p1390 = pneg %p687
        %p1391 = pneg %p684
        %p1392 = pneg %p708
        %p1393 = pneg %p705
        %p1394 = pneg %p729
        %p1395 = pneg %p726
        %p1396 = pneg %p750
        %p1397 = pneg %p747
        %p1398 = pneg %p771
        %p1399 = pneg %p768
        %p1400 = pneg %p792
        %p1401 = pneg %p789
        %p1402 = pneg %p813
        %p1403 = pneg %p810
        %p1404 = pneg %p834
        %p1405 = pneg %p831
        %p1406 = pneg %p855
        %p1407 = pneg %p852
        %p1408 = pneg %p876
        %p1409 = pneg %p873
        %p1410 = pneg %p897
        %p1411 = pneg %p894
        %p1412 = pneg %p918
        %p1413 = pneg %p915
        %p1414 = pneg %p939
        %p1415 = pneg %p936
        %p1416 = pneg %p960
        %p1417 = pneg %p957
        %p1418 = pneg %p981
        %p1419 = pneg %p978
        %p1420 = pneg %p1002
        %p1421 = pneg %p999
        %p1422 = pneg %p1023
        %p1423 = pneg %p1020
        %p1424 = pneg %p1044
        %p1425 = pneg %p1041
        %p1426 = pneg %p1065
        %p1427 = pneg %p1062
        %p1428 = pneg %p1091
        %p1429 = pneg %p1088
        %p1430 = scmp.lt.s32.totalorder %s110, 1
        %s1431 = scalar_select %p1430, %s110, 1
        %s1432 = scalar_lea.vmem %s91, %s1431
        %p1433 = pneg %p1117
        %p1434 = pneg %p1114
        %s1435 = sand.u32 %s1104, 1
        %s1436 = scalar_lea.sflag [#allocation4], %s1435
        %s1437 = sand.u32 %s1104, 1
        %s1438 = smul.addr %s1437, 8
        %s1439 = scalar_lea.vmem [#allocation8], %s1438
        %p1440 = scmp.lt.s32.totalorder %s110, 1
        %s1441 = scalar_select %p1440, %s110, 1
        %s1442 = smul.addr %s1441, 8
        %s1443 = scalar_lea.vmem %s1, %s1442
        %p1444 = scmp.lt.s32.totalorder %s110, 1
        %s1445 = scalar_select %p1444, %s110, 1
        %s1446 = smul.addr %s1445, 8
        %s1447 = scalar_lea.vmem %s3, %s1446
        %p1448 = scmp.lt.s32.totalorder %s110, 1
        %s1449 = scalar_select %p1448, %s110, 1
        %s1450 = smul.addr %s1449, 8
        %s1451 = scalar_lea.vmem %s5, %s1450
        %p1452 = scmp.lt.s32.totalorder %s110, 1
        %s1453 = scalar_select %p1452, %s110, 1
        %s1454 = scalar_lea.vmem %s91, %s1453
        %v1456 = vld [vmem:[%s1443] sm:$0xff]
        %vm1457 = vcmask 261120
        %v1458 = vsel %vm1457, %v1456, 0.0
        %1459 = vadd.xlane.f32.xlu0 %v1458
        %v1460 = vpop.xlane.xlu0 %1459
        %v1461 = vrcp.pop 32.0
        %v1462 = vmul.f32 %v1460, %v1461
        %v1463 = vsub.f32 %v1456, %v1462
        %v1464 = vmul.f32 %v1463, %v1463
        %v1465 = vsel %vm1457, %v1464, 0.0
        %1466 = vadd.xlane.f32.xlu0 %v1465
        %v1467 = vpop.xlane.xlu0 %1466
        %v1468 = vmul.f32 %v1467, %v1461
        %v1469 = vadd.f32 %v1468, 1e-12
        %v1470 = vrsqrt.pop %v1469
        %v1471 = vmul.f32 %v1463, %v1470
        %v1472 = vld [vmem:[%s7] sm:$0x1]
        %v1474 = vlaneseq
        %v1475 = vshrl.u32 %v1474, 7
        %v1476 = vsub.s32 0, %v1475
        %v1477 = vrot.slane %v1472, %v1476
        %v1479 = vmul.f32 %v1471, %v1477
        %v1480 = vld [vmem:[%s9] sm:$0x1]
        %v1482 = vlaneseq
        %v1483 = vshrl.u32 %v1482, 7
        %v1484 = vsub.s32 0, %v1483
        %v1485 = vrot.slane %v1480, %v1484
        %v1487 = vadd.f32 %v1479, %v1485
        %v1488 = vpack.c.bf16 %v1487, %v1487
        %v1489 = vld [vmem:[%s11] sm:$0xf]
        %v1490 = vld [vmem:[%s11 + $0x4] sm:$0xf]
        %v1491 = vld [vmem:[%s11 + $0x8] sm:$0xf]
        %v1492 = vld [vmem:[%s11 + $0xc] sm:$0xf]
        %v1493 = vld [vmem:[%s13] sm:$0x1]
        %v1495 = vlaneseq
        %v1496 = vshrl.u32 %v1495, 7
        %v1497 = vsub.s32 0, %v1496
        %v1498 = vrot.slane %v1493, %v1497
        %v1504 = vunpack.c.l.b16 %v1489
        %v1505 = vunpack.c.l.b16 %v1490
        %v1506 = vunpack.c.l.b16 %v1491
        %v1507 = vunpack.c.l.b16 %v1492
        %v1508 = vpack.c.b16 %v1505, %v1504
        %v1509 = vpack.c.b16 %v1507, %v1506
        %v1513 = vsel %vm1457, %v1488, 0
        %1515 = vmatprep.subr.bf16.mxu0 0
        %1516 = vmatpush1.bf16.msra.mxu0 0
        %1517 = vmatprep.subr.bf16.mxu0 0
        %1518 = vmatpush1.bf16.msra.mxu0 0
        %1519 = vmatprep.subr.bf16.mxu0 0
        %1520 = vmatpush1.bf16.msra.mxu0 0
        %1521 = vmatprep.subr.bf16.mxu0 0
        %1522 = vmatpush1.bf16.msra.mxu0 0
        %1523 = vmatprep.subr.bf16.mxu0 0
        %1524 = vmatpush1.bf16.msra.mxu0 0
        %1525 = vmatprep.subr.bf16.mxu0 0
        %1526 = vmatpush1.bf16.msra.mxu0 0
        %1527 = vmatprep.subr.bf16.mxu0 0
        %1528 = vmatpush1.bf16.msra.mxu0 %v1509
        %1529 = vmatprep.subr.bf16.mxu0 0
        %1530 = vmatpush1.bf16.msra.mxu0 %v1508
        %1531 = vmatprep.subr.bf16.mxu0 0
        %1532 = vmatpush2.bf16.msra.mxu0 0
        %1533 = vmatprep.subr.bf16.mxu0 0
        %1534 = vmatpush2.bf16.msra.mxu0 0
        %1535 = vmatprep.subr.bf16.mxu0 0
        %1536 = vmatpush2.bf16.msra.mxu0 0
        %1537 = vmatprep.subr.bf16.mxu0 0
        %1538 = vmatpush2.bf16.msra.mxu0 0
        %1539 = vmatprep.subr.bf16.mxu0 0
        %1540 = vmatpush2.bf16.msra.mxu0 0
        %1541 = vmatprep.subr.bf16.mxu0 0
        %1542 = vmatpush2.bf16.msra.mxu0 0
        %1543 = vmatprep.subr.bf16.mxu0 0
        %1544 = vmatpush2.bf16.msra.mxu0 0
        %1545 = vmatprep.subr.bf16.mxu0 0
        %1546 = vmatpush2.bf16.msra.mxu0 0
        %1547 = vmatprep.mubr.bf16.mxu0 0
        %1548 = vmatmul.mubr.bf16.gmra.mxu0 %v1513
        %v1549 = vpop.f32.mrf.mxu0
        %v1550 = vadd.f32 %v1498, %v1549
        %v1551 = vpop.f32.mrf.mxu0
        %v1552 = vpop.f32.mrf.mxu0
        %v1553 = vpop.f32.mrf.mxu0
        %1554 = vdwg.mxu0
        %v1555 = vpack.c.bf16 %v1550, %v1550
        %1557 = vrot.lane.b32.xlu0 %v1555, 96
        %v1558 = vpop.permute.xlu0 %1557
        %vm1559 = vcmask 130048
        %v1561 = vsel %vm1559, %v1555, 0
        %v1564 = vsel %vm1559, %v1558, 0
        %1566 = vmatprep.subr.bf16.mxu0 0
        %1567 = vmatpush1.bf16.xpose.msra.mxu0 0
        %1568 = vmatprep.subr.bf16.mxu0 0
        %1569 = vmatpush1.bf16.xpose.msra.mxu0 0
        %1570 = vmatprep.subr.bf16.mxu0 0
        %1571 = vmatpush1.bf16.xpose.msra.mxu0 0
        %1572 = vmatprep.subr.bf16.mxu0 0
        %1573 = vmatpush1.bf16.xpose.msra.mxu0 0
        %1574 = vmatprep.subr.bf16.mxu0 0
        %1575 = vmatpush1.bf16.xpose.msra.mxu0 0
        %1576 = vmatprep.subr.bf16.mxu0 0
        %1577 = vmatpush1.bf16.xpose.msra.mxu0 0
        %1578 = vmatprep.subr.bf16.mxu0 0
        %1579 = vmatpush1.bf16.xpose.msra.mxu0 0
        %1580 = vmatprep.subr.bf16.mxu0 0
        %1581 = vmatpush1.bf16.xpose.msra.mxu0 %v1564
        %1582 = vmatprep.subr.bf16.mxu0 0
        %1583 = vmatpush2.bf16.xpose.msra.mxu0 0
        %1584 = vmatprep.subr.bf16.mxu0 0
        %1585 = vmatpush2.bf16.xpose.msra.mxu0 0
        %1586 = vmatprep.subr.bf16.mxu0 0
        %1587 = vmatpush2.bf16.xpose.msra.mxu0 0
        %1588 = vmatprep.subr.bf16.mxu0 0
        %1589 = vmatpush2.bf16.xpose.msra.mxu0 0
        %1590 = vmatprep.subr.bf16.mxu0 0
        %1591 = vmatpush2.bf16.xpose.msra.mxu0 0
        %1592 = vmatprep.subr.bf16.mxu0 0
        %1593 = vmatpush2.bf16.xpose.msra.mxu0 0
        %1594 = vmatprep.subr.bf16.mxu0 0
        %1595 = vmatpush2.bf16.xpose.msra.mxu0 0
        %1596 = vmatprep.subr.bf16.mxu0 0
        %1597 = vmatpush2.bf16.xpose.msra.mxu0 0
        %1598 = vmatprep.mubr.bf16.mxu0 0
        %1599 = vmatmul.mubr.bf16.gmra.mxu0 %v1561
        %v1600 = vpop.f32.mrf.mxu0
        %v1601 = vadd.f32 0.0, %v1600
        %v1602 = vpop.f32.mrf.mxu0
        %v1603 = vpop.f32.mrf.mxu0
        %v1604 = vpop.f32.mrf.mxu0
        %1605 = vdwg.mxu0
        %v1606 = vmul.f32 %v1601, 0.25
        %vm1607 = vcmask 64512
        %v1608 = vsel %vm1607, %v1606, -inf
        %1609 = vmax.xlane.f32.xlu0 %v1608
        %v1610 = vpop.xlane.xlu0 %1609
        %v1611 = vsub.f32 %v1606, %v1610
        %v1612 = vmul.f32 %v1611, 1.442695
        %v1613 = vpow.pop %v1612
        %v1614 = vsel %vm1607, %v1613, 0.0
        %1615 = vadd.xlane.f32.xlu0 %v1614
        %v1616 = vpop.xlane.xlu0 %1615
        %v1617 = vrcp.pop %v1616
        %v1618 = vmul.f32 %v1613, %v1617
        %v1619 = vpack.c.bf16 %v1618, %v1618
        %1620 = vrot.lane.b32.xlu0 %v1555, 64
        %v1621 = vpop.permute.xlu0 %1620
        %v1623 = vsel %vm1607, %v1619, 0
        %vm1625 = vcmask 1043456
        %v1627 = vsel %vm1625, %v1621, 0
        %1629 = vmatprep.subr.bf16.mxu0 0
        %1630 = vmatpush1.bf16.msra.mxu0 0
        %1631 = vmatprep.subr.bf16.mxu0 0
        %1632 = vmatpush1.bf16.msra.mxu0 0
        %1633 = vmatprep.subr.bf16.mxu0 0
        %1634 = vmatpush1.bf16.msra.mxu0 0
        %1635 = vmatprep.subr.bf16.mxu0 0
        %1636 = vmatpush1.bf16.msra.mxu0 0
        %1637 = vmatprep.subr.bf16.mxu0 0
        %1638 = vmatpush1.bf16.msra.mxu0 0
        %1639 = vmatprep.subr.bf16.mxu0 0
        %1640 = vmatpush1.bf16.msra.mxu0 0
        %1641 = vmatprep.subr.bf16.mxu0 0
        %1642 = vmatpush1.bf16.msra.mxu0 0
        %1643 = vmatprep.subr.bf16.mxu0 0
        %1644 = vmatpush1.bf16.msra.mxu0 %v1627
        %1645 = vmatprep.subr.bf16.mxu0 0
        %1646 = vmatpush2.bf16.msra.mxu0 0
        %1647 = vmatprep.subr.bf16.mxu0 0
        %1648 = vmatpush2.bf16.msra.mxu0 0
        %1649 = vmatprep.subr.bf16.mxu0 0
        %1650 = vmatpush2.bf16.msra.mxu0 0
        %1651 = vmatprep.subr.bf16.mxu0 0
        %1652 = vmatpush2.bf16.msra.mxu0 0
        %1653 = vmatprep.subr.bf16.mxu0 0
        %1654 = vmatpush2.bf16.msra.mxu0 0
        %1655 = vmatprep.subr.bf16.mxu0 0
        %1656 = vmatpush2.bf16.msra.mxu0 0
        %1657 = vmatprep.subr.bf16.mxu0 0
        %1658 = vmatpush2.bf16.msra.mxu0 0
        %1659 = vmatprep.subr.bf16.mxu0 0
        %1660 = vmatpush2.bf16.msra.mxu0 0
        %1661 = vmatprep.mubr.bf16.mxu0 0
        %1662 = vmatmul.mubr.bf16.gmra.mxu0 %v1623
        %v1663 = vpop.f32.mrf.mxu0
        %v1664 = vadd.f32 0.0, %v1663
        %v1665 = vpop.f32.mrf.mxu0
        %v1666 = vpop.f32.mrf.mxu0
        %v1667 = vpop.f32.mrf.mxu0
        %1668 = vdwg.mxu0
        %1669 = vrot.lane.b32.xlu0 %v1555, 112
        %v1670 = vpop.permute.xlu0 %1669
        %1671 = vrot.lane.b32.xlu0 %v1555, 80
        %v1672 = vpop.permute.xlu0 %1671
        %v1674 = vsel %vm1559, %v1670, 0
        %v1677 = vsel %vm1559, %v1672, 0
        %1679 = vmatprep.subr.bf16.mxu0 0
        %1680 = vmatpush1.bf16.xpose.msra.mxu0 0
        %1681 = vmatprep.subr.bf16.mxu0 0
        %1682 = vmatpush1.bf16.xpose.msra.mxu0 0
        %1683 = vmatprep.subr.bf16.mxu0 0
        %1684 = vmatpush1.bf16.xpose.msra.mxu0 0
        %1685 = vmatprep.subr.bf16.mxu0 0
        %1686 = vmatpush1.bf16.xpose.msra.mxu0 0
        %1687 = vmatprep.subr.bf16.mxu0 0
        %1688 = vmatpush1.bf16.xpose.msra.mxu0 0
        %1689 = vmatprep.subr.bf16.mxu0 0
        %1690 = vmatpush1.bf16.xpose.msra.mxu0 0
        %1691 = vmatprep.subr.bf16.mxu0 0
        %1692 = vmatpush1.bf16.xpose.msra.mxu0 0
        %1693 = vmatprep.subr.bf16.mxu0 0
        %1694 = vmatpush1.bf16.xpose.msra.mxu0 %v1677
        %1695 = vmatprep.subr.bf16.mxu0 0
        %1696 = vmatpush2.bf16.xpose.msra.mxu0 0
        %1697 = vmatprep.subr.bf16.mxu0 0
        %1698 = vmatpush2.bf16.xpose.msra.mxu0 0
        %1699 = vmatprep.subr.bf16.mxu0 0
        %1700 = vmatpush2.bf16.xpose.msra.mxu0 0
        %1701 = vmatprep.subr.bf16.mxu0 0
        %1702 = vmatpush2.bf16.xpose.msra.mxu0 0
        %1703 = vmatprep.subr.bf16.mxu0 0
        %1704 = vmatpush2.bf16.xpose.msra.mxu0 0
        %1705 = vmatprep.subr.bf16.mxu0 0
        %1706 = vmatpush2.bf16.xpose.msra.mxu0 0
        %1707 = vmatprep.subr.bf16.mxu0 0
        %1708 = vmatpush2.bf16.xpose.msra.mxu0 0
        %1709 = vmatprep.subr.bf16.mxu0 0
        %1710 = vmatpush2.bf16.xpose.msra.mxu0 0
        %1711 = vmatprep.mubr.bf16.mxu0 0
        %1712 = vmatmul.mubr.bf16.gmra.mxu0 %v1674
        %v1713 = vpop.f32.mrf.mxu0
        %v1714 = vadd.f32 0.0, %v1713
        %v1715 = vpop.f32.mrf.mxu0
        %v1716 = vpop.f32.mrf.mxu0
        %v1717 = vpop.f32.mrf.mxu0
        %1718 = vdwg.mxu0
        %v1719 = vmul.f32 %v1714, 0.25
        %v1720 = vsel %vm1607, %v1719, -inf
        %1721 = vmax.xlane.f32.xlu0 %v1720
        %v1722 = vpop.xlane.xlu0 %1721
        %v1723 = vsub.f32 %v1719, %v1722
        %v1724 = vmul.f32 %v1723, 1.442695
        %v1725 = vpow.pop %v1724
        %v1726 = vsel %vm1607, %v1725, 0.0
        %1727 = vadd.xlane.f32.xlu0 %v1726
        %v1728 = vpop.xlane.xlu0 %1727
        %v1729 = vrcp.pop %v1728
        %v1730 = vmul.f32 %v1725, %v1729
        %v1731 = vpack.c.bf16 %v1730, %v1730
        %1732 = vrot.lane.b32.xlu0 %v1555, 48
        %v1733 = vpop.permute.xlu0 %1732
        %v1735 = vsel %vm1607, %v1731, 0
        %v1738 = vsel %vm1625, %v1733, 0
        %1740 = vmatprep.subr.bf16.mxu0 0
        %1741 = vmatpush1.bf16.msra.mxu0 0
        %1742 = vmatprep.subr.bf16.mxu0 0
        %1743 = vmatpush1.bf16.msra.mxu0 0
        %1744 = vmatprep.subr.bf16.mxu0 0
        %1745 = vmatpush1.bf16.msra.mxu0 0
        %1746 = vmatprep.subr.bf16.mxu0 0
        %1747 = vmatpush1.bf16.msra.mxu0 0
        %1748 = vmatprep.subr.bf16.mxu0 0
        %1749 = vmatpush1.bf16.msra.mxu0 0
        %1750 = vmatprep.subr.bf16.mxu0 0
        %1751 = vmatpush1.bf16.msra.mxu0 0
        %1752 = vmatprep.subr.bf16.mxu0 0
        %1753 = vmatpush1.bf16.msra.mxu0 0
        %1754 = vmatprep.subr.bf16.mxu0 0
        %1755 = vmatpush1.bf16.msra.mxu0 %v1738
        %1756 = vmatprep.subr.bf16.mxu0 0
        %1757 = vmatpush2.bf16.msra.mxu0 0
        %1758 = vmatprep.subr.bf16.mxu0 0
        %1759 = vmatpush2.bf16.msra.mxu0 0
        %1760 = vmatprep.subr.bf16.mxu0 0
        %1761 = vmatpush2.bf16.msra.mxu0 0
        %1762 = vmatprep.subr.bf16.mxu0 0
        %1763 = vmatpush2.bf16.msra.mxu0 0
        %1764 = vmatprep.subr.bf16.mxu0 0
        %1765 = vmatpush2.bf16.msra.mxu0 0
        %1766 = vmatprep.subr.bf16.mxu0 0
        %1767 = vmatpush2.bf16.msra.mxu0 0
        %1768 = vmatprep.subr.bf16.mxu0 0
        %1769 = vmatpush2.bf16.msra.mxu0 0
        %1770 = vmatprep.subr.bf16.mxu0 0
        %1771 = vmatpush2.bf16.msra.mxu0 0
        %1772 = vmatprep.mubr.bf16.mxu0 0
        %1773 = vmatmul.mubr.bf16.gmra.mxu0 %v1735
        %v1774 = vpop.f32.mrf.mxu0
        %v1775 = vadd.f32 0.0, %v1774
        %v1776 = vpop.f32.mrf.mxu0
        %v1777 = vpop.f32.mrf.mxu0
        %v1778 = vpop.f32.mrf.mxu0
        %1779 = vdwg.mxu0
        %1781 = vrot.lane.b32.xlu0 %v1775, 16
        %v1782 = vpop.permute.xlu0 %1781
        %v1784 = vsel %vm1559, %v1664, %v1782
        %v1785 = vpack.c.bf16 %v1784, %v1784
        %v1786 = vld [vmem:[%s15] sm:$0xf]
        %v1787 = vld [vmem:[%s15 + $0x4] sm:$0xf]
        %v1788 = vld [vmem:[%s15 + $0x8] sm:$0xf]
        %v1789 = vld [vmem:[%s15 + $0xc] sm:$0xf]
        %v1790 = vld [vmem:[%s17] sm:$0x1]
        %v1792 = vlaneseq
        %v1793 = vshrl.u32 %v1792, 7
        %v1794 = vsub.s32 0, %v1793
        %v1795 = vrot.slane %v1790, %v1794
        %v1801 = vunpack.c.l.b16 %v1786
        %v1802 = vunpack.c.l.b16 %v1787
        %v1803 = vunpack.c.l.b16 %v1788
        %v1804 = vunpack.c.l.b16 %v1789
        %v1805 = vpack.c.b16 %v1802, %v1801
        %v1806 = vpack.c.b16 %v1804, %v1803
        %v1810 = vsel %vm1457, %v1785, 0
        %1812 = vmatprep.subr.bf16.mxu0 0
        %1813 = vmatpush1.bf16.msra.mxu0 0
        %1814 = vmatprep.subr.bf16.mxu0 0
        %1815 = vmatpush1.bf16.msra.mxu0 0
        %1816 = vmatprep.subr.bf16.mxu0 0
        %1817 = vmatpush1.bf16.msra.mxu0 0
        %1818 = vmatprep.subr.bf16.mxu0 0
        %1819 = vmatpush1.bf16.msra.mxu0 0
        %1820 = vmatprep.subr.bf16.mxu0 0
        %1821 = vmatpush1.bf16.msra.mxu0 0
        %1822 = vmatprep.subr.bf16.mxu0 0
        %1823 = vmatpush1.bf16.msra.mxu0 0
        %1824 = vmatprep.subr.bf16.mxu0 0
        %1825 = vmatpush1.bf16.msra.mxu0 %v1806
        %1826 = vmatprep.subr.bf16.mxu0 0
        %1827 = vmatpush1.bf16.msra.mxu0 %v1805
        %1828 = vmatprep.subr.bf16.mxu0 0
        %1829 = vmatpush2.bf16.msra.mxu0 0
        %1830 = vmatprep.subr.bf16.mxu0 0
        %1831 = vmatpush2.bf16.msra.mxu0 0
        %1832 = vmatprep.subr.bf16.mxu0 0
        %1833 = vmatpush2.bf16.msra.mxu0 0
        %1834 = vmatprep.subr.bf16.mxu0 0
        %1835 = vmatpush2.bf16.msra.mxu0 0
        %1836 = vmatprep.subr.bf16.mxu0 0
        %1837 = vmatpush2.bf16.msra.mxu0 0
        %1838 = vmatprep.subr.bf16.mxu0 0
        %1839 = vmatpush2.bf16.msra.mxu0 0
        %1840 = vmatprep.subr.bf16.mxu0 0
        %1841 = vmatpush2.bf16.msra.mxu0 0
        %1842 = vmatprep.subr.bf16.mxu0 0
        %1843 = vmatpush2.bf16.msra.mxu0 0
        %1844 = vmatprep.mubr.bf16.mxu0 0
        %1845 = vmatmul.mubr.bf16.gmra.mxu0 %v1810
        %v1846 = vpop.f32.mrf.mxu0
        %v1847 = vadd.f32 %v1795, %v1846
        %v1848 = vpop.f32.mrf.mxu0
        %v1849 = vpop.f32.mrf.mxu0
        %v1850 = vpop.f32.mrf.mxu0
        %1851 = vdwg.mxu0
        %v1852 = vadd.f32 %v1487, %v1847
        %v1853 = vsel %vm1457, %v1852, 0.0
        %1854 = vadd.xlane.f32.xlu0 %v1853
        %v1855 = vpop.xlane.xlu0 %1854
        %v1856 = vmul.f32 %v1855, %v1461
        %v1857 = vsub.f32 %v1852, %v1856
        %v1858 = vmul.f32 %v1857, %v1857
        %v1859 = vsel %vm1457, %v1858, 0.0
        %1860 = vadd.xlane.f32.xlu0 %v1859
        %v1861 = vpop.xlane.xlu0 %1860
        %v1862 = vmul.f32 %v1861, %v1461
        %v1863 = vadd.f32 %v1862, 1e-12
        %v1864 = vrsqrt.pop %v1863
        %v1865 = vmul.f32 %v1857, %v1864
        %v1866 = vld [vmem:[%s19] sm:$0x1]
        %v1868 = vlaneseq
        %v1869 = vshrl.u32 %v1868, 7
        %v1870 = vsub.s32 0, %v1869
        %v1871 = vrot.slane %v1866, %v1870
        %v1873 = vmul.f32 %v1865, %v1871
        %v1874 = vld [vmem:[%s21] sm:$0x1]
        %v1876 = vlaneseq
        %v1877 = vshrl.u32 %v1876, 7
        %v1878 = vsub.s32 0, %v1877
        %v1879 = vrot.slane %v1874, %v1878
        %v1881 = vadd.f32 %v1873, %v1879
        %v1882 = vpack.c.bf16 %v1881, %v1881
        %v1883 = vld [vmem:[%s23] sm:$0xf]
        %v1884 = vld [vmem:[%s23 + $0x4] sm:$0xf]
        %v1885 = vld [vmem:[%s23 + $0x8] sm:$0xf]
        %v1886 = vld [vmem:[%s23 + $0xc] sm:$0xf]
        %v1887 = vld [vmem:[%s25] sm:$0x1]
        %v1889 = vlaneseq
        %v1890 = vshrl.u32 %v1889, 7
        %v1891 = vsub.s32 0, %v1890
        %v1892 = vrot.slane %v1887, %v1891
        %v1898 = vunpack.c.l.b16 %v1883
        %v1899 = vunpack.c.l.b16 %v1884
        %v1900 = vunpack.c.l.b16 %v1885
        %v1901 = vunpack.c.l.b16 %v1886
        %v1902 = vpack.c.b16 %v1899, %v1898
        %v1903 = vpack.c.b16 %v1901, %v1900
        %v1907 = vsel %vm1457, %v1882, 0
        %1909 = vmatprep.subr.bf16.mxu0 0
        %1910 = vmatpush1.bf16.msra.mxu0 0
        %1911 = vmatprep.subr.bf16.mxu0 0
        %1912 = vmatpush1.bf16.msra.mxu0 0
        %1913 = vmatprep.subr.bf16.mxu0 0
        %1914 = vmatpush1.bf16.msra.mxu0 0
        %1915 = vmatprep.subr.bf16.mxu0 0
        %1916 = vmatpush1.bf16.msra.mxu0 0
        %1917 = vmatprep.subr.bf16.mxu0 0
        %1918 = vmatpush1.bf16.msra.mxu0 0
        %1919 = vmatprep.subr.bf16.mxu0 0
        %1920 = vmatpush1.bf16.msra.mxu0 0
        %1921 = vmatprep.subr.bf16.mxu0 0
        %1922 = vmatpush1.bf16.msra.mxu0 %v1903
        %1923 = vmatprep.subr.bf16.mxu0 0
        %1924 = vmatpush1.bf16.msra.mxu0 %v1902
        %1925 = vmatprep.subr.bf16.mxu0 0
        %1926 = vmatpush2.bf16.msra.mxu0 0
        %1927 = vmatprep.subr.bf16.mxu0 0
        %1928 = vmatpush2.bf16.msra.mxu0 0
        %1929 = vmatprep.subr.bf16.mxu0 0
        %1930 = vmatpush2.bf16.msra.mxu0 0
        %1931 = vmatprep.subr.bf16.mxu0 0
        %1932 = vmatpush2.bf16.msra.mxu0 0
        %1933 = vmatprep.subr.bf16.mxu0 0
        %1934 = vmatpush2.bf16.msra.mxu0 0
        %1935 = vmatprep.subr.bf16.mxu0 0
        %1936 = vmatpush2.bf16.msra.mxu0 0
        %1937 = vmatprep.subr.bf16.mxu0 0
        %1938 = vmatpush2.bf16.msra.mxu0 0
        %1939 = vmatprep.subr.bf16.mxu0 0
        %1940 = vmatpush2.bf16.msra.mxu0 0
        %1941 = vmatprep.mubr.bf16.mxu0 0
        %1942 = vmatmul.mubr.bf16.gmra.mxu0 %v1907
        %v1943 = vpop.f32.mrf.mxu0
        %v1944 = vadd.f32 %v1892, %v1943
        %v1945 = vpop.f32.mrf.mxu0
        %v1946 = vpop.f32.mrf.mxu0
        %v1947 = vpop.f32.mrf.mxu0
        %1948 = vdwg.mxu0
        %v1949 = vmul.f32 %v1944, %v1944
        %v1950 = vmul.f32 %v1944, %v1949
        %v1951 = vmul.f32 %v1950, 0.044715
        %v1952 = vadd.f32 %v1944, %v1951
        %v1953 = vmul.f32 %v1952, 0.7978846
        %v1954 = vtanh.pop %v1953
        %v1955 = vadd.f32 %v1954, 1.0
        %v1956 = vmul.f32 %v1955, 0.5
        %v1957 = vmul.f32 %v1944, %v1956
        %v1958 = vpack.c.bf16 %v1957, %v1957
        %v1959 = vld [vmem:[%s27] sm:$0xf]
        %v1960 = vld [vmem:[%s27 + $0x4] sm:$0xf]
        %v1961 = vld [vmem:[%s27 + $0x8] sm:$0xf]
        %v1962 = vld [vmem:[%s27 + $0xc] sm:$0xf]
        %v1963 = vld [vmem:[%s27 + $0x10] sm:$0xf]
        %v1964 = vld [vmem:[%s27 + $0x14] sm:$0xf]
        %v1965 = vld [vmem:[%s27 + $0x18] sm:$0xf]
        %v1966 = vld [vmem:[%s27 + $0x1c] sm:$0xf]
        %v1967 = vld [vmem:[%s29] sm:$0x1]
        %v1969 = vlaneseq
        %v1970 = vshrl.u32 %v1969, 7
        %v1971 = vsub.s32 0, %v1970
        %v1972 = vrot.slane %v1967, %v1971
        %v1982 = vunpack.c.l.b16 %v1959
        %v1983 = vunpack.c.l.b16 %v1960
        %v1984 = vunpack.c.l.b16 %v1961
        %v1985 = vunpack.c.l.b16 %v1962
        %v1986 = vunpack.c.l.b16 %v1963
        %v1987 = vunpack.c.l.b16 %v1964
        %v1988 = vunpack.c.l.b16 %v1965
        %v1989 = vunpack.c.l.b16 %v1966
        %v1990 = vpack.c.b16 %v1983, %v1982
        %v1991 = vpack.c.b16 %v1985, %v1984
        %v1992 = vpack.c.b16 %v1987, %v1986
        %v1993 = vpack.c.b16 %v1989, %v1988
        %vm1998 = vcmask 523264
        %v2000 = vsel %vm1998, %v1958, 0
        %2002 = vmatprep.subr.bf16.mxu0 0
        %2003 = vmatpush1.bf16.msra.mxu0 0
        %2004 = vmatprep.subr.bf16.mxu0 0
        %2005 = vmatpush1.bf16.msra.mxu0 0
        %2006 = vmatprep.subr.bf16.mxu0 0
        %2007 = vmatpush1.bf16.msra.mxu0 0
        %2008 = vmatprep.subr.bf16.mxu0 0
        %2009 = vmatpush1.bf16.msra.mxu0 0
        %2010 = vmatprep.subr.bf16.mxu0 0
        %2011 = vmatpush1.bf16.msra.mxu0 %v1993
        %2012 = vmatprep.subr.bf16.mxu0 0
        %2013 = vmatpush1.bf16.msra.mxu0 %v1992
        %2014 = vmatprep.subr.bf16.mxu0 0
        %2015 = vmatpush1.bf16.msra.mxu0 %v1991
        %2016 = vmatprep.subr.bf16.mxu0 0
        %2017 = vmatpush1.bf16.msra.mxu0 %v1990
        %2018 = vmatprep.subr.bf16.mxu0 0
        %2019 = vmatpush2.bf16.msra.mxu0 0
        %2020 = vmatprep.subr.bf16.mxu0 0
        %2021 = vmatpush2.bf16.msra.mxu0 0
        %2022 = vmatprep.subr.bf16.mxu0 0
        %2023 = vmatpush2.bf16.msra.mxu0 0
        %2024 = vmatprep.subr.bf16.mxu0 0
        %2025 = vmatpush2.bf16.msra.mxu0 0
        %2026 = vmatprep.subr.bf16.mxu0 0
        %2027 = vmatpush2.bf16.msra.mxu0 0
        %2028 = vmatprep.subr.bf16.mxu0 0
        %2029 = vmatpush2.bf16.msra.mxu0 0
        %2030 = vmatprep.subr.bf16.mxu0 0
        %2031 = vmatpush2.bf16.msra.mxu0 0
        %2032 = vmatprep.subr.bf16.mxu0 0
        %2033 = vmatpush2.bf16.msra.mxu0 0
        %2034 = vmatprep.mubr.bf16.mxu0 0
        %2035 = vmatmul.mubr.bf16.gmra.mxu0 %v2000
        %v2036 = vpop.f32.mrf.mxu0
        %v2037 = vadd.f32 %v1972, %v2036
        %v2038 = vpop.f32.mrf.mxu0
        %v2039 = vpop.f32.mrf.mxu0
        %v2040 = vpop.f32.mrf.mxu0
        %2041 = vdwg.mxu0
        %v2042 = vadd.f32 %v1881, %v2037
        %v2043 = vsel %vm1457, %v2042, 0.0
        %2044 = vadd.xlane.f32.xlu0 %v2043
        %v2045 = vpop.xlane.xlu0 %2044
        %v2046 = vmul.f32 %v2045, %v1461
        %v2047 = vsub.f32 %v2042, %v2046
        %v2048 = vmul.f32 %v2047, %v2047
        %v2049 = vsel %vm1457, %v2048, 0.0
        %2050 = vadd.xlane.f32.xlu0 %v2049
        %v2051 = vpop.xlane.xlu0 %2050
        %v2052 = vmul.f32 %v2051, %v1461
        %v2053 = vadd.f32 %v2052, 1e-12
        %v2054 = vrsqrt.pop %v2053
        %v2055 = vmul.f32 %v2047, %v2054
        %v2056 = vld [vmem:[%s31] sm:$0x1]
        %v2058 = vlaneseq
        %v2059 = vshrl.u32 %v2058, 7
        %v2060 = vsub.s32 0, %v2059
        %v2061 = vrot.slane %v2056, %v2060
        %v2063 = vmul.f32 %v2055, %v2061
        %v2064 = vld [vmem:[%s33] sm:$0x1]
        %v2066 = vlaneseq
        %v2067 = vshrl.u32 %v2066, 7
        %v2068 = vsub.s32 0, %v2067
        %v2069 = vrot.slane %v2064, %v2068
        %v2071 = vadd.f32 %v2063, %v2069
        %v2072 = vld [vmem:[%s1447] sm:$0xff]
        %v2073 = vsel %vm1457, %v2072, 0.0
        %2074 = vadd.xlane.f32.xlu0 %v2073
        %v2075 = vpop.xlane.xlu0 %2074
        %v2076 = vmul.f32 %v2075, %v1461
        %v2077 = vsub.f32 %v2072, %v2076
        %v2078 = vmul.f32 %v2077, %v2077
        %v2079 = vsel %vm1457, %v2078, 0.0
        %2080 = vadd.xlane.f32.xlu0 %v2079
        %v2081 = vpop.xlane.xlu0 %2080
        %v2082 = vmul.f32 %v2081, %v1461
        %v2083 = vadd.f32 %v2082, 1e-12
        %v2084 = vrsqrt.pop %v2083
        %v2085 = vmul.f32 %v2077, %v2084
        %v2086 = vld [vmem:[%s35] sm:$0x1]
        %v2088 = vlaneseq
        %v2089 = vshrl.u32 %v2088, 7
        %v2090 = vsub.s32 0, %v2089
        %v2091 = vrot.slane %v2086, %v2090
        %v2093 = vmul.f32 %v2085, %v2091
        %v2094 = vld [vmem:[%s37] sm:$0x1]
        %v2096 = vlaneseq
        %v2097 = vshrl.u32 %v2096, 7
        %v2098 = vsub.s32 0, %v2097
        %v2099 = vrot.slane %v2094, %v2098
        %v2101 = vadd.f32 %v2093, %v2099
        %v2102 = vpack.c.bf16 %v2101, %v2101
        %v2103 = vld [vmem:[%s39] sm:$0xf]
        %v2104 = vld [vmem:[%s39 + $0x4] sm:$0xf]
        %v2105 = vld [vmem:[%s39 + $0x8] sm:$0xf]
        %v2106 = vld [vmem:[%s39 + $0xc] sm:$0xf]
        %v2107 = vld [vmem:[%s41] sm:$0x1]
        %v2109 = vlaneseq
        %v2110 = vshrl.u32 %v2109, 7
        %v2111 = vsub.s32 0, %v2110
        %v2112 = vrot.slane %v2107, %v2111
        %v2118 = vunpack.c.l.b16 %v2103
        %v2119 = vunpack.c.l.b16 %v2104
        %v2120 = vunpack.c.l.b16 %v2105
        %v2121 = vunpack.c.l.b16 %v2106
        %v2122 = vpack.c.b16 %v2119, %v2118
        %v2123 = vpack.c.b16 %v2121, %v2120
        %v2127 = vsel %vm1457, %v2102, 0
        %2129 = vmatprep.subr.bf16.mxu0 0
        %2130 = vmatpush1.bf16.msra.mxu0 0
        %2131 = vmatprep.subr.bf16.mxu0 0
        %2132 = vmatpush1.bf16.msra.mxu0 0
        %2133 = vmatprep.subr.bf16.mxu0 0
        %2134 = vmatpush1.bf16.msra.mxu0 0
        %2135 = vmatprep.subr.bf16.mxu0 0
        %2136 = vmatpush1.bf16.msra.mxu0 0
        %2137 = vmatprep.subr.bf16.mxu0 0
        %2138 = vmatpush1.bf16.msra.mxu0 0
        %2139 = vmatprep.subr.bf16.mxu0 0
        %2140 = vmatpush1.bf16.msra.mxu0 0
        %2141 = vmatprep.subr.bf16.mxu0 0
        %2142 = vmatpush1.bf16.msra.mxu0 %v2123
        %2143 = vmatprep.subr.bf16.mxu0 0
        %2144 = vmatpush1.bf16.msra.mxu0 %v2122
        %2145 = vmatprep.subr.bf16.mxu0 0
        %2146 = vmatpush2.bf16.msra.mxu0 0
        %2147 = vmatprep.subr.bf16.mxu0 0
        %2148 = vmatpush2.bf16.msra.mxu0 0
        %2149 = vmatprep.subr.bf16.mxu0 0
        %2150 = vmatpush2.bf16.msra.mxu0 0
        %2151 = vmatprep.subr.bf16.mxu0 0
        %2152 = vmatpush2.bf16.msra.mxu0 0
        %2153 = vmatprep.subr.bf16.mxu0 0
        %2154 = vmatpush2.bf16.msra.mxu0 0
        %2155 = vmatprep.subr.bf16.mxu0 0
        %2156 = vmatpush2.bf16.msra.mxu0 0
        %2157 = vmatprep.subr.bf16.mxu0 0
        %2158 = vmatpush2.bf16.msra.mxu0 0
        %2159 = vmatprep.subr.bf16.mxu0 0
        %2160 = vmatpush2.bf16.msra.mxu0 0
        %2161 = vmatprep.mubr.bf16.mxu0 0
        %2162 = vmatmul.mubr.bf16.gmra.mxu0 %v2127
        %v2163 = vpop.f32.mrf.mxu0
        %v2164 = vadd.f32 %v2112, %v2163
        %v2165 = vpop.f32.mrf.mxu0
        %v2166 = vpop.f32.mrf.mxu0
        %v2167 = vpop.f32.mrf.mxu0
        %2168 = vdwg.mxu0
        %v2169 = vpack.c.bf16 %v2164, %v2164
        %2171 = vrot.lane.b32.xlu0 %v2169, 96
        %v2172 = vpop.permute.xlu0 %2171
        %v2174 = vsel %vm1559, %v2169, 0
        %v2177 = vsel %vm1559, %v2172, 0
        %2179 = vmatprep.subr.bf16.mxu0 0
        %2180 = vmatpush1.bf16.xpose.msra.mxu0 0
        %2181 = vmatprep.subr.bf16.mxu0 0
        %2182 = vmatpush1.bf16.xpose.msra.mxu0 0
        %2183 = vmatprep.subr.bf16.mxu0 0
        %2184 = vmatpush1.bf16.xpose.msra.mxu0 0
        %2185 = vmatprep.subr.bf16.mxu0 0
        %2186 = vmatpush1.bf16.xpose.msra.mxu0 0
        %2187 = vmatprep.subr.bf16.mxu0 0
        %2188 = vmatpush1.bf16.xpose.msra.mxu0 0
        %2189 = vmatprep.subr.bf16.mxu0 0
        %2190 = vmatpush1.bf16.xpose.msra.mxu0 0
        %2191 = vmatprep.subr.bf16.mxu0 0
        %2192 = vmatpush1.bf16.xpose.msra.mxu0 0
        %2193 = vmatprep.subr.bf16.mxu0 0
        %2194 = vmatpush1.bf16.xpose.msra.mxu0 %v2177
        %2195 = vmatprep.subr.bf16.mxu0 0
        %2196 = vmatpush2.bf16.xpose.msra.mxu0 0
        %2197 = vmatprep.subr.bf16.mxu0 0
        %2198 = vmatpush2.bf16.xpose.msra.mxu0 0
        %2199 = vmatprep.subr.bf16.mxu0 0
        %2200 = vmatpush2.bf16.xpose.msra.mxu0 0
        %2201 = vmatprep.subr.bf16.mxu0 0
        %2202 = vmatpush2.bf16.xpose.msra.mxu0 0
        %2203 = vmatprep.subr.bf16.mxu0 0
        %2204 = vmatpush2.bf16.xpose.msra.mxu0 0
        %2205 = vmatprep.subr.bf16.mxu0 0
        %2206 = vmatpush2.bf16.xpose.msra.mxu0 0
        %2207 = vmatprep.subr.bf16.mxu0 0
        %2208 = vmatpush2.bf16.xpose.msra.mxu0 0
        %2209 = vmatprep.subr.bf16.mxu0 0
        %2210 = vmatpush2.bf16.xpose.msra.mxu0 0
        %2211 = vmatprep.mubr.bf16.mxu0 0
        %2212 = vmatmul.mubr.bf16.gmra.mxu0 %v2174
        %v2213 = vpop.f32.mrf.mxu0
        %v2214 = vadd.f32 0.0, %v2213
        %v2215 = vpop.f32.mrf.mxu0
        %v2216 = vpop.f32.mrf.mxu0
        %v2217 = vpop.f32.mrf.mxu0
        %2218 = vdwg.mxu0
        %v2219 = vmul.f32 %v2214, 0.25
        %v2220 = vlaneseq
        %v2221 = vshrl.u32 %v2220, 7
        %v2222 = vlaneseq
        %v2223 = vand.u32 %v2222, 127
        %vm2224 = vcmp.le.s32.totalorder %v2223, %v2221
        %v2225 = vsel %vm2224, %v2219, -1e+30
        %v2226 = vsel %vm1607, %v2225, -inf
        %2227 = vmax.xlane.f32.xlu0 %v2226
        %v2228 = vpop.xlane.xlu0 %2227
        %v2229 = vsub.f32 %v2225, %v2228
        %v2230 = vmul.f32 %v2229, 1.442695
        %v2231 = vpow.pop %v2230
        %v2232 = vsel %vm1607, %v2231, 0.0
        %2233 = vadd.xlane.f32.xlu0 %v2232
        %v2234 = vpop.xlane.xlu0 %2233
        %v2235 = vrcp.pop %v2234
        %v2236 = vmul.f32 %v2231, %v2235
        %v2237 = vpack.c.bf16 %v2236, %v2236
        %2238 = vrot.lane.b32.xlu0 %v2169, 64
        %v2239 = vpop.permute.xlu0 %2238
        %v2241 = vsel %vm1607, %v2237, 0
        %v2244 = vsel %vm1625, %v2239, 0
        %2246 = vmatprep.subr.bf16.mxu0 0
        %2247 = vmatpush1.bf16.msra.mxu0 0
        %2248 = vmatprep.subr.bf16.mxu0 0
        %2249 = vmatpush1.bf16.msra.mxu0 0
        %2250 = vmatprep.subr.bf16.mxu0 0
        %2251 = vmatpush1.bf16.msra.mxu0 0
        %2252 = vmatprep.subr.bf16.mxu0 0
        %2253 = vmatpush1.bf16.msra.mxu0 0
        %2254 = vmatprep.subr.bf16.mxu0 0
        %2255 = vmatpush1.bf16.msra.mxu0 0
        %2256 = vmatprep.subr.bf16.mxu0 0
        %2257 = vmatpush1.bf16.msra.mxu0 0
        %2258 = vmatprep.subr.bf16.mxu0 0
        %2259 = vmatpush1.bf16.msra.mxu0 0
        %2260 = vmatprep.subr.bf16.mxu0 0
        %2261 = vmatpush1.bf16.msra.mxu0 %v2244
        %2262 = vmatprep.subr.bf16.mxu0 0
        %2263 = vmatpush2.bf16.msra.mxu0 0
        %2264 = vmatprep.subr.bf16.mxu0 0
        %2265 = vmatpush2.bf16.msra.mxu0 0
        %2266 = vmatprep.subr.bf16.mxu0 0
        %2267 = vmatpush2.bf16.msra.mxu0 0
        %2268 = vmatprep.subr.bf16.mxu0 0
        %2269 = vmatpush2.bf16.msra.mxu0 0
        %2270 = vmatprep.subr.bf16.mxu0 0
        %2271 = vmatpush2.bf16.msra.mxu0 0
        %2272 = vmatprep.subr.bf16.mxu0 0
        %2273 = vmatpush2.bf16.msra.mxu0 0
        %2274 = vmatprep.subr.bf16.mxu0 0
        %2275 = vmatpush2.bf16.msra.mxu0 0
        %2276 = vmatprep.subr.bf16.mxu0 0
        %2277 = vmatpush2.bf16.msra.mxu0 0
        %2278 = vmatprep.mubr.bf16.mxu0 0
        %2279 = vmatmul.mubr.bf16.gmra.mxu0 %v2241
        %v2280 = vpop.f32.mrf.mxu0
        %v2281 = vadd.f32 0.0, %v2280
        %v2282 = vpop.f32.mrf.mxu0
        %v2283 = vpop.f32.mrf.mxu0
        %v2284 = vpop.f32.mrf.mxu0
        %2285 = vdwg.mxu0
        %2286 = vrot.lane.b32.xlu0 %v2169, 112
        %v2287 = vpop.permute.xlu0 %2286
        %2288 = vrot.lane.b32.xlu0 %v2169, 80
        %v2289 = vpop.permute.xlu0 %2288
        %v2291 = vsel %vm1559, %v2287, 0
        %v2294 = vsel %vm1559, %v2289, 0
        %2296 = vmatprep.subr.bf16.mxu0 0
        %2297 = vmatpush1.bf16.xpose.msra.mxu0 0
        %2298 = vmatprep.subr.bf16.mxu0 0
        %2299 = vmatpush1.bf16.xpose.msra.mxu0 0
        %2300 = vmatprep.subr.bf16.mxu0 0
        %2301 = vmatpush1.bf16.xpose.msra.mxu0 0
        %2302 = vmatprep.subr.bf16.mxu0 0
        %2303 = vmatpush1.bf16.xpose.msra.mxu0 0
        %2304 = vmatprep.subr.bf16.mxu0 0
        %2305 = vmatpush1.bf16.xpose.msra.mxu0 0
        %2306 = vmatprep.subr.bf16.mxu0 0
        %2307 = vmatpush1.bf16.xpose.msra.mxu0 0
        %2308 = vmatprep.subr.bf16.mxu0 0
        %2309 = vmatpush1.bf16.xpose.msra.mxu0 0
        %2310 = vmatprep.subr.bf16.mxu0 0
        %2311 = vmatpush1.bf16.xpose.msra.mxu0 %v2294
        %2312 = vmatprep.subr.bf16.mxu0 0
        %2313 = vmatpush2.bf16.xpose.msra.mxu0 0
        %2314 = vmatprep.subr.bf16.mxu0 0
        %2315 = vmatpush2.bf16.xpose.msra.mxu0 0
        %2316 = vmatprep.subr.bf16.mxu0 0
        %2317 = vmatpush2.bf16.xpose.msra.mxu0 0
        %2318 = vmatprep.subr.bf16.mxu0 0
        %2319 = vmatpush2.bf16.xpose.msra.mxu0 0
        %2320 = vmatprep.subr.bf16.mxu0 0
        %2321 = vmatpush2.bf16.xpose.msra.mxu0 0
        %2322 = vmatprep.subr.bf16.mxu0 0
        %2323 = vmatpush2.bf16.xpose.msra.mxu0 0
        %2324 = vmatprep.subr.bf16.mxu0 0
        %2325 = vmatpush2.bf16.xpose.msra.mxu0 0
        %2326 = vmatprep.subr.bf16.mxu0 0
        %2327 = vmatpush2.bf16.xpose.msra.mxu0 0
        %2328 = vmatprep.mubr.bf16.mxu0 0
        %2329 = vmatmul.mubr.bf16.gmra.mxu0 %v2291
        %v2330 = vpop.f32.mrf.mxu0
        %v2331 = vadd.f32 0.0, %v2330
        %v2332 = vpop.f32.mrf.mxu0
        %v2333 = vpop.f32.mrf.mxu0
        %v2334 = vpop.f32.mrf.mxu0
        %2335 = vdwg.mxu0
        %v2336 = vmul.f32 %v2331, 0.25
        %v2337 = vsel %vm2224, %v2336, -1e+30
        %v2338 = vsel %vm1607, %v2337, -inf
        %2339 = vmax.xlane.f32.xlu0 %v2338
        %v2340 = vpop.xlane.xlu0 %2339
        %v2341 = vsub.f32 %v2337, %v2340
        %v2342 = vmul.f32 %v2341, 1.442695
        %v2343 = vpow.pop %v2342
        %v2344 = vsel %vm1607, %v2343, 0.0
        %2345 = vadd.xlane.f32.xlu0 %v2344
        %v2346 = vpop.xlane.xlu0 %2345
        %v2347 = vrcp.pop %v2346
        %v2348 = vmul.f32 %v2343, %v2347
        %v2349 = vpack.c.bf16 %v2348, %v2348
        %2350 = vrot.lane.b32.xlu0 %v2169, 48
        %v2351 = vpop.permute.xlu0 %2350
        %v2353 = vsel %vm1607, %v2349, 0
        %v2356 = vsel %vm1625, %v2351, 0
        %2358 = vmatprep.subr.bf16.mxu0 0
        %2359 = vmatpush1.bf16.msra.mxu0 0
        %2360 = vmatprep.subr.bf16.mxu0 0
        %2361 = vmatpush1.bf16.msra.mxu0 0
        %2362 = vmatprep.subr.bf16.mxu0 0
        %2363 = vmatpush1.bf16.msra.mxu0 0
        %2364 = vmatprep.subr.bf16.mxu0 0
        %2365 = vmatpush1.bf16.msra.mxu0 0
        %2366 = vmatprep.subr.bf16.mxu0 0
        %2367 = vmatpush1.bf16.msra.mxu0 0
        %2368 = vmatprep.subr.bf16.mxu0 0
        %2369 = vmatpush1.bf16.msra.mxu0 0
        %2370 = vmatprep.subr.bf16.mxu0 0
        %2371 = vmatpush1.bf16.msra.mxu0 0
        %2372 = vmatprep.subr.bf16.mxu0 0
        %2373 = vmatpush1.bf16.msra.mxu0 %v2356
        %2374 = vmatprep.subr.bf16.mxu0 0
        %2375 = vmatpush2.bf16.msra.mxu0 0
        %2376 = vmatprep.subr.bf16.mxu0 0
        %2377 = vmatpush2.bf16.msra.mxu0 0
        %2378 = vmatprep.subr.bf16.mxu0 0
        %2379 = vmatpush2.bf16.msra.mxu0 0
        %2380 = vmatprep.subr.bf16.mxu0 0
        %2381 = vmatpush2.bf16.msra.mxu0 0
        %2382 = vmatprep.subr.bf16.mxu0 0
        %2383 = vmatpush2.bf16.msra.mxu0 0
        %2384 = vmatprep.subr.bf16.mxu0 0
        %2385 = vmatpush2.bf16.msra.mxu0 0
        %2386 = vmatprep.subr.bf16.mxu0 0
        %2387 = vmatpush2.bf16.msra.mxu0 0
        %2388 = vmatprep.subr.bf16.mxu0 0
        %2389 = vmatpush2.bf16.msra.mxu0 0
        %2390 = vmatprep.mubr.bf16.mxu0 0
        %2391 = vmatmul.mubr.bf16.gmra.mxu0 %v2353
        %v2392 = vpop.f32.mrf.mxu0
        %v2393 = vadd.f32 0.0, %v2392
        %v2394 = vpop.f32.mrf.mxu0
        %v2395 = vpop.f32.mrf.mxu0
        %v2396 = vpop.f32.mrf.mxu0
        %2397 = vdwg.mxu0
        %2399 = vrot.lane.b32.xlu0 %v2393, 16
        %v2400 = vpop.permute.xlu0 %2399
        %v2402 = vsel %vm1559, %v2281, %v2400
        %v2403 = vpack.c.bf16 %v2402, %v2402
        %v2404 = vld [vmem:[%s43] sm:$0xf]
        %v2405 = vld [vmem:[%s43 + $0x4] sm:$0xf]
        %v2406 = vld [vmem:[%s43 + $0x8] sm:$0xf]
        %v2407 = vld [vmem:[%s43 + $0xc] sm:$0xf]
        %v2408 = vld [vmem:[%s45] sm:$0x1]
        %v2410 = vlaneseq
        %v2411 = vshrl.u32 %v2410, 7
        %v2412 = vsub.s32 0, %v2411
        %v2413 = vrot.slane %v2408, %v2412
        %v2419 = vunpack.c.l.b16 %v2404
        %v2420 = vunpack.c.l.b16 %v2405
        %v2421 = vunpack.c.l.b16 %v2406
        %v2422 = vunpack.c.l.b16 %v2407
        %v2423 = vpack.c.b16 %v2420, %v2419
        %v2424 = vpack.c.b16 %v2422, %v2421
        %v2428 = vsel %vm1457, %v2403, 0
        %2430 = vmatprep.subr.bf16.mxu0 0
        %2431 = vmatpush1.bf16.msra.mxu0 0
        %2432 = vmatprep.subr.bf16.mxu0 0
        %2433 = vmatpush1.bf16.msra.mxu0 0
        %2434 = vmatprep.subr.bf16.mxu0 0
        %2435 = vmatpush1.bf16.msra.mxu0 0
        %2436 = vmatprep.subr.bf16.mxu0 0
        %2437 = vmatpush1.bf16.msra.mxu0 0
        %2438 = vmatprep.subr.bf16.mxu0 0
        %2439 = vmatpush1.bf16.msra.mxu0 0
        %2440 = vmatprep.subr.bf16.mxu0 0
        %2441 = vmatpush1.bf16.msra.mxu0 0
        %2442 = vmatprep.subr.bf16.mxu0 0
        %2443 = vmatpush1.bf16.msra.mxu0 %v2424
        %2444 = vmatprep.subr.bf16.mxu0 0
        %2445 = vmatpush1.bf16.msra.mxu0 %v2423
        %2446 = vmatprep.subr.bf16.mxu0 0
        %2447 = vmatpush2.bf16.msra.mxu0 0
        %2448 = vmatprep.subr.bf16.mxu0 0
        %2449 = vmatpush2.bf16.msra.mxu0 0
        %2450 = vmatprep.subr.bf16.mxu0 0
        %2451 = vmatpush2.bf16.msra.mxu0 0
        %2452 = vmatprep.subr.bf16.mxu0 0
        %2453 = vmatpush2.bf16.msra.mxu0 0
        %2454 = vmatprep.subr.bf16.mxu0 0
        %2455 = vmatpush2.bf16.msra.mxu0 0
        %2456 = vmatprep.subr.bf16.mxu0 0
        %2457 = vmatpush2.bf16.msra.mxu0 0
        %2458 = vmatprep.subr.bf16.mxu0 0
        %2459 = vmatpush2.bf16.msra.mxu0 0
        %2460 = vmatprep.subr.bf16.mxu0 0
        %2461 = vmatpush2.bf16.msra.mxu0 0
        %2462 = vmatprep.mubr.bf16.mxu0 0
        %2463 = vmatmul.mubr.bf16.gmra.mxu0 %v2428
        %v2464 = vpop.f32.mrf.mxu0
        %v2465 = vadd.f32 %v2413, %v2464
        %v2466 = vpop.f32.mrf.mxu0
        %v2467 = vpop.f32.mrf.mxu0
        %v2468 = vpop.f32.mrf.mxu0
        %2469 = vdwg.mxu0
        %v2470 = vadd.f32 %v2101, %v2465
        %v2471 = vsel %vm1457, %v2470, 0.0
        %2472 = vadd.xlane.f32.xlu0 %v2471
        %v2473 = vpop.xlane.xlu0 %2472
        %v2474 = vmul.f32 %v2473, %v1461
        %v2475 = vsub.f32 %v2470, %v2474
        %v2476 = vmul.f32 %v2475, %v2475
        %v2477 = vsel %vm1457, %v2476, 0.0
        %2478 = vadd.xlane.f32.xlu0 %v2477
        %v2479 = vpop.xlane.xlu0 %2478
        %v2480 = vmul.f32 %v2479, %v1461
        %v2481 = vadd.f32 %v2480, 1e-12
        %v2482 = vrsqrt.pop %v2481
        %v2483 = vmul.f32 %v2475, %v2482
        %v2484 = vld [vmem:[%s47] sm:$0x1]
        %v2486 = vlaneseq
        %v2487 = vshrl.u32 %v2486, 7
        %v2488 = vsub.s32 0, %v2487
        %v2489 = vrot.slane %v2484, %v2488
        %v2491 = vmul.f32 %v2483, %v2489
        %v2492 = vld [vmem:[%s49] sm:$0x1]
        %v2494 = vlaneseq
        %v2495 = vshrl.u32 %v2494, 7
        %v2496 = vsub.s32 0, %v2495
        %v2497 = vrot.slane %v2492, %v2496
        %v2499 = vadd.f32 %v2491, %v2497
        %v2500 = vpack.c.bf16 %v2499, %v2499
        %v2501 = vld [vmem:[%s51] sm:$0xf]
        %v2502 = vld [vmem:[%s51 + $0x4] sm:$0xf]
        %v2503 = vld [vmem:[%s51 + $0x8] sm:$0xf]
        %v2504 = vld [vmem:[%s51 + $0xc] sm:$0xf]
        %v2505 = vld [vmem:[%s53] sm:$0x1]
        %v2507 = vlaneseq
        %v2508 = vshrl.u32 %v2507, 7
        %v2509 = vsub.s32 0, %v2508
        %v2510 = vrot.slane %v2505, %v2509
        %v2516 = vunpack.c.l.b16 %v2501
        %v2517 = vunpack.c.l.b16 %v2502
        %v2518 = vunpack.c.l.b16 %v2503
        %v2519 = vunpack.c.l.b16 %v2504
        %v2520 = vpack.c.b16 %v2517, %v2516
        %v2521 = vpack.c.b16 %v2519, %v2518
        %v2525 = vsel %vm1457, %v2500, 0
        %2527 = vmatprep.subr.bf16.mxu0 0
        %2528 = vmatpush1.bf16.msra.mxu0 0
        %2529 = vmatprep.subr.bf16.mxu0 0
        %2530 = vmatpush1.bf16.msra.mxu0 0
        %2531 = vmatprep.subr.bf16.mxu0 0
        %2532 = vmatpush1.bf16.msra.mxu0 0
        %2533 = vmatprep.subr.bf16.mxu0 0
        %2534 = vmatpush1.bf16.msra.mxu0 0
        %2535 = vmatprep.subr.bf16.mxu0 0
        %2536 = vmatpush1.bf16.msra.mxu0 0
        %2537 = vmatprep.subr.bf16.mxu0 0
        %2538 = vmatpush1.bf16.msra.mxu0 0
        %2539 = vmatprep.subr.bf16.mxu0 0
        %2540 = vmatpush1.bf16.msra.mxu0 %v2521
        %2541 = vmatprep.subr.bf16.mxu0 0
        %2542 = vmatpush1.bf16.msra.mxu0 %v2520
        %2543 = vmatprep.subr.bf16.mxu0 0
        %2544 = vmatpush2.bf16.msra.mxu0 0
        %2545 = vmatprep.subr.bf16.mxu0 0
        %2546 = vmatpush2.bf16.msra.mxu0 0
        %2547 = vmatprep.subr.bf16.mxu0 0
        %2548 = vmatpush2.bf16.msra.mxu0 0
        %2549 = vmatprep.subr.bf16.mxu0 0
        %2550 = vmatpush2.bf16.msra.mxu0 0
        %2551 = vmatprep.subr.bf16.mxu0 0
        %2552 = vmatpush2.bf16.msra.mxu0 0
        %2553 = vmatprep.subr.bf16.mxu0 0
        %2554 = vmatpush2.bf16.msra.mxu0 0
        %2555 = vmatprep.subr.bf16.mxu0 0
        %2556 = vmatpush2.bf16.msra.mxu0 0
        %2557 = vmatprep.subr.bf16.mxu0 0
        %2558 = vmatpush2.bf16.msra.mxu0 0
        %2559 = vmatprep.mubr.bf16.mxu0 0
        %2560 = vmatmul.mubr.bf16.gmra.mxu0 %v2525
        %v2561 = vpop.f32.mrf.mxu0
        %v2562 = vadd.f32 %v2510, %v2561
        %v2563 = vpop.f32.mrf.mxu0
        %v2564 = vpop.f32.mrf.mxu0
        %v2565 = vpop.f32.mrf.mxu0
        %2566 = vdwg.mxu0
        %v2567 = vpack.c.bf16 %v2071, %v2071
        %v2568 = vld [vmem:[%s55] sm:$0xf]
        %v2569 = vld [vmem:[%s55 + $0x4] sm:$0xf]
        %v2570 = vld [vmem:[%s55 + $0x8] sm:$0xf]
        %v2571 = vld [vmem:[%s55 + $0xc] sm:$0xf]
        %v2572 = vld [vmem:[%s57] sm:$0x1]
        %v2574 = vlaneseq
        %v2575 = vshrl.u32 %v2574, 7
        %v2576 = vsub.s32 0, %v2575
        %v2577 = vrot.slane %v2572, %v2576
        %v2583 = vunpack.c.l.b16 %v2568
        %v2584 = vunpack.c.l.b16 %v2569
        %v2585 = vunpack.c.l.b16 %v2570
        %v2586 = vunpack.c.l.b16 %v2571
        %v2587 = vpack.c.b16 %v2584, %v2583
        %v2588 = vpack.c.b16 %v2586, %v2585
        %v2592 = vsel %vm1457, %v2567, 0
        %2594 = vmatprep.subr.bf16.mxu0 0
        %2595 = vmatpush1.bf16.msra.mxu0 0
        %2596 = vmatprep.subr.bf16.mxu0 0
        %2597 = vmatpush1.bf16.msra.mxu0 0
        %2598 = vmatprep.subr.bf16.mxu0 0
        %2599 = vmatpush1.bf16.msra.mxu0 0
        %2600 = vmatprep.subr.bf16.mxu0 0
        %2601 = vmatpush1.bf16.msra.mxu0 0
        %2602 = vmatprep.subr.bf16.mxu0 0
        %2603 = vmatpush1.bf16.msra.mxu0 0
        %2604 = vmatprep.subr.bf16.mxu0 0
        %2605 = vmatpush1.bf16.msra.mxu0 0
        %2606 = vmatprep.subr.bf16.mxu0 0
        %2607 = vmatpush1.bf16.msra.mxu0 %v2588
        %2608 = vmatprep.subr.bf16.mxu0 0
        %2609 = vmatpush1.bf16.msra.mxu0 %v2587
        %2610 = vmatprep.subr.bf16.mxu0 0
        %2611 = vmatpush2.bf16.msra.mxu0 0
        %2612 = vmatprep.subr.bf16.mxu0 0
        %2613 = vmatpush2.bf16.msra.mxu0 0
        %2614 = vmatprep.subr.bf16.mxu0 0
        %2615 = vmatpush2.bf16.msra.mxu0 0
        %2616 = vmatprep.subr.bf16.mxu0 0
        %2617 = vmatpush2.bf16.msra.mxu0 0
        %2618 = vmatprep.subr.bf16.mxu0 0
        %2619 = vmatpush2.bf16.msra.mxu0 0
        %2620 = vmatprep.subr.bf16.mxu0 0
        %2621 = vmatpush2.bf16.msra.mxu0 0
        %2622 = vmatprep.subr.bf16.mxu0 0
        %2623 = vmatpush2.bf16.msra.mxu0 0
        %2624 = vmatprep.subr.bf16.mxu0 0
        %2625 = vmatpush2.bf16.msra.mxu0 0
        %2626 = vmatprep.mubr.bf16.mxu0 0
        %2627 = vmatmul.mubr.bf16.gmra.mxu0 %v2592
        %v2628 = vpop.f32.mrf.mxu0
        %v2629 = vadd.f32 %v2577, %v2628
        %v2630 = vpop.f32.mrf.mxu0
        %v2631 = vpop.f32.mrf.mxu0
        %v2632 = vpop.f32.mrf.mxu0
        %2633 = vdwg.mxu0
        %v2634 = vpack.c.bf16 %v2562, %v2562
        %v2635 = vpack.c.bf16 %v2629, %v2629
        %v2637 = vsel %vm1559, %v2634, 0
        %v2640 = vsel %vm1559, %v2635, 0
        %2642 = vmatprep.subr.bf16.mxu0 0
        %2643 = vmatpush1.bf16.xpose.msra.mxu0 0
        %2644 = vmatprep.subr.bf16.mxu0 0
        %2645 = vmatpush1.bf16.xpose.msra.mxu0 0
        %2646 = vmatprep.subr.bf16.mxu0 0
        %2647 = vmatpush1.bf16.xpose.msra.mxu0 0
        %2648 = vmatprep.subr.bf16.mxu0 0
        %2649 = vmatpush1.bf16.xpose.msra.mxu0 0
        %2650 = vmatprep.subr.bf16.mxu0 0
        %2651 = vmatpush1.bf16.xpose.msra.mxu0 0
        %2652 = vmatprep.subr.bf16.mxu0 0
        %2653 = vmatpush1.bf16.xpose.msra.mxu0 0
        %2654 = vmatprep.subr.bf16.mxu0 0
        %2655 = vmatpush1.bf16.xpose.msra.mxu0 0
        %2656 = vmatprep.subr.bf16.mxu0 0
        %2657 = vmatpush1.bf16.xpose.msra.mxu0 %v2640
        %2658 = vmatprep.subr.bf16.mxu0 0
        %2659 = vmatpush2.bf16.xpose.msra.mxu0 0
        %2660 = vmatprep.subr.bf16.mxu0 0
        %2661 = vmatpush2.bf16.xpose.msra.mxu0 0
        %2662 = vmatprep.subr.bf16.mxu0 0
        %2663 = vmatpush2.bf16.xpose.msra.mxu0 0
        %2664 = vmatprep.subr.bf16.mxu0 0
        %2665 = vmatpush2.bf16.xpose.msra.mxu0 0
        %2666 = vmatprep.subr.bf16.mxu0 0
        %2667 = vmatpush2.bf16.xpose.msra.mxu0 0
        %2668 = vmatprep.subr.bf16.mxu0 0
        %2669 = vmatpush2.bf16.xpose.msra.mxu0 0
        %2670 = vmatprep.subr.bf16.mxu0 0
        %2671 = vmatpush2.bf16.xpose.msra.mxu0 0
        %2672 = vmatprep.subr.bf16.mxu0 0
        %2673 = vmatpush2.bf16.xpose.msra.mxu0 0
        %2674 = vmatprep.mubr.bf16.mxu0 0
        %2675 = vmatmul.mubr.bf16.gmra.mxu0 %v2637
        %v2676 = vpop.f32.mrf.mxu0
        %v2677 = vadd.f32 0.0, %v2676
        %v2678 = vpop.f32.mrf.mxu0
        %v2679 = vpop.f32.mrf.mxu0
        %v2680 = vpop.f32.mrf.mxu0
        %2681 = vdwg.mxu0
        %v2682 = vmul.f32 %v2677, 0.25
        %v2683 = vsel %vm1607, %v2682, -inf
        %2684 = vmax.xlane.f32.xlu0 %v2683
        %v2685 = vpop.xlane.xlu0 %2684
        %v2686 = vsub.f32 %v2682, %v2685
        %v2687 = vmul.f32 %v2686, 1.442695
        %v2688 = vpow.pop %v2687
        %v2689 = vsel %vm1607, %v2688, 0.0
        %2690 = vadd.xlane.f32.xlu0 %v2689
        %v2691 = vpop.xlane.xlu0 %2690
        %v2692 = vrcp.pop %v2691
        %v2693 = vmul.f32 %v2688, %v2692
        %v2694 = vpack.c.bf16 %v2693, %v2693
        %2696 = vrot.lane.b32.xlu0 %v2635, 96
        %v2697 = vpop.permute.xlu0 %2696
        %v2699 = vsel %vm1607, %v2694, 0
        %v2702 = vsel %vm1625, %v2697, 0
        %2704 = vmatprep.subr.bf16.mxu0 0
        %2705 = vmatpush1.bf16.msra.mxu0 0
        %2706 = vmatprep.subr.bf16.mxu0 0
        %2707 = vmatpush1.bf16.msra.mxu0 0
        %2708 = vmatprep.subr.bf16.mxu0 0
        %2709 = vmatpush1.bf16.msra.mxu0 0
        %2710 = vmatprep.subr.bf16.mxu0 0
        %2711 = vmatpush1.bf16.msra.mxu0 0
        %2712 = vmatprep.subr.bf16.mxu0 0
        %2713 = vmatpush1.bf16.msra.mxu0 0
        %2714 = vmatprep.subr.bf16.mxu0 0
        %2715 = vmatpush1.bf16.msra.mxu0 0
        %2716 = vmatprep.subr.bf16.mxu0 0
        %2717 = vmatpush1.bf16.msra.mxu0 0
        %2718 = vmatprep.subr.bf16.mxu0 0
        %2719 = vmatpush1.bf16.msra.mxu0 %v2702
        %2720 = vmatprep.subr.bf16.mxu0 0
        %2721 = vmatpush2.bf16.msra.mxu0 0
        %2722 = vmatprep.subr.bf16.mxu0 0
        %2723 = vmatpush2.bf16.msra.mxu0 0
        %2724 = vmatprep.subr.bf16.mxu0 0
        %2725 = vmatpush2.bf16.msra.mxu0 0
        %2726 = vmatprep.subr.bf16.mxu0 0
        %2727 = vmatpush2.bf16.msra.mxu0 0
        %2728 = vmatprep.subr.bf16.mxu0 0
        %2729 = vmatpush2.bf16.msra.mxu0 0
        %2730 = vmatprep.subr.bf16.mxu0 0
        %2731 = vmatpush2.bf16.msra.mxu0 0
        %2732 = vmatprep.subr.bf16.mxu0 0
        %2733 = vmatpush2.bf16.msra.mxu0 0
        %2734 = vmatprep.subr.bf16.mxu0 0
        %2735 = vmatpush2.bf16.msra.mxu0 0
        %2736 = vmatprep.mubr.bf16.mxu0 0
        %2737 = vmatmul.mubr.bf16.gmra.mxu0 %v2699
        %v2738 = vpop.f32.mrf.mxu0
        %v2739 = vadd.f32 0.0, %v2738
        %v2740 = vpop.f32.mrf.mxu0
        %v2741 = vpop.f32.mrf.mxu0
        %v2742 = vpop.f32.mrf.mxu0
        %2743 = vdwg.mxu0
        %2745 = vrot.lane.b32.xlu0 %v2634, 112
        %v2746 = vpop.permute.xlu0 %2745
        %2747 = vrot.lane.b32.xlu0 %v2635, 112
        %v2748 = vpop.permute.xlu0 %2747
        %v2750 = vsel %vm1559, %v2746, 0
        %v2753 = vsel %vm1559, %v2748, 0
        %2755 = vmatprep.subr.bf16.mxu0 0
        %2756 = vmatpush1.bf16.xpose.msra.mxu0 0
        %2757 = vmatprep.subr.bf16.mxu0 0
        %2758 = vmatpush1.bf16.xpose.msra.mxu0 0
        %2759 = vmatprep.subr.bf16.mxu0 0
        %2760 = vmatpush1.bf16.xpose.msra.mxu0 0
        %2761 = vmatprep.subr.bf16.mxu0 0
        %2762 = vmatpush1.bf16.xpose.msra.mxu0 0
        %2763 = vmatprep.subr.bf16.mxu0 0
        %2764 = vmatpush1.bf16.xpose.msra.mxu0 0
        %2765 = vmatprep.subr.bf16.mxu0 0
        %2766 = vmatpush1.bf16.xpose.msra.mxu0 0
        %2767 = vmatprep.subr.bf16.mxu0 0
        %2768 = vmatpush1.bf16.xpose.msra.mxu0 0
        %2769 = vmatprep.subr.bf16.mxu0 0
        %2770 = vmatpush1.bf16.xpose.msra.mxu0 %v2753
        %2771 = vmatprep.subr.bf16.mxu0 0
        %2772 = vmatpush2.bf16.xpose.msra.mxu0 0
        %2773 = vmatprep.subr.bf16.mxu0 0
        %2774 = vmatpush2.bf16.xpose.msra.mxu0 0
        %2775 = vmatprep.subr.bf16.mxu0 0
        %2776 = vmatpush2.bf16.xpose.msra.mxu0 0
        %2777 = vmatprep.subr.bf16.mxu0 0
        %2778 = vmatpush2.bf16.xpose.msra.mxu0 0
        %2779 = vmatprep.subr.bf16.mxu0 0
        %2780 = vmatpush2.bf16.xpose.msra.mxu0 0
        %2781 = vmatprep.subr.bf16.mxu0 0
        %2782 = vmatpush2.bf16.xpose.msra.mxu0 0
        %2783 = vmatprep.subr.bf16.mxu0 0
        %2784 = vmatpush2.bf16.xpose.msra.mxu0 0
        %2785 = vmatprep.subr.bf16.mxu0 0
        %2786 = vmatpush2.bf16.xpose.msra.mxu0 0
        %2787 = vmatprep.mubr.bf16.mxu0 0
        %2788 = vmatmul.mubr.bf16.gmra.mxu0 %v2750
        %v2789 = vpop.f32.mrf.mxu0
        %v2790 = vadd.f32 0.0, %v2789
        %v2791 = vpop.f32.mrf.mxu0
        %v2792 = vpop.f32.mrf.mxu0
        %v2793 = vpop.f32.mrf.mxu0
        %2794 = vdwg.mxu0
        %v2795 = vmul.f32 %v2790, 0.25
        %v2796 = vsel %vm1607, %v2795, -inf
        %2797 = vmax.xlane.f32.xlu0 %v2796
        %v2798 = vpop.xlane.xlu0 %2797
        %v2799 = vsub.f32 %v2795, %v2798
        %v2800 = vmul.f32 %v2799, 1.442695
        %v2801 = vpow.pop %v2800
        %v2802 = vsel %vm1607, %v2801, 0.0
        %2803 = vadd.xlane.f32.xlu0 %v2802
        %v2804 = vpop.xlane.xlu0 %2803
        %v2805 = vrcp.pop %v2804
        %v2806 = vmul.f32 %v2801, %v2805
        %v2807 = vpack.c.bf16 %v2806, %v2806
        %2808 = vrot.lane.b32.xlu0 %v2635, 80
        %v2809 = vpop.permute.xlu0 %2808
        %v2811 = vsel %vm1607, %v2807, 0
        %v2814 = vsel %vm1625, %v2809, 0
        %2816 = vmatprep.subr.bf16.mxu0 0
        %2817 = vmatpush1.bf16.msra.mxu0 0
        %2818 = vmatprep.subr.bf16.mxu0 0
        %2819 = vmatpush1.bf16.msra.mxu0 0
        %2820 = vmatprep.subr.bf16.mxu0 0
        %2821 = vmatpush1.bf16.msra.mxu0 0
        %2822 = vmatprep.subr.bf16.mxu0 0
        %2823 = vmatpush1.bf16.msra.mxu0 0
        %2824 = vmatprep.subr.bf16.mxu0 0
        %2825 = vmatpush1.bf16.msra.mxu0 0
        %2826 = vmatprep.subr.bf16.mxu0 0
        %2827 = vmatpush1.bf16.msra.mxu0 0
        %2828 = vmatprep.subr.bf16.mxu0 0
        %2829 = vmatpush1.bf16.msra.mxu0 0
        %2830 = vmatprep.subr.bf16.mxu0 0
        %2831 = vmatpush1.bf16.msra.mxu0 %v2814
        %2832 = vmatprep.subr.bf16.mxu0 0
        %2833 = vmatpush2.bf16.msra.mxu0 0
        %2834 = vmatprep.subr.bf16.mxu0 0
        %2835 = vmatpush2.bf16.msra.mxu0 0
        %2836 = vmatprep.subr.bf16.mxu0 0
        %2837 = vmatpush2.bf16.msra.mxu0 0
        %2838 = vmatprep.subr.bf16.mxu0 0
        %2839 = vmatpush2.bf16.msra.mxu0 0
        %2840 = vmatprep.subr.bf16.mxu0 0
        %2841 = vmatpush2.bf16.msra.mxu0 0
        %2842 = vmatprep.subr.bf16.mxu0 0
        %2843 = vmatpush2.bf16.msra.mxu0 0
        %2844 = vmatprep.subr.bf16.mxu0 0
        %2845 = vmatpush2.bf16.msra.mxu0 0
        %2846 = vmatprep.subr.bf16.mxu0 0
        %2847 = vmatpush2.bf16.msra.mxu0 0
        %2848 = vmatprep.mubr.bf16.mxu0 0
        %2849 = vmatmul.mubr.bf16.gmra.mxu0 %v2811
        %v2850 = vpop.f32.mrf.mxu0
        %v2851 = vadd.f32 0.0, %v2850
        %v2852 = vpop.f32.mrf.mxu0
        %v2853 = vpop.f32.mrf.mxu0
        %v2854 = vpop.f32.mrf.mxu0
        %2855 = vdwg.mxu0
        %2857 = vrot.lane.b32.xlu0 %v2851, 16
        %v2858 = vpop.permute.xlu0 %2857
        %v2860 = vsel %vm1559, %v2739, %v2858
        %v2861 = vpack.c.bf16 %v2860, %v2860
        %v2862 = vld [vmem:[%s59] sm:$0xf]
        %v2863 = vld [vmem:[%s59 + $0x4] sm:$0xf]
        %v2864 = vld [vmem:[%s59 + $0x8] sm:$0xf]
        %v2865 = vld [vmem:[%s59 + $0xc] sm:$0xf]
        %v2866 = vld [vmem:[%s61] sm:$0x1]
        %v2868 = vlaneseq
        %v2869 = vshrl.u32 %v2868, 7
        %v2870 = vsub.s32 0, %v2869
        %v2871 = vrot.slane %v2866, %v2870
        %v2877 = vunpack.c.l.b16 %v2862
        %v2878 = vunpack.c.l.b16 %v2863
        %v2879 = vunpack.c.l.b16 %v2864
        %v2880 = vunpack.c.l.b16 %v2865
        %v2881 = vpack.c.b16 %v2878, %v2877
        %v2882 = vpack.c.b16 %v2880, %v2879
        %v2886 = vsel %vm1457, %v2861, 0
        %2888 = vmatprep.subr.bf16.mxu0 0
        %2889 = vmatpush1.bf16.msra.mxu0 0
        %2890 = vmatprep.subr.bf16.mxu0 0
        %2891 = vmatpush1.bf16.msra.mxu0 0
        %2892 = vmatprep.subr.bf16.mxu0 0
        %2893 = vmatpush1.bf16.msra.mxu0 0
        %2894 = vmatprep.subr.bf16.mxu0 0
        %2895 = vmatpush1.bf16.msra.mxu0 0
        %2896 = vmatprep.subr.bf16.mxu0 0
        %2897 = vmatpush1.bf16.msra.mxu0 0
        %2898 = vmatprep.subr.bf16.mxu0 0
        %2899 = vmatpush1.bf16.msra.mxu0 0
        %2900 = vmatprep.subr.bf16.mxu0 0
        %2901 = vmatpush1.bf16.msra.mxu0 %v2882
        %2902 = vmatprep.subr.bf16.mxu0 0
        %2903 = vmatpush1.bf16.msra.mxu0 %v2881
        %2904 = vmatprep.subr.bf16.mxu0 0
        %2905 = vmatpush2.bf16.msra.mxu0 0
        %2906 = vmatprep.subr.bf16.mxu0 0
        %2907 = vmatpush2.bf16.msra.mxu0 0
        %2908 = vmatprep.subr.bf16.mxu0 0
        %2909 = vmatpush2.bf16.msra.mxu0 0
        %2910 = vmatprep.subr.bf16.mxu0 0
        %2911 = vmatpush2.bf16.msra.mxu0 0
        %2912 = vmatprep.subr.bf16.mxu0 0
        %2913 = vmatpush2.bf16.msra.mxu0 0
        %2914 = vmatprep.subr.bf16.mxu0 0
        %2915 = vmatpush2.bf16.msra.mxu0 0
        %2916 = vmatprep.subr.bf16.mxu0 0
        %2917 = vmatpush2.bf16.msra.mxu0 0
        %2918 = vmatprep.subr.bf16.mxu0 0
        %2919 = vmatpush2.bf16.msra.mxu0 0
        %2920 = vmatprep.mubr.bf16.mxu0 0
        %2921 = vmatmul.mubr.bf16.gmra.mxu0 %v2886
        %v2922 = vpop.f32.mrf.mxu0
        %v2923 = vadd.f32 %v2871, %v2922
        %v2924 = vpop.f32.mrf.mxu0
        %v2925 = vpop.f32.mrf.mxu0
        %v2926 = vpop.f32.mrf.mxu0
        %2927 = vdwg.mxu0
        %v2928 = vadd.f32 %v2499, %v2923
        %v2929 = vsel %vm1457, %v2928, 0.0
        %2930 = vadd.xlane.f32.xlu0 %v2929
        %v2931 = vpop.xlane.xlu0 %2930
        %v2932 = vmul.f32 %v2931, %v1461
        %v2933 = vsub.f32 %v2928, %v2932
        %v2934 = vmul.f32 %v2933, %v2933
        %v2935 = vsel %vm1457, %v2934, 0.0
        %2936 = vadd.xlane.f32.xlu0 %v2935
        %v2937 = vpop.xlane.xlu0 %2936
        %v2938 = vmul.f32 %v2937, %v1461
        %v2939 = vadd.f32 %v2938, 1e-12
        %v2940 = vrsqrt.pop %v2939
        %v2941 = vmul.f32 %v2933, %v2940
        %v2942 = vld [vmem:[%s63] sm:$0x1]
        %v2944 = vlaneseq
        %v2945 = vshrl.u32 %v2944, 7
        %v2946 = vsub.s32 0, %v2945
        %v2947 = vrot.slane %v2942, %v2946
        %v2949 = vmul.f32 %v2941, %v2947
        %v2950 = vld [vmem:[%s65] sm:$0x1]
        %v2952 = vlaneseq
        %v2953 = vshrl.u32 %v2952, 7
        %v2954 = vsub.s32 0, %v2953
        %v2955 = vrot.slane %v2950, %v2954
        %v2957 = vadd.f32 %v2949, %v2955
        %v2958 = vpack.c.bf16 %v2957, %v2957
        %v2959 = vld [vmem:[%s67] sm:$0xf]
        %v2960 = vld [vmem:[%s67 + $0x4] sm:$0xf]
        %v2961 = vld [vmem:[%s67 + $0x8] sm:$0xf]
        %v2962 = vld [vmem:[%s67 + $0xc] sm:$0xf]
        %v2963 = vld [vmem:[%s69] sm:$0x1]
        %v2965 = vlaneseq
        %v2966 = vshrl.u32 %v2965, 7
        %v2967 = vsub.s32 0, %v2966
        %v2968 = vrot.slane %v2963, %v2967
        %v2974 = vunpack.c.l.b16 %v2959
        %v2975 = vunpack.c.l.b16 %v2960
        %v2976 = vunpack.c.l.b16 %v2961
        %v2977 = vunpack.c.l.b16 %v2962
        %v2978 = vpack.c.b16 %v2975, %v2974
        %v2979 = vpack.c.b16 %v2977, %v2976
        %v2983 = vsel %vm1457, %v2958, 0
        %2985 = vmatprep.subr.bf16.mxu0 0
        %2986 = vmatpush1.bf16.msra.mxu0 0
        %2987 = vmatprep.subr.bf16.mxu0 0
        %2988 = vmatpush1.bf16.msra.mxu0 0
        %2989 = vmatprep.subr.bf16.mxu0 0
        %2990 = vmatpush1.bf16.msra.mxu0 0
        %2991 = vmatprep.subr.bf16.mxu0 0
        %2992 = vmatpush1.bf16.msra.mxu0 0
        %2993 = vmatprep.subr.bf16.mxu0 0
        %2994 = vmatpush1.bf16.msra.mxu0 0
        %2995 = vmatprep.subr.bf16.mxu0 0
        %2996 = vmatpush1.bf16.msra.mxu0 0
        %2997 = vmatprep.subr.bf16.mxu0 0
        %2998 = vmatpush1.bf16.msra.mxu0 %v2979
        %2999 = vmatprep.subr.bf16.mxu0 0
        %3000 = vmatpush1.bf16.msra.mxu0 %v2978
        %3001 = vmatprep.subr.bf16.mxu0 0
        %3002 = vmatpush2.bf16.msra.mxu0 0
        %3003 = vmatprep.subr.bf16.mxu0 0
        %3004 = vmatpush2.bf16.msra.mxu0 0
        %3005 = vmatprep.subr.bf16.mxu0 0
        %3006 = vmatpush2.bf16.msra.mxu0 0
        %3007 = vmatprep.subr.bf16.mxu0 0
        %3008 = vmatpush2.bf16.msra.mxu0 0
        %3009 = vmatprep.subr.bf16.mxu0 0
        %3010 = vmatpush2.bf16.msra.mxu0 0
        %3011 = vmatprep.subr.bf16.mxu0 0
        %3012 = vmatpush2.bf16.msra.mxu0 0
        %3013 = vmatprep.subr.bf16.mxu0 0
        %3014 = vmatpush2.bf16.msra.mxu0 0
        %3015 = vmatprep.subr.bf16.mxu0 0
        %3016 = vmatpush2.bf16.msra.mxu0 0
        %3017 = vmatprep.mubr.bf16.mxu0 0
        %3018 = vmatmul.mubr.bf16.gmra.mxu0 %v2983
        %v3019 = vpop.f32.mrf.mxu0
        %v3020 = vadd.f32 %v2968, %v3019
        %v3021 = vpop.f32.mrf.mxu0
        %v3022 = vpop.f32.mrf.mxu0
        %v3023 = vpop.f32.mrf.mxu0
        %3024 = vdwg.mxu0
        %v3025 = vmul.f32 %v3020, %v3020
        %v3026 = vmul.f32 %v3020, %v3025
        %v3027 = vmul.f32 %v3026, 0.044715
        %v3028 = vadd.f32 %v3020, %v3027
        %v3029 = vmul.f32 %v3028, 0.7978846
        %v3030 = vtanh.pop %v3029
        %v3031 = vadd.f32 %v3030, 1.0
        %v3032 = vmul.f32 %v3031, 0.5
        %v3033 = vmul.f32 %v3020, %v3032
        %v3034 = vpack.c.bf16 %v3033, %v3033
        %v3035 = vld [vmem:[%s71] sm:$0xf]
        %v3036 = vld [vmem:[%s71 + $0x4] sm:$0xf]
        %v3037 = vld [vmem:[%s71 + $0x8] sm:$0xf]
        %v3038 = vld [vmem:[%s71 + $0xc] sm:$0xf]
        %v3039 = vld [vmem:[%s71 + $0x10] sm:$0xf]
        %v3040 = vld [vmem:[%s71 + $0x14] sm:$0xf]
        %v3041 = vld [vmem:[%s71 + $0x18] sm:$0xf]
        %v3042 = vld [vmem:[%s71 + $0x1c] sm:$0xf]
        %v3043 = vld [vmem:[%s73] sm:$0x1]
        %v3045 = vlaneseq
        %v3046 = vshrl.u32 %v3045, 7
        %v3047 = vsub.s32 0, %v3046
        %v3048 = vrot.slane %v3043, %v3047
        %v3058 = vunpack.c.l.b16 %v3035
        %v3059 = vunpack.c.l.b16 %v3036
        %v3060 = vunpack.c.l.b16 %v3037
        %v3061 = vunpack.c.l.b16 %v3038
        %v3062 = vunpack.c.l.b16 %v3039
        %v3063 = vunpack.c.l.b16 %v3040
        %v3064 = vunpack.c.l.b16 %v3041
        %v3065 = vunpack.c.l.b16 %v3042
        %v3066 = vpack.c.b16 %v3059, %v3058
        %v3067 = vpack.c.b16 %v3061, %v3060
        %v3068 = vpack.c.b16 %v3063, %v3062
        %v3069 = vpack.c.b16 %v3065, %v3064
        %v3075 = vsel %vm1998, %v3034, 0
        %3077 = vmatprep.subr.bf16.mxu0 0
        %3078 = vmatpush1.bf16.msra.mxu0 0
        %3079 = vmatprep.subr.bf16.mxu0 0
        %3080 = vmatpush1.bf16.msra.mxu0 0
        %3081 = vmatprep.subr.bf16.mxu0 0
        %3082 = vmatpush1.bf16.msra.mxu0 0
        %3083 = vmatprep.subr.bf16.mxu0 0
        %3084 = vmatpush1.bf16.msra.mxu0 0
        %3085 = vmatprep.subr.bf16.mxu0 0
        %3086 = vmatpush1.bf16.msra.mxu0 %v3069
        %3087 = vmatprep.subr.bf16.mxu0 0
        %3088 = vmatpush1.bf16.msra.mxu0 %v3068
        %3089 = vmatprep.subr.bf16.mxu0 0
        %3090 = vmatpush1.bf16.msra.mxu0 %v3067
        %3091 = vmatprep.subr.bf16.mxu0 0
        %3092 = vmatpush1.bf16.msra.mxu0 %v3066
        %3093 = vmatprep.subr.bf16.mxu0 0
        %3094 = vmatpush2.bf16.msra.mxu0 0
        %3095 = vmatprep.subr.bf16.mxu0 0
        %3096 = vmatpush2.bf16.msra.mxu0 0
        %3097 = vmatprep.subr.bf16.mxu0 0
        %3098 = vmatpush2.bf16.msra.mxu0 0
        %3099 = vmatprep.subr.bf16.mxu0 0
        %3100 = vmatpush2.bf16.msra.mxu0 0
        %3101 = vmatprep.subr.bf16.mxu0 0
        %3102 = vmatpush2.bf16.msra.mxu0 0
        %3103 = vmatprep.subr.bf16.mxu0 0
        %3104 = vmatpush2.bf16.msra.mxu0 0
        %3105 = vmatprep.subr.bf16.mxu0 0
        %3106 = vmatpush2.bf16.msra.mxu0 0
        %3107 = vmatprep.subr.bf16.mxu0 0
        %3108 = vmatpush2.bf16.msra.mxu0 0
        %3109 = vmatprep.mubr.bf16.mxu0 0
        %3110 = vmatmul.mubr.bf16.gmra.mxu0 %v3075
        %v3111 = vpop.f32.mrf.mxu0
        %v3112 = vadd.f32 %v3048, %v3111
        %v3113 = vpop.f32.mrf.mxu0
        %v3114 = vpop.f32.mrf.mxu0
        %v3115 = vpop.f32.mrf.mxu0
        %3116 = vdwg.mxu0
        %v3117 = vadd.f32 %v2957, %v3112
        %v3118 = vsel %vm1457, %v3117, 0.0
        %3119 = vadd.xlane.f32.xlu0 %v3118
        %v3120 = vpop.xlane.xlu0 %3119
        %v3121 = vmul.f32 %v3120, %v1461
        %v3122 = vsub.f32 %v3117, %v3121
        %v3123 = vmul.f32 %v3122, %v3122
        %v3124 = vsel %vm1457, %v3123, 0.0
        %3125 = vadd.xlane.f32.xlu0 %v3124
        %v3126 = vpop.xlane.xlu0 %3125
        %v3127 = vmul.f32 %v3126, %v1461
        %v3128 = vadd.f32 %v3127, 1e-12
        %v3129 = vrsqrt.pop %v3128
        %v3130 = vmul.f32 %v3122, %v3129
        %v3131 = vld [vmem:[%s75] sm:$0x1]
        %v3133 = vlaneseq
        %v3134 = vshrl.u32 %v3133, 7
        %v3135 = vsub.s32 0, %v3134
        %v3136 = vrot.slane %v3131, %v3135
        %v3138 = vmul.f32 %v3130, %v3136
        %v3139 = vld [vmem:[%s77] sm:$0x1]
        %v3141 = vlaneseq
        %v3142 = vshrl.u32 %v3141, 7
        %v3143 = vsub.s32 0, %v3142
        %v3144 = vrot.slane %v3139, %v3143
        %v3146 = vadd.f32 %v3138, %v3144
        %v3147 = vpack.c.bf16 %v3146, %v3146
        %v3148 = vld [vmem:[%s79] sm:$0xf]
        %v3149 = vld [vmem:[%s79 + $0x4] sm:$0xf]
        %v3150 = vld [vmem:[%s79 + $0x8] sm:$0xf]
        %v3151 = vld [vmem:[%s79 + $0xc] sm:$0xf]
        %v3152 = vld [vmem:[%s81] sm:$0x1]
        %v3154 = vlaneseq
        %v3155 = vshrl.u32 %v3154, 7
        %v3156 = vsub.s32 0, %v3155
        %v3157 = vrot.slane %v3152, %v3156
        %v3163 = vunpack.c.l.b16 %v3148
        %v3164 = vunpack.c.l.b16 %v3149
        %v3165 = vunpack.c.l.b16 %v3150
        %v3166 = vunpack.c.l.b16 %v3151
        %v3167 = vpack.c.b16 %v3164, %v3163
        %v3168 = vpack.c.b16 %v3166, %v3165
        %v3172 = vsel %vm1457, %v3147, 0
        %3174 = vmatprep.subr.bf16.mxu0 0
        %3175 = vmatpush1.bf16.msra.mxu0 0
        %3176 = vmatprep.subr.bf16.mxu0 0
        %3177 = vmatpush1.bf16.msra.mxu0 0
        %3178 = vmatprep.subr.bf16.mxu0 0
        %3179 = vmatpush1.bf16.msra.mxu0 0
        %3180 = vmatprep.subr.bf16.mxu0 0
        %3181 = vmatpush1.bf16.msra.mxu0 0
        %3182 = vmatprep.subr.bf16.mxu0 0
        %3183 = vmatpush1.bf16.msra.mxu0 0
        %3184 = vmatprep.subr.bf16.mxu0 0
        %3185 = vmatpush1.bf16.msra.mxu0 0
        %3186 = vmatprep.subr.bf16.mxu0 0
        %3187 = vmatpush1.bf16.msra.mxu0 %v3168
        %3188 = vmatprep.subr.bf16.mxu0 0
        %3189 = vmatpush1.bf16.msra.mxu0 %v3167
        %3190 = vmatprep.subr.bf16.mxu0 0
        %3191 = vmatpush2.bf16.msra.mxu0 0
        %3192 = vmatprep.subr.bf16.mxu0 0
        %3193 = vmatpush2.bf16.msra.mxu0 0
        %3194 = vmatprep.subr.bf16.mxu0 0
        %3195 = vmatpush2.bf16.msra.mxu0 0
        %3196 = vmatprep.subr.bf16.mxu0 0
        %3197 = vmatpush2.bf16.msra.mxu0 0
        %3198 = vmatprep.subr.bf16.mxu0 0
        %3199 = vmatpush2.bf16.msra.mxu0 0
        %3200 = vmatprep.subr.bf16.mxu0 0
        %3201 = vmatpush2.bf16.msra.mxu0 0
        %3202 = vmatprep.subr.bf16.mxu0 0
        %3203 = vmatpush2.bf16.msra.mxu0 0
        %3204 = vmatprep.subr.bf16.mxu0 0
        %3205 = vmatpush2.bf16.msra.mxu0 0
        %3206 = vmatprep.mubr.bf16.mxu0 0
        %3207 = vmatmul.mubr.bf16.gmra.mxu0 %v3172
        %v3208 = vpop.f32.mrf.mxu0
        %v3209 = vadd.f32 %v3157, %v3208
        %v3210 = vpop.f32.mrf.mxu0
        %v3211 = vpop.f32.mrf.mxu0
        %v3212 = vpop.f32.mrf.mxu0
        %3213 = vdwg.mxu0
        %v3214 = vmul.f32 %v3209, %v3209
        %v3215 = vmul.f32 %v3209, %v3214
        %v3216 = vmul.f32 %v3215, 0.044715
        %v3217 = vadd.f32 %v3209, %v3216
        %v3218 = vmul.f32 %v3217, 0.7978846
        %v3219 = vtanh.pop %v3218
        %v3220 = vadd.f32 %v3219, 1.0
        %v3221 = vmul.f32 %v3220, 0.5
        %v3222 = vmul.f32 %v3209, %v3221
        %v3223 = vsel %vm1457, %v3222, 0.0
        %3224 = vadd.xlane.f32.xlu0 %v3223
        %v3225 = vpop.xlane.xlu0 %3224
        %v3226 = vmul.f32 %v3225, %v1461
        %v3227 = vsub.f32 %v3222, %v3226
        %v3228 = vmul.f32 %v3227, %v3227
        %v3229 = vsel %vm1457, %v3228, 0.0
        %3230 = vadd.xlane.f32.xlu0 %v3229
        %v3231 = vpop.xlane.xlu0 %3230
        %v3232 = vmul.f32 %v3231, %v1461
        %v3233 = vadd.f32 %v3232, 1e-12
        %v3234 = vrsqrt.pop %v3233
        %v3235 = vmul.f32 %v3227, %v3234
        %v3236 = vld [vmem:[#allocation2] sm:$0x1]
        %v3238 = vlaneseq
        %v3239 = vshrl.u32 %v3238, 7
        %v3240 = vsub.s32 0, %v3239
        %v3241 = vrot.slane %v3236, %v3240
        %v3243 = vmul.f32 %v3235, %v3241
        %v3244 = vld [vmem:[#allocation5] sm:$0x1]
        %v3246 = vlaneseq
        %v3247 = vshrl.u32 %v3246, 7
        %v3248 = vsub.s32 0, %v3247
        %v3249 = vrot.slane %v3244, %v3248
        %v3251 = vadd.f32 %v3243, %v3249
        %v3252 = vpack.c.bf16 %v3251, %v3251
        %v3253 = vld [vmem:[%s87] sm:$0xf]
        %v3254 = vld [vmem:[%s87 + $0x4] sm:$0xf]
        %v3255 = vld [vmem:[%s87 + $0x8] sm:$0xf]
        %v3256 = vld [vmem:[%s87 + $0xc] sm:$0xf]
        %v3257 = vld [vmem:[#allocation7] sm:$0x1]
        %v3259 = vlaneseq
        %v3260 = vshrl.u32 %v3259, 7
        %v3261 = vsub.s32 0, %v3260
        %v3262 = vrot.slane %v3257, %v3261
        %v3268 = vunpack.c.l.b16 %v3253
        %v3269 = vunpack.c.l.b16 %v3254
        %v3270 = vunpack.c.l.b16 %v3255
        %v3271 = vunpack.c.l.b16 %v3256
        %v3272 = vpack.c.b16 %v3269, %v3268
        %v3273 = vpack.c.b16 %v3271, %v3270
        %v3277 = vsel %vm1457, %v3252, 0
        %3279 = vmatprep.subr.bf16.mxu0 0
        %3280 = vmatpush1.bf16.msra.mxu0 0
        %3281 = vmatprep.subr.bf16.mxu0 0
        %3282 = vmatpush1.bf16.msra.mxu0 0
        %3283 = vmatprep.subr.bf16.mxu0 0
        %3284 = vmatpush1.bf16.msra.mxu0 0
        %3285 = vmatprep.subr.bf16.mxu0 0
        %3286 = vmatpush1.bf16.msra.mxu0 0
        %3287 = vmatprep.subr.bf16.mxu0 0
        %3288 = vmatpush1.bf16.msra.mxu0 0
        %3289 = vmatprep.subr.bf16.mxu0 0
        %3290 = vmatpush1.bf16.msra.mxu0 0
        %3291 = vmatprep.subr.bf16.mxu0 0
        %3292 = vmatpush1.bf16.msra.mxu0 %v3273
        %3293 = vmatprep.subr.bf16.mxu0 0
        %3294 = vmatpush1.bf16.msra.mxu0 %v3272
        %3295 = vmatprep.subr.bf16.mxu0 0
        %3296 = vmatpush2.bf16.msra.mxu0 0
        %3297 = vmatprep.subr.bf16.mxu0 0
        %3298 = vmatpush2.bf16.msra.mxu0 0
        %3299 = vmatprep.subr.bf16.mxu0 0
        %3300 = vmatpush2.bf16.msra.mxu0 0
        %3301 = vmatprep.subr.bf16.mxu0 0
        %3302 = vmatpush2.bf16.msra.mxu0 0
        %3303 = vmatprep.subr.bf16.mxu0 0
        %3304 = vmatpush2.bf16.msra.mxu0 0
        %3305 = vmatprep.subr.bf16.mxu0 0
        %3306 = vmatpush2.bf16.msra.mxu0 0
        %3307 = vmatprep.subr.bf16.mxu0 0
        %3308 = vmatpush2.bf16.msra.mxu0 0
        %3309 = vmatprep.subr.bf16.mxu0 0
        %3310 = vmatpush2.bf16.msra.mxu0 0
        %3311 = vmatprep.mubr.bf16.mxu0 0
        %3312 = vmatmul.mubr.bf16.gmra.mxu0 %v3277
        %v3313 = vpop.f32.mrf.mxu0
        %v3314 = vadd.f32 %v3262, %v3313
        %v3315 = vpop.f32.mrf.mxu0
        %v3316 = vpop.f32.mrf.mxu0
        %v3317 = vpop.f32.mrf.mxu0
        %3318 = vdwg.mxu0
        %3319 = vst [vmem:[%s1439] sm:$0xff] %v3314
        %v3320 = vld [vmem:[%s1451] sm:$0xff]
        %3321 = vmax.xlane.f32.xlu0 %v3314
        %v3322 = vpop.xlane.xlu0 %3321
        %v3323 = vsub.f32 %v3314, %v3322
        %v3324 = vmul.f32 %v3323, 1.442695
        %v3325 = vpow.pop %v3324
        %3326 = vadd.xlane.f32.xlu0 %v3325
        %v3327 = vpop.xlane.xlu0 %3326
        %v3328 = vlog2.pop %v3327
        %v3329 = vmul.f32 %v3328, 0.6931472
        %v3330 = vadd.f32 %v3322, %v3329
        %3331 = vset.pattern.permute.xlu0 0
        %3332 = vperm.xlu0 %3331, %v3320
        %v3333 = vpop.permute.xlu0 %3332
        %vm3334 = vcmp.eq.s32.totalorder %v2223, %v3333
        %v3335 = vsel %vm3334, 1, 0
        %v3336 = vcvt.s32.f32 %v3335
        %v3337 = vmul.f32 %v3336, %v3314
        %3338 = vadd.xlane.f32.xlu0 %v3337
        %v3339 = vpop.xlane.xlu0 %3338
        %v3340 = vsub.f32 %v3330, %v3339
        %vm3341 = vcmask 7168
        %v3342 = vsel %vm3341, %v3340, 0.0
        %3343 = vadd.xlane.f32.xlu0 %v3342
        %v3344 = vpop.xlane.xlu0 %3343
        %v3345 = vrot.slane %v3344, 4
        %v3346 = vadd.f32 %v3344, %v3345
        %v3347 = vrot.slane %v3346, 2
        %v3348 = vadd.f32 %v3346, %v3347
        %v3349 = vrot.slane %v3348, 1
        %v3350 = vadd.f32 %v3348, %v3349
        %s3351 = vtos %v3350
        %v3352 = vstv %s3351
        %3353 = vst [vmem:[%s1454] sm:$0x1] %v3352
        %p3354 = scmp.lt.s32.totalorder %s110, 1
        %s3355 = scalar_select %p3354, %s110, 1
        %s3356 = scalar_lea.vmem %s91, %s3355
        %s3357 = sand.u32 %s1104, 1
        %s3358 = scalar_lea.sflag [#allocation4], %s3357
        %s3359 = sand.u32 %s1104, 1
        %s3360 = smul.addr %s3359, 8
        %s3361 = scalar_lea.vmem [#allocation8], %s3360
        // Predicated region
        $region213: #{translation_model_forward.1} parent=199 // pred_check
          %p3362 = pneg %p1088
        $region214: #{translation_model_forward.1} parent=199 // pred_check_branch
          %3364 = sbr.rel (%p3362) target = $region216
        $region215: #{translation_model_forward.1} parent=199 // pred_region
          _
        $region216: #{translation_model_forward.1} parent=199 // pred_fallthru
          _
        // Predicated region
        $region217: #{translation_model_forward.1} parent=199 // pred_check
          %p3365 = pneg %p1114
        $region218: #{translation_model_forward.1} parent=199 // pred_check_branch
          %3367 = sbr.rel (%p3365) target = $region220
        $region219: #{translation_model_forward.1} parent=199 // pred_region
          %s3369 = ssub.s32 128, 128
          %3370 = vsyncadd %s3358, %s3369
          %s3371 = smul.addr %s110, 128
          %s3372 = scalar_lea.hbm %s93, %s3371
          %s3374 = sshll.u32 %s3361, 4
          %s3375 = int_to_ptr.vmem [resolvable:$true] %s3374
          %3377 = dma.vmem_to_hbm [thread:$0]  %s3375, 128, %s3372, %s3358
        $region220: #{translation_model_forward.1} parent=199 // pred_fallthru
          _
      $region200: #{translation_model_forward.1} parent=5 // pred_fallthru
        _
      %p3378 = scmp.le.s32.totalorder 2, %s105
      // Predicated region
      $region221: #{translation_model_forward.1} parent=5 // pred_check
        %p3379 = pneg %p3378
      $region222: #{translation_model_forward.1} parent=5 // pred_check_branch
        %3381 = sbr.rel (%p3379) target = $region224
      $region223: #{translation_model_forward.1} parent=5 // pred_region
        %s3382 = ssub.s32 %s105, 2
        // Predicated region
        $region225: #{translation_model_forward.1} parent=223 // pred_check
          %p3383 = pneg %p1094
        $region226: #{translation_model_forward.1} parent=223 // pred_check_branch
          %3385 = sbr.rel (%p3383) target = $region228
        $region227: #{translation_model_forward.1} parent=223 // pred_region
          %p3386 = scmp.lt.s32.totalorder %s111, 1
          %s3387 = scalar_select %p3386, %s111, 1
          %s3388 = scalar_lea.vmem %s91, %s3387
        $region228: #{translation_model_forward.1} parent=223 // pred_fallthru
          _
        // Predicated region
        $region229: #{translation_model_forward.1} parent=223 // pred_check
          %p3389 = pneg %p1120
        $region230: #{translation_model_forward.1} parent=223 // pred_check_branch
          %3391 = sbr.rel (%p3389) target = $region232
        $region231: #{translation_model_forward.1} parent=223 // pred_region
          %s3392 = sand.u32 %s1105, 1
          %s3393 = scalar_lea.sflag [#allocation4], %s3392
          %s3394 = sand.u32 %s1105, 1
          %s3395 = smul.addr %s3394, 8
          %s3396 = scalar_lea.vmem [#allocation8], %s3395
          %3397 = dma.done %s3393, 128
        $region232: #{translation_model_forward.1} parent=223 // pred_fallthru
          _
      $region224: #{translation_model_forward.1} parent=5 // pred_fallthru
        _
    $region6: #{translation_model_forward.1} parent=1 // loop_footer
      %s109 = sadd.s32 1, %s105
    $region7: #{translation_model_forward.1} parent=1 // loop_footer_branch
      %104 = sbr.rel target = $region3
    $region8: #{translation_model_forward.1} parent=1 // loop_exit
      _
    %3398 = vsyncpa [#allocation3], 1
    %s3399 = scalar_lea.sflag [#allocation3], 1
    %3400 = vsyncpa %s3399, 1
    %3401 = vsyncpa [#allocation6], 1
    %3402 = vsyncpa [#allocation4], 1
    %s3403 = scalar_lea.sflag [#allocation4], 1
    %3404 = vsyncpa %s3403, 1

</llo_original>
